<compile_context>
chip_gen: v5e
topology: v5e:2x2
jax: 0.10.0
libtpu: 0.0.40
codegen_flags: <defaults>
</compile_context>

<pallas_src>
import math

import jax
import jax.numpy as jnp
from jax.experimental import pallas as pl
from jax.experimental.pallas import tpu as pltpu

EPS = 1e-5
ROPE_BASE = 10000.0


def _decoder_layer_kernel(
    x_ref, cos_ref, sin_ref, mpast_ref, mnew_ref, pk_ref, pv_ref,
    wq_ref, wk_ref, wv_ref, wo_ref, wg_ref, wu_ref, wd_ref,
    ln1_ref, ln2_ref,
    out_ref, ko_ref, vo_ref,
):
    """One Llama decoder layer for a single batch element.

    x_ref (S,H) f32; cos/sin_ref (S,HD) f32 (sin has the rotate_half sign folded
    in); mpast/mnew_ref (S,P)/(S,S) additive masks; pk/pv_ref (NH,P,HD) f32 =
    past rows of the aliased cache; weights bf16 with Q/K/V split per head as
    (NH,H,HD) and O as (NH,HD,H); outputs: hidden (S,H) f32 plus the NEW cache
    rows (NH,S,HD) written in place at rows [P:P+S] of the aliased cache.
    """
    f32, bf16 = jnp.float32, jnp.bfloat16
    S, H = x_ref.shape
    NH, P, HD = pk_ref.shape

    x = x_ref[...]                                                  # (S,H) f32

    # ---- input RMSNorm (f32 elementwise, bf16 feeds the MXU) ----
    var = jnp.mean(x * x, axis=-1, keepdims=True)
    xn = (x * jax.lax.rsqrt(var + EPS) * ln1_ref[...]).astype(bf16)
    xn_b = jnp.broadcast_to(xn, (NH, S, H))                         # heads-batched view

    # ---- QKV projections straight into (NH,S,HD): no in-kernel transpose ----
    q = jnp.einsum("hsk,hkd->hsd", xn_b, wq_ref[...], preferred_element_type=f32)
    k = jnp.einsum("hsk,hkd->hsd", xn_b, wk_ref[...], preferred_element_type=f32)
    v = jnp.einsum("hsk,hkd->hsd", xn_b, wv_ref[...], preferred_element_type=f32)

    # ---- RoPE via XLU roll (no extra matmuls); rotate_half sign is in sin ----
    cos = cos_ref[...][None, :, :]                                  # (1,S,HD)
    sin = sin_ref[...][None, :, :]

    def rope(t):
        return t * cos + pltpu.roll(t, HD // 2, 2) * sin

    q = rope(q) * (1.0 / math.sqrt(HD))                             # fold softmax scale once
    k = rope(k)

    # ---- write ONLY the new S rows of the (aliased) KV cache ----
    ko_ref[...] = k.astype(ko_ref.dtype)
    vo_ref[...] = v.astype(vo_ref.dtype)

    # ---- attention: past (streamed from cache) + new (in registers),
    #      one joint softmax, no k_full/v_full materialization ----
    qb, kb, vb = q.astype(bf16), k.astype(bf16), v.astype(bf16)
    kp = pk_ref[...].astype(bf16)
    vp = pv_ref[...].astype(bf16)

    s_past = jnp.einsum("hsd,htd->hst", qb, kp, preferred_element_type=f32)  # (NH,S,P)
    s_new = jnp.einsum("hsd,htd->hst", qb, kb, preferred_element_type=f32)   # (NH,S,S)
    s_past = s_past + mpast_ref[...][None, :, :]
    s_new = s_new + mnew_ref[...][None, :, :]

    m = jnp.maximum(jnp.max(s_past, axis=-1, keepdims=True),
                    jnp.max(s_new, axis=-1, keepdims=True))
    p_past = jnp.exp(s_past - m)
    p_new = jnp.exp(s_new - m)
    inv = pl.reciprocal(
        jnp.sum(p_past, axis=-1, keepdims=True) + jnp.sum(p_new, axis=-1, keepdims=True),
        approx=True)

    ctx = (jnp.einsum("hst,htd->hsd", p_past.astype(bf16), vp, preferred_element_type=f32)
           + jnp.einsum("hst,htd->hsd", p_new.astype(bf16), vb, preferred_element_type=f32))
    ctx = (ctx * inv).astype(bf16)                                  # (NH,S,HD)

    # ---- output projection (per-head partials summed) + residual ----
    attn = jnp.einsum("hsd,hdk->hsk", ctx, wo_ref[...], preferred_element_type=f32)
    h1 = x + jnp.sum(attn, axis=0)                                  # (S,H) f32

    # ---- post-attention RMSNorm + SwiGLU MLP + residual ----
    var2 = jnp.mean(h1 * h1, axis=-1, keepdims=True)
    xn2 = (h1 * jax.lax.rsqrt(var2 + EPS) * ln2_ref[...]).astype(bf16)
    g = jnp.dot(xn2, wg_ref[...], preferred_element_type=f32)
    u = jnp.dot(xn2, wu_ref[...], preferred_element_type=f32)
    act = (g * jax.nn.sigmoid(g) * u).astype(bf16)
    mlp = jnp.dot(act, wd_ref[...], preferred_element_type=f32)

    out_ref[...] = (h1 + mlp).astype(out_ref.dtype)


def _rope_tables(position_ids, head_dim):
    """cos and sign-folded sin tables, shape (B, S, HD) each (rotate_half == roll * sign)."""
    inv_freq = 1.0 / (ROPE_BASE ** (jnp.arange(0, head_dim, 2, dtype=jnp.float32) / head_dim))
    freqs = position_ids.astype(jnp.float32)[..., None] * inv_freq[None, None, :]
    emb = jnp.concatenate([freqs, freqs], axis=-1)                  # (B,S,HD)
    sign = jnp.concatenate([-jnp.ones(head_dim // 2, jnp.float32),
                            jnp.ones(head_dim // 2, jnp.float32)])
    return jnp.cos(emb), jnp.sin(emb) * sign


def _split_heads_out(w, num_heads, head_dim):
    """(H_in, NH*HD) -> (NH, H_in, HD)  (done once, outside the kernel)."""
    h_in = w.shape[0]
    return jnp.transpose(w.reshape(h_in, num_heads, head_dim), (1, 0, 2))


def block_cache_forward(hidden_states, position_ids, attention_mask, past_k, past_v, params):
    B, S, H = hidden_states.shape
    _, NH, P, HD = past_k.shape
    T = P + S
    I = params["w_gate"].shape[1]
    assert H == NH * HD and HD % 128 == 0, "head_dim must be a lane multiple"
    assert S % 8 == 0 and P % 8 == 0 and P % S == 0, "sublane-aligned cache blocks"

    cos_t, sin_t = _rope_tables(position_ids, HD)                   # (B,S,HD) each
    mask = attention_mask.reshape(B, S, T).astype(jnp.float32)
    mask_past = mask[:, :, :P]                                      # (B,S,P)
    mask_new = mask[:, :, P:]                                       # (B,S,S)

    bf16 = jnp.bfloat16
    wq_h = _split_heads_out(params["w_q"], NH, HD).astype(bf16)     # (NH,H,HD)
    wk_h = _split_heads_out(params["w_k"], NH, HD).astype(bf16)
    wv_h = _split_heads_out(params["w_v"], NH, HD).astype(bf16)
    wo_h = params["w_o"].reshape(NH, HD, H).astype(bf16)            # (NH,HD,H)
    wg = params["w_gate"].astype(bf16)
    wu = params["w_up"].astype(bf16)
    wd = params["w_down"].astype(bf16)
    ln1 = params["ln1"].reshape(1, H).astype(jnp.float32)
    ln2 = params["ln2"].reshape(1, H).astype(jnp.float32)

    # Present-KV buffers at full capacity T.  In a serving loop the caller owns
    # and donates these (B,NH,T,HD) buffers; the kernel only writes the S new
    # rows in place (input_output_aliases), so no O(B*NH*T*HD) copy runs inside
    # the kernel.  The concat below merely builds that caller-owned buffer for
    # this self-contained demo.
    kcache = jnp.concatenate([past_k, jnp.zeros((B, NH, S, HD), past_k.dtype)], axis=2)
    vcache = jnp.concatenate([past_v, jnp.zeros((B, NH, S, HD), past_v.dtype)], axis=2)

    def batched(*bs):
        return pl.BlockSpec((None,) + bs, lambda b, _n=len(bs): (b,) + (0,) * _n)

    def shared(*bs):
        return pl.BlockSpec(bs, lambda b, _n=len(bs): (0,) * _n)

    out, pk_out, pv_out = pl.pallas_call(
        _decoder_layer_kernel,
        grid=(B,),
        in_specs=[
            batched(S, H),                                               # hidden_states
            batched(S, HD),                                              # cos
            batched(S, HD),                                              # sin (sign-folded)
            batched(S, P),                                               # mask over past cols
            batched(S, S),                                               # mask over new cols
            pl.BlockSpec((None, NH, P, HD), lambda b: (b, 0, 0, 0)),     # past rows of k cache
            pl.BlockSpec((None, NH, P, HD), lambda b: (b, 0, 0, 0)),     # past rows of v cache
            shared(NH, H, HD),                                           # w_q (head-split)
            shared(NH, H, HD),                                           # w_k
            shared(NH, H, HD),                                           # w_v
            shared(NH, HD, H),                                           # w_o
            shared(H, I),                                                # w_gate
            shared(H, I),                                                # w_up
            shared(I, H),                                                # w_down
            shared(1, H),                                                # ln1
            shared(1, H),                                                # ln2
        ],
        out_specs=[
            batched(S, H),                                               # hidden out
            pl.BlockSpec((None, NH, S, HD), lambda b: (b, 0, P // S, 0)),  # new k rows
            pl.BlockSpec((None, NH, S, HD), lambda b: (b, 0, P // S, 0)),  # new v rows
        ],
        out_shape=[
            jax.ShapeDtypeStruct((B, S, H), jnp.float32),
            jax.ShapeDtypeStruct((B, NH, T, HD), past_k.dtype),
            jax.ShapeDtypeStruct((B, NH, T, HD), past_v.dtype),
        ],
        input_output_aliases={5: 1, 6: 2},   # kcache -> present_k, vcache -> present_v
        compiler_params=pltpu.CompilerParams(
            dimension_semantics=("parallel",),
            vmem_limit_bytes=48 * 1024 * 1024),
    )(hidden_states, cos_t, sin_t, mask_past, mask_new, kcache, vcache,
      wq_h, wk_h, wv_h, wo_h, wg, wu, wd, ln1, ln2)

    return out, pk_out, pv_out


# ---------------- pure-JAX reference (for correctness check) ----------------
def reference_forward(hidden_states, position_ids, attention_mask, past_k, past_v, params):
    B, S, H = hidden_states.shape
    _, NH, P, HD = past_k.shape

    def rms(x, w):
        var = jnp.mean(x * x, axis=-1, keepdims=True)
        return x * jax.lax.rsqrt(var + EPS) * w

    inv_freq = 1.0 / (ROPE_BASE ** (jnp.arange(0, HD, 2, dtype=jnp.float32) / HD))
    freqs = position_ids.astype(jnp.float32)[..., None] * inv_freq[None, None, :]
    emb = jnp.concatenate([freqs, freqs], axis=-1)
    cos = jnp.cos(emb)[:, None, :, :]
    sin = jnp.sin(emb)[:, None, :, :]

    def rotate_half(x):
        x1, x2 = x[..., : HD // 2], x[..., HD // 2:]
        return jnp.concatenate([-x2, x1], axis=-1)

    xn = rms(hidden_states, params["ln1"])
    q = (xn @ params["w_q"]).reshape(B, S, NH, HD).transpose(0, 2, 1, 3)
    k = (xn @ params["w_k"]).reshape(B, S, NH, HD).transpose(0, 2, 1, 3)
    v = (xn @ params["w_v"]).reshape(B, S, NH, HD).transpose(0, 2, 1, 3)
    q = q * cos + rotate_half(q) * sin
    k = k * cos + rotate_half(k) * sin

    k_full = jnp.concatenate([past_k, k], axis=2)
    v_full = jnp.concatenate([past_v, v], axis=2)

    scores = jnp.einsum("bhsd,bhtd->bhst", q, k_full) / math.sqrt(HD) + attention_mask
    probs = jax.nn.softmax(scores, axis=-1)
    ctx = jnp.einsum("bhst,bhtd->bhsd", probs, v_full).transpose(0, 2, 1, 3).reshape(B, S, H)
    h1 = hidden_states + ctx @ params["w_o"]

    xn2 = rms(h1, params["ln2"])
    g = xn2 @ params["w_gate"]
    u = xn2 @ params["w_up"]
    out = h1 + (g * jax.nn.sigmoid(g) * u) @ params["w_down"]
    return out, k_full, v_full


if __name__ == "__main__":
    # Small but TPU-friendly decoder-layer shapes (lane-aligned head_dim).
    B, NH, HD, P, S, I = 2, 2, 128, 16, 8, 512
    H = NH * HD
    T = P + S

    key = jax.random.PRNGKey(0)
    ks = jax.random.split(key, 12)
    scale = 0.05
    params = {
        "w_q": jax.random.normal(ks[0], (H, H), jnp.float32) * scale,
        "w_k": jax.random.normal(ks[1], (H, H), jnp.float32) * scale,
        "w_v": jax.random.normal(ks[2], (H, H), jnp.float32) * scale,
        "w_o": jax.random.normal(ks[3], (H, H), jnp.float32) * scale,
        "w_gate": jax.random.normal(ks[4], (H, I), jnp.float32) * scale,
        "w_up": jax.random.normal(ks[5], (H, I), jnp.float32) * scale,
        "w_down": jax.random.normal(ks[6], (I, H), jnp.float32) * scale,
        "ln1": 1.0 + 0.1 * jax.random.normal(ks[7], (H,), jnp.float32),
        "ln2": 1.0 + 0.1 * jax.random.normal(ks[8], (H,), jnp.float32),
    }

    hidden_states = jax.random.normal(ks[9], (B, S, H), jnp.float32)
    position_ids = P + jnp.broadcast_to(jnp.arange(S, dtype=jnp.int32), (B, S))
    # Additive mask: new tokens see the whole past plus causally-earlier new tokens.
    causal = jnp.where(jnp.arange(S)[:, None] >= jnp.arange(S)[None, :], 0.0, -1e9)
    attention_mask = jnp.concatenate([jnp.zeros((S, P), jnp.float32), causal], axis=-1)
    attention_mask = jnp.broadcast_to(attention_mask, (B, 1, S, T))
    attention_mask = attention_mask.at[1, :, :, 0].set(-1e9)   # mask one stale cache slot
    past_k = jax.random.normal(ks[10], (B, NH, P, HD), jnp.float32) * 0.5
    past_v = jax.random.normal(ks[11], (B, NH, P, HD), jnp.float32) * 0.5

    out, pk, pv = block_cache_forward(
        hidden_states, position_ids, attention_mask, past_k, past_v, params)
    jax.block_until_ready((out, pk, pv))

    ref_out, ref_pk, ref_pv = reference_forward(
        hidden_states, position_ids, attention_mask, past_k, past_v, params)
    assert jnp.allclose(out, ref_out, rtol=2e-2, atol=2e-2), "hidden_states mismatch"
    assert jnp.allclose(pk, ref_pk, rtol=2e-2, atol=2e-2), "present_k mismatch"
    assert jnp.allclose(pv, ref_pv, rtol=2e-2, atol=2e-2), "present_v mismatch"

    print("KERNEL_OK")
</pallas_src>

<mosaic_0001>
module attributes {stable_mosaic.version = 11 : i64} {
  func.func @_decoder_layer_kernel(%arg0: i32, %arg1: memref<1x8x256xf32, #tpu.memory_space<vmem>>, %arg2: memref<1x8x128xf32, #tpu.memory_space<vmem>>, %arg3: memref<1x8x128xf32, #tpu.memory_space<vmem>>, %arg4: memref<1x8x16xf32, #tpu.memory_space<vmem>>, %arg5: memref<1x8x8xf32, #tpu.memory_space<vmem>>, %arg6: memref<1x2x16x128xf32, #tpu.memory_space<vmem>>, %arg7: memref<1x2x16x128xf32, #tpu.memory_space<vmem>>, %arg8: memref<2x256x128xbf16, #tpu.memory_space<vmem>>, %arg9: memref<2x256x128xbf16, #tpu.memory_space<vmem>>, %arg10: memref<2x256x128xbf16, #tpu.memory_space<vmem>>, %arg11: memref<2x128x256xbf16, #tpu.memory_space<vmem>>, %arg12: memref<256x512xbf16, #tpu.memory_space<vmem>>, %arg13: memref<256x512xbf16, #tpu.memory_space<vmem>>, %arg14: memref<512x256xbf16, #tpu.memory_space<vmem>>, %arg15: memref<1x256xf32, #tpu.memory_space<vmem>>, %arg16: memref<1x256xf32, #tpu.memory_space<vmem>>, %arg17: memref<1x8x256xf32, #tpu.memory_space<vmem>>, %arg18: memref<1x2x8x128xf32, #tpu.memory_space<vmem>>, %arg19: memref<1x2x8x128xf32, #tpu.memory_space<vmem>>) attributes {dimension_semantics = [#tpu.dimension_semantics<parallel>], iteration_bounds = array<i64: 2>, scalar_prefetch = 0 : i64, scratch_operands = 0 : i64, tpu.core_type = #tpu.core_type<tc>, window_params = [{transform_indices = @transform_0, window_bounds = array<i64: 1, 8, 256>}, {transform_indices = @transform_1, window_bounds = array<i64: 1, 8, 128>}, {transform_indices = @transform_2, window_bounds = array<i64: 1, 8, 128>}, {transform_indices = @transform_3, window_bounds = array<i64: 1, 8, 16>}, {transform_indices = @transform_4, window_bounds = array<i64: 1, 8, 8>}, {transform_indices = @transform_5, window_bounds = array<i64: 1, 2, 16, 128>}, {transform_indices = @transform_6, window_bounds = array<i64: 1, 2, 16, 128>}, {pipeline_mode = #tpu.pipeline_mode<synchronous>, transform_indices = @transform_7, window_bounds = array<i64: 2, 256, 128>}, {pipeline_mode = #tpu.pipeline_mode<synchronous>, transform_indices = @transform_8, window_bounds = array<i64: 2, 256, 128>}, {pipeline_mode = #tpu.pipeline_mode<synchronous>, transform_indices = @transform_9, window_bounds = array<i64: 2, 256, 128>}, {pipeline_mode = #tpu.pipeline_mode<synchronous>, transform_indices = @transform_10, window_bounds = array<i64: 2, 128, 256>}, {pipeline_mode = #tpu.pipeline_mode<synchronous>, transform_indices = @transform_11, window_bounds = array<i64: 256, 512>}, {pipeline_mode = #tpu.pipeline_mode<synchronous>, transform_indices = @transform_12, window_bounds = array<i64: 256, 512>}, {pipeline_mode = #tpu.pipeline_mode<synchronous>, transform_indices = @transform_13, window_bounds = array<i64: 512, 256>}, {pipeline_mode = #tpu.pipeline_mode<synchronous>, transform_indices = @transform_14, window_bounds = array<i64: 1, 256>}, {pipeline_mode = #tpu.pipeline_mode<synchronous>, transform_indices = @transform_15, window_bounds = array<i64: 1, 256>}, {transform_indices = @transform_16, window_bounds = array<i64: 1, 8, 256>}, {transform_indices = @transform_17, window_bounds = array<i64: 1, 2, 8, 128>}, {transform_indices = @transform_18, window_bounds = array<i64: 1, 2, 8, 128>}]} {
    %c0 = arith.constant 0 : index
    %c0_0 = arith.constant 0 : index
    %c0_1 = arith.constant 0 : index
    %0 = vector.load %arg1[%c0, %c0_0, %c0_1] : memref<1x8x256xf32, #tpu.memory_space<vmem>>, vector<1x8x256xf32>
    %1 = vector.shape_cast %0 : vector<1x8x256xf32> to vector<8x256xf32>
    %2 = arith.mulf %1, %1 : vector<8x256xf32>
    %cst = arith.constant dense<0.000000e+00> : vector<8xf32>
    %3 = vector.multi_reduction <add>, %2, %cst [1] : vector<8x256xf32> to vector<8xf32>
    %4 = vector.shape_cast %3 : vector<8xf32> to vector<8x1xf32>
    %cst_2 = arith.constant 2.560000e+02 : f32
    %5 = vector.broadcast %cst_2 : f32 to vector<8x1xf32>
    %6 = arith.divf %4, %5 : vector<8x1xf32>
    %cst_3 = arith.constant 9.99999974E-6 : f32
    %7 = vector.broadcast %cst_3 : f32 to vector<8x1xf32>
    %8 = arith.addf %6, %7 : vector<8x1xf32>
    %9 = math.rsqrt %8 : vector<8x1xf32>
    %10 = vector.broadcast %9 : vector<8x1xf32> to vector<8x256xf32>
    %11 = arith.mulf %1, %10 : vector<8x256xf32>
    %c0_4 = arith.constant 0 : index
    %c0_5 = arith.constant 0 : index
    %12 = vector.load %arg15[%c0_4, %c0_5] : memref<1x256xf32, #tpu.memory_space<vmem>>, vector<1x256xf32>
    %13 = vector.broadcast %12 : vector<1x256xf32> to vector<8x256xf32>
    %14 = arith.mulf %11, %13 : vector<8x256xf32>
    %15 = arith.truncf %14 : vector<8x256xf32> to vector<8x256xbf16>
    %16 = vector.shape_cast %15 : vector<8x256xbf16> to vector<1x8x256xbf16>
    %17 = vector.broadcast %16 : vector<1x8x256xbf16> to vector<2x8x256xbf16>
    %c0_6 = arith.constant 0 : index
    %c0_7 = arith.constant 0 : index
    %c0_8 = arith.constant 0 : index
    %18 = vector.load %arg8[%c0_6, %c0_7, %c0_8] : memref<2x256x128xbf16, #tpu.memory_space<vmem>>, vector<2x256x128xbf16>
    "tpu.trace_start"() <{level = 10 : i32, message = "hsk,hkd->hsd"}> : () -> ()
    %cst_9 = arith.constant dense<0.000000e+00> : vector<2x8x128xf32>
    %19 = tpu.matmul %17, %18, %cst_9 {dimension_numbers = #tpu.dot_dimension_numbers<[2], [1], [1], [2], [0, 0, 0, 1, 1, 2], [0], [0]>} : vector<2x8x256xbf16>, vector<2x256x128xbf16>, vector<2x8x128xf32> -> vector<2x8x128xf32>
    "tpu.trace_stop"() : () -> ()
    %c0_10 = arith.constant 0 : index
    %c0_11 = arith.constant 0 : index
    %c0_12 = arith.constant 0 : index
    %20 = vector.load %arg9[%c0_10, %c0_11, %c0_12] : memref<2x256x128xbf16, #tpu.memory_space<vmem>>, vector<2x256x128xbf16>
    "tpu.trace_start"() <{level = 10 : i32, message = "hsk,hkd->hsd"}> : () -> ()
    %cst_13 = arith.constant dense<0.000000e+00> : vector<2x8x128xf32>
    %21 = tpu.matmul %17, %20, %cst_13 {dimension_numbers = #tpu.dot_dimension_numbers<[2], [1], [1], [2], [0, 0, 0, 1, 1, 2], [0], [0]>} : vector<2x8x256xbf16>, vector<2x256x128xbf16>, vector<2x8x128xf32> -> vector<2x8x128xf32>
    "tpu.trace_stop"() : () -> ()
    %c0_14 = arith.constant 0 : index
    %c0_15 = arith.constant 0 : index
    %c0_16 = arith.constant 0 : index
    %22 = vector.load %arg10[%c0_14, %c0_15, %c0_16] : memref<2x256x128xbf16, #tpu.memory_space<vmem>>, vector<2x256x128xbf16>
    "tpu.trace_start"() <{level = 10 : i32, message = "hsk,hkd->hsd"}> : () -> ()
    %cst_17 = arith.constant dense<0.000000e+00> : vector<2x8x128xf32>
    %23 = tpu.matmul %17, %22, %cst_17 {dimension_numbers = #tpu.dot_dimension_numbers<[2], [1], [1], [2], [0, 0, 0, 1, 1, 2], [0], [0]>} : vector<2x8x256xbf16>, vector<2x256x128xbf16>, vector<2x8x128xf32> -> vector<2x8x128xf32>
    "tpu.trace_stop"() : () -> ()
    %c0_18 = arith.constant 0 : index
    %c0_19 = arith.constant 0 : index
    %c0_20 = arith.constant 0 : index
    %24 = vector.load %arg2[%c0_18, %c0_19, %c0_20] : memref<1x8x128xf32, #tpu.memory_space<vmem>>, vector<1x8x128xf32>
    %25 = vector.shape_cast %24 : vector<1x8x128xf32> to vector<8x128xf32>
    %26 = vector.shape_cast %25 : vector<8x128xf32> to vector<1x8x128xf32>
    %c0_21 = arith.constant 0 : index
    %c0_22 = arith.constant 0 : index
    %c0_23 = arith.constant 0 : index
    %27 = vector.load %arg3[%c0_21, %c0_22, %c0_23] : memref<1x8x128xf32, #tpu.memory_space<vmem>>, vector<1x8x128xf32>
    %28 = vector.shape_cast %27 : vector<1x8x128xf32> to vector<8x128xf32>
    %29 = vector.shape_cast %28 : vector<8x128xf32> to vector<1x8x128xf32>
    %30 = vector.broadcast %26 : vector<1x8x128xf32> to vector<2x8x128xf32>
    %31 = arith.mulf %19, %30 : vector<2x8x128xf32>
    %c64_i32 = arith.constant 64 : i32
    %32 = tpu.dynamic_rotate %19 by %c64_i32 dim 2 : vector<2x8x128xf32>, i32 -> vector<2x8x128xf32>
    %33 = vector.broadcast %29 : vector<1x8x128xf32> to vector<2x8x128xf32>
    %34 = arith.mulf %32, %33 : vector<2x8x128xf32>
    %35 = arith.addf %31, %34 : vector<2x8x128xf32>
    %cst_24 = arith.constant 0.0883883461 : f32
    %36 = vector.broadcast %cst_24 : f32 to vector<2x8x128xf32>
    %37 = arith.mulf %35, %36 : vector<2x8x128xf32>
    %38 = vector.broadcast %26 : vector<1x8x128xf32> to vector<2x8x128xf32>
    %39 = arith.mulf %21, %38 : vector<2x8x128xf32>
    %c64_i32_25 = arith.constant 64 : i32
    %40 = tpu.dynamic_rotate %21 by %c64_i32_25 dim 2 : vector<2x8x128xf32>, i32 -> vector<2x8x128xf32>
    %41 = vector.broadcast %29 : vector<1x8x128xf32> to vector<2x8x128xf32>
    %42 = arith.mulf %40, %41 : vector<2x8x128xf32>
    %43 = arith.addf %39, %42 : vector<2x8x128xf32>
    %c0_26 = arith.constant 0 : index
    %c0_27 = arith.constant 0 : index
    %c0_28 = arith.constant 0 : index
    %c0_29 = arith.constant 0 : index
    %44 = vector.load %arg18[%c0_26, %c0_27, %c0_28, %c0_29] : memref<1x2x8x128xf32, #tpu.memory_space<vmem>>, vector<1x2x8x128xf32>
    %45 = vector.shape_cast %44 : vector<1x2x8x128xf32> to vector<2x8x128xf32>
    %46 = vector.shape_cast %43 : vector<2x8x128xf32> to vector<1x2x8x128xf32>
    tpu.vector_store %arg18[%c0_26, %c0_27, %c0_28, %c0_29], %46 {strides = array<i32>} : memref<1x2x8x128xf32, #tpu.memory_space<vmem>>, vector<1x2x8x128xf32>,
    %c0_30 = arith.constant 0 : index
    %c0_31 = arith.constant 0 : index
    %c0_32 = arith.constant 0 : index
    %c0_33 = arith.constant 0 : index
    %47 = vector.load %arg19[%c0_30, %c0_31, %c0_32, %c0_33] : memref<1x2x8x128xf32, #tpu.memory_space<vmem>>, vector<1x2x8x128xf32>
    %48 = vector.shape_cast %47 : vector<1x2x8x128xf32> to vector<2x8x128xf32>
    %49 = vector.shape_cast %23 : vector<2x8x128xf32> to vector<1x2x8x128xf32>
    tpu.vector_store %arg19[%c0_30, %c0_31, %c0_32, %c0_33], %49 {strides = array<i32>} : memref<1x2x8x128xf32, #tpu.memory_space<vmem>>, vector<1x2x8x128xf32>,
    %50 = arith.truncf %37 : vector<2x8x128xf32> to vector<2x8x128xbf16>
    %51 = arith.truncf %43 : vector<2x8x128xf32> to vector<2x8x128xbf16>
    %52 = arith.truncf %23 : vector<2x8x128xf32> to vector<2x8x128xbf16>
    %c0_34 = arith.constant 0 : index
    %c0_35 = arith.constant 0 : index
    %c0_36 = arith.constant 0 : index
    %c0_37 = arith.constant 0 : index
    %53 = vector.load %arg6[%c0_34, %c0_35, %c0_36, %c0_37] : memref<1x2x16x128xf32, #tpu.memory_space<vmem>>, vector<1x2x16x128xf32>
    %54 = vector.shape_cast %53 : vector<1x2x16x128xf32> to vector<2x16x128xf32>
    %55 = arith.truncf %54 : vector<2x16x128xf32> to vector<2x16x128xbf16>
    %c0_38 = arith.constant 0 : index
    %c0_39 = arith.constant 0 : index
    %c0_40 = arith.constant 0 : index
    %c0_41 = arith.constant 0 : index
    %56 = vector.load %arg7[%c0_38, %c0_39, %c0_40, %c0_41] : memref<1x2x16x128xf32, #tpu.memory_space<vmem>>, vector<1x2x16x128xf32>
    %57 = vector.shape_cast %56 : vector<1x2x16x128xf32> to vector<2x16x128xf32>
    %58 = arith.truncf %57 : vector<2x16x128xf32> to vector<2x16x128xbf16>
    "tpu.trace_start"() <{level = 10 : i32, message = "hsd,htd->hst"}> : () -> ()
    %cst_42 = arith.constant dense<0.000000e+00> : vector<2x8x16xf32>
    %59 = tpu.matmul %50, %55, %cst_42 {dimension_numbers = #tpu.dot_dimension_numbers<[2], [2], [1], [1], [0, 0, 0, 1, 1, 1], [0], [0]>} : vector<2x8x128xbf16>, vector<2x16x128xbf16>, vector<2x8x16xf32> -> vector<2x8x16xf32>
    %cst_43 = arith.constant dense<0.000000e+00> : vector<2x8x8xf32>
    %60 = tpu.matmul %50, %51, %cst_43 {dimension_numbers = #tpu.dot_dimension_numbers<[2], [2], [1], [1], [0, 0, 0, 1, 1, 1], [0], [0]>} : vector<2x8x128xbf16>, vector<2x8x128xbf16>, vector<2x8x8xf32> -> vector<2x8x8xf32>
    "tpu.trace_stop"() : () -> ()
    %c0_44 = arith.constant 0 : index
    %c0_45 = arith.constant 0 : index
    %c0_46 = arith.constant 0 : index
    %61 = vector.load %arg4[%c0_44, %c0_45, %c0_46] : memref<1x8x16xf32, #tpu.memory_space<vmem>>, vector<1x8x16xf32>
    %62 = vector.shape_cast %61 : vector<1x8x16xf32> to vector<8x16xf32>
    %63 = vector.shape_cast %62 : vector<8x16xf32> to vector<1x8x16xf32>
    %64 = vector.broadcast %63 : vector<1x8x16xf32> to vector<2x8x16xf32>
    %65 = arith.addf %59, %64 : vector<2x8x16xf32>
    %c0_47 = arith.constant 0 : index
    %c0_48 = arith.constant 0 : index
    %c0_49 = arith.constant 0 : index
    %66 = vector.load %arg5[%c0_47, %c0_48, %c0_49] : memref<1x8x8xf32, #tpu.memory_space<vmem>>, vector<1x8x8xf32>
    %67 = vector.shape_cast %66 : vector<1x8x8xf32> to vector<8x8xf32>
    %68 = vector.shape_cast %67 : vector<8x8xf32> to vector<1x8x8xf32>
    %69 = vector.broadcast %68 : vector<1x8x8xf32> to vector<2x8x8xf32>
    %70 = arith.addf %60, %69 : vector<2x8x8xf32>
    %cst_50 = arith.constant dense<0xFF800000> : vector<2x8xf32>
    %71 = vector.multi_reduction <maximumf>, %65, %cst_50 [2] : vector<2x8x16xf32> to vector<2x8xf32>
    %72 = vector.shape_cast %71 : vector<2x8xf32> to vector<2x8x1xf32>
    %cst_51 = arith.constant dense<0xFF800000> : vector<2x8xf32>
    %73 = vector.multi_reduction <maximumf>, %70, %cst_51 [2] : vector<2x8x8xf32> to vector<2x8xf32>
    %74 = vector.shape_cast %73 : vector<2x8xf32> to vector<2x8x1xf32>
    %75 = arith.maximumf %72, %74 : vector<2x8x1xf32>
    %76 = vector.broadcast %75 : vector<2x8x1xf32> to vector<2x8x16xf32>
    %77 = arith.subf %65, %76 : vector<2x8x16xf32>
    %78 = math.exp %77 : vector<2x8x16xf32>
    %79 = vector.broadcast %75 : vector<2x8x1xf32> to vector<2x8x8xf32>
    %80 = arith.subf %70, %79 : vector<2x8x8xf32>
    %81 = math.exp %80 : vector<2x8x8xf32>
    %cst_52 = arith.constant dense<0.000000e+00> : vector<2x8xf32>
    %82 = vector.multi_reduction <add>, %78, %cst_52 [2] : vector<2x8x16xf32> to vector<2x8xf32>
    %83 = vector.shape_cast %82 : vector<2x8xf32> to vector<2x8x1xf32>
    %cst_53 = arith.constant dense<0.000000e+00> : vector<2x8xf32>
    %84 = vector.multi_reduction <add>, %81, %cst_53 [2] : vector<2x8x8xf32> to vector<2x8xf32>
    %85 = vector.shape_cast %84 : vector<2x8xf32> to vector<2x8x1xf32>
    %86 = arith.addf %83, %85 : vector<2x8x1xf32>
    %87 = tpu.reciprocal %86 {approx = true} : vector<2x8x1xf32> -> vector<2x8x1xf32>
    %88 = arith.truncf %78 : vector<2x8x16xf32> to vector<2x8x16xbf16>
    "tpu.trace_start"() <{level = 10 : i32, message = "hst,htd->hsd"}> : () -> ()
    %cst_54 = arith.constant dense<0.000000e+00> : vector<2x8x128xf32>
    %89 = tpu.matmul %88, %58, %cst_54 {dimension_numbers = #tpu.dot_dimension_numbers<[2], [1], [1], [2], [0, 0, 0, 1, 1, 2], [0], [0]>} : vector<2x8x16xbf16>, vector<2x16x128xbf16>, vector<2x8x128xf32> -> vector<2x8x128xf32>
    "tpu.trace_stop"() : () -> ()
    %90 = arith.truncf %81 : vector<2x8x8xf32> to vector<2x8x8xbf16>
    "tpu.trace_start"() <{level = 10 : i32, message = "hst,htd->hsd"}> : () -> ()
    %cst_55 = arith.constant dense<0.000000e+00> : vector<2x8x128xf32>
    %91 = tpu.matmul %90, %52, %cst_55 {dimension_numbers = #tpu.dot_dimension_numbers<[2], [1], [1], [2], [0, 0, 0, 1, 1, 2], [0], [0]>} : vector<2x8x8xbf16>, vector<2x8x128xbf16>, vector<2x8x128xf32> -> vector<2x8x128xf32>
    "tpu.trace_stop"() : () -> ()
    %92 = arith.addf %89, %91 : vector<2x8x128xf32>
    %93 = vector.broadcast %87 : vector<2x8x1xf32> to vector<2x8x128xf32>
    %94 = arith.mulf %92, %93 : vector<2x8x128xf32>
    %95 = arith.truncf %94 : vector<2x8x128xf32> to vector<2x8x128xbf16>
    %c0_56 = arith.constant 0 : index
    %c0_57 = arith.constant 0 : index
    %c0_58 = arith.constant 0 : index
    %96 = vector.load %arg11[%c0_56, %c0_57, %c0_58] : memref<2x128x256xbf16, #tpu.memory_space<vmem>>, vector<2x128x256xbf16>
    "tpu.trace_start"() <{level = 10 : i32, message = "hsd,hdk->hsk"}> : () -> ()
    %cst_59 = arith.constant dense<0.000000e+00> : vector<2x8x256xf32>
    %97 = tpu.matmul %95, %96, %cst_59 {dimension_numbers = #tpu.dot_dimension_numbers<[2], [1], [1], [2], [0, 0, 0, 1, 1, 2], [0], [0]>} : vector<2x8x128xbf16>, vector<2x128x256xbf16>, vector<2x8x256xf32> -> vector<2x8x256xf32>
    "tpu.trace_stop"() : () -> ()
    %cst_60 = arith.constant dense<0.000000e+00> : vector<8x256xf32>
    %98 = vector.multi_reduction <add>, %97, %cst_60 [0] : vector<2x8x256xf32> to vector<8x256xf32>
    %99 = arith.addf %1, %98 : vector<8x256xf32>
    %100 = arith.mulf %99, %99 : vector<8x256xf32>
    %cst_61 = arith.constant dense<0.000000e+00> : vector<8xf32>
    %101 = vector.multi_reduction <add>, %100, %cst_61 [1] : vector<8x256xf32> to vector<8xf32>
    %102 = vector.shape_cast %101 : vector<8xf32> to vector<8x1xf32>
    %cst_62 = arith.constant 2.560000e+02 : f32
    %103 = vector.broadcast %cst_62 : f32 to vector<8x1xf32>
    %104 = arith.divf %102, %103 : vector<8x1xf32>
    %cst_63 = arith.constant 9.99999974E-6 : f32
    %105 = vector.broadcast %cst_63 : f32 to vector<8x1xf32>
    %106 = arith.addf %104, %105 : vector<8x1xf32>
    %107 = math.rsqrt %106 : vector<8x1xf32>
    %108 = vector.broadcast %107 : vector<8x1xf32> to vector<8x256xf32>
    %109 = arith.mulf %99, %108 : vector<8x256xf32>
    %c0_64 = arith.constant 0 : index
    %c0_65 = arith.constant 0 : index
    %110 = vector.load %arg16[%c0_64, %c0_65] : memref<1x256xf32, #tpu.memory_space<vmem>>, vector<1x256xf32>
    %111 = vector.broadcast %110 : vector<1x256xf32> to vector<8x256xf32>
    %112 = arith.mulf %109, %111 : vector<8x256xf32>
    %113 = arith.truncf %112 : vector<8x256xf32> to vector<8x256xbf16>
    %c0_66 = arith.constant 0 : index
    %c0_67 = arith.constant 0 : index
    %114 = vector.load %arg12[%c0_66, %c0_67] : memref<256x512xbf16, #tpu.memory_space<vmem>>, vector<256x512xbf16>
    %cst_68 = arith.constant dense<0.000000e+00> : vector<8x512xf32>
    %115 = tpu.matmul %113, %114, %cst_68 {dimension_numbers = #tpu.dot_dimension_numbers<[1], [0], [0], [1], [0, 0, 1, 1], [], []>} : vector<8x256xbf16>, vector<256x512xbf16>, vector<8x512xf32> -> vector<8x512xf32>
    %c0_69 = arith.constant 0 : index
    %c0_70 = arith.constant 0 : index
    %116 = vector.load %arg13[%c0_69, %c0_70] : memref<256x512xbf16, #tpu.memory_space<vmem>>, vector<256x512xbf16>
    %cst_71 = arith.constant dense<0.000000e+00> : vector<8x512xf32>
    %117 = tpu.matmul %113, %116, %cst_71 {dimension_numbers = #tpu.dot_dimension_numbers<[1], [0], [0], [1], [0, 0, 1, 1], [], []>} : vector<8x256xbf16>, vector<256x512xbf16>, vector<8x512xf32> -> vector<8x512xf32>
    %118 = arith.negf %115 : vector<8x512xf32>
    %119 = math.exp %118 : vector<8x512xf32>
    %cst_72 = arith.constant 1.000000e+00 : f32
    %120 = vector.broadcast %cst_72 : f32 to vector<8x512xf32>
    %121 = arith.addf %120, %119 : vector<8x512xf32>
    %122 = arith.divf %120, %121 : vector<8x512xf32>
    %123 = arith.mulf %115, %122 : vector<8x512xf32>
    %124 = arith.mulf %123, %117 : vector<8x512xf32>
    %125 = arith.truncf %124 : vector<8x512xf32> to vector<8x512xbf16>
    %c0_73 = arith.constant 0 : index
    %c0_74 = arith.constant 0 : index
    %126 = vector.load %arg14[%c0_73, %c0_74] : memref<512x256xbf16, #tpu.memory_space<vmem>>, vector<512x256xbf16>
    %cst_75 = arith.constant dense<0.000000e+00> : vector<8x256xf32>
    %127 = tpu.matmul %125, %126, %cst_75 {dimension_numbers = #tpu.dot_dimension_numbers<[1], [0], [0], [1], [0, 0, 1, 1], [], []>} : vector<8x512xbf16>, vector<512x256xbf16>, vector<8x256xf32> -> vector<8x256xf32>
    %128 = arith.addf %99, %127 : vector<8x256xf32>
    %c0_76 = arith.constant 0 : index
    %c0_77 = arith.constant 0 : index
    %c0_78 = arith.constant 0 : index
    %129 = vector.load %arg17[%c0_76, %c0_77, %c0_78] : memref<1x8x256xf32, #tpu.memory_space<vmem>>, vector<1x8x256xf32>
    %130 = vector.shape_cast %129 : vector<1x8x256xf32> to vector<8x256xf32>
    %131 = vector.shape_cast %128 : vector<8x256xf32> to vector<1x8x256xf32>
    tpu.vector_store %arg17[%c0_76, %c0_77, %c0_78], %131 {strides = array<i32>} : memref<1x8x256xf32, #tpu.memory_space<vmem>>, vector<1x8x256xf32>,
    return
  }
  func.func @transform_0(%arg0: i32) -> (i32, i32, i32) {
    %c0_i32 = arith.constant 0 : i32
    %c0_i32_0 = arith.constant 0 : i32
    %c0_i32_1 = arith.constant 0 : i32
    return %arg0, %c0_i32, %c0_i32_0 : i32, i32, i32
  }
  func.func @transform_1(%arg0: i32) -> (i32, i32, i32) {
    %c0_i32 = arith.constant 0 : i32
    %c0_i32_0 = arith.constant 0 : i32
    %c0_i32_1 = arith.constant 0 : i32
    return %arg0, %c0_i32, %c0_i32_0 : i32, i32, i32
  }
  func.func @transform_2(%arg0: i32) -> (i32, i32, i32) {
    %c0_i32 = arith.constant 0 : i32
    %c0_i32_0 = arith.constant 0 : i32
    %c0_i32_1 = arith.constant 0 : i32
    return %arg0, %c0_i32, %c0_i32_0 : i32, i32, i32
  }
  func.func @transform_3(%arg0: i32) -> (i32, i32, i32) {
    %c0_i32 = arith.constant 0 : i32
    %c0_i32_0 = arith.constant 0 : i32
    %c0_i32_1 = arith.constant 0 : i32
    return %arg0, %c0_i32, %c0_i32_0 : i32, i32, i32
  }
  func.func @transform_4(%arg0: i32) -> (i32, i32, i32) {
    %c0_i32 = arith.constant 0 : i32
    %c0_i32_0 = arith.constant 0 : i32
    %c0_i32_1 = arith.constant 0 : i32
    return %arg0, %c0_i32, %c0_i32_0 : i32, i32, i32
  }
  func.func @transform_5(%arg0: i32) -> (i32, i32, i32, i32) {
    %c0_i32 = arith.constant 0 : i32
    %c0_i32_0 = arith.constant 0 : i32
    %c0_i32_1 = arith.constant 0 : i32
    %c0_i32_2 = arith.constant 0 : i32
    return %arg0, %c0_i32, %c0_i32_0, %c0_i32_1 : i32, i32, i32, i32
  }
  func.func @transform_6(%arg0: i32) -> (i32, i32, i32, i32) {
    %c0_i32 = arith.constant 0 : i32
    %c0_i32_0 = arith.constant 0 : i32
    %c0_i32_1 = arith.constant 0 : i32
    %c0_i32_2 = arith.constant 0 : i32
    return %arg0, %c0_i32, %c0_i32_0, %c0_i32_1 : i32, i32, i32, i32
  }
  func.func @transform_7(%arg0: i32) -> (i32, i32, i32) {
    %c0_i32 = arith.constant 0 : i32
    %c0_i32_0 = arith.constant 0 : i32
    %c0_i32_1 = arith.constant 0 : i32
    %c0_i32_2 = arith.constant 0 : i32
    return %c0_i32, %c0_i32_0, %c0_i32_1 : i32, i32, i32
  }
  func.func @transform_8(%arg0: i32) -> (i32, i32, i32) {
    %c0_i32 = arith.constant 0 : i32
    %c0_i32_0 = arith.constant 0 : i32
    %c0_i32_1 = arith.constant 0 : i32
    %c0_i32_2 = arith.constant 0 : i32
    return %c0_i32, %c0_i32_0, %c0_i32_1 : i32, i32, i32
  }
  func.func @transform_9(%arg0: i32) -> (i32, i32, i32) {
    %c0_i32 = arith.constant 0 : i32
    %c0_i32_0 = arith.constant 0 : i32
    %c0_i32_1 = arith.constant 0 : i32
    %c0_i32_2 = arith.constant 0 : i32
    return %c0_i32, %c0_i32_0, %c0_i32_1 : i32, i32, i32
  }
  func.func @transform_10(%arg0: i32) -> (i32, i32, i32) {
    %c0_i32 = arith.constant 0 : i32
    %c0_i32_0 = arith.constant 0 : i32
    %c0_i32_1 = arith.constant 0 : i32
    %c0_i32_2 = arith.constant 0 : i32
    return %c0_i32, %c0_i32_0, %c0_i32_1 : i32, i32, i32
  }
  func.func @transform_11(%arg0: i32) -> (i32, i32) {
    %c0_i32 = arith.constant 0 : i32
    %c0_i32_0 = arith.constant 0 : i32
    %c0_i32_1 = arith.constant 0 : i32
    return %c0_i32, %c0_i32_0 : i32, i32
  }
  func.func @transform_12(%arg0: i32) -> (i32, i32) {
    %c0_i32 = arith.constant 0 : i32
    %c0_i32_0 = arith.constant 0 : i32
    %c0_i32_1 = arith.constant 0 : i32
    return %c0_i32, %c0_i32_0 : i32, i32
  }
  func.func @transform_13(%arg0: i32) -> (i32, i32) {
    %c0_i32 = arith.constant 0 : i32
    %c0_i32_0 = arith.constant 0 : i32
    %c0_i32_1 = arith.constant 0 : i32
    return %c0_i32, %c0_i32_0 : i32, i32
  }
  func.func @transform_14(%arg0: i32) -> (i32, i32) {
    %c0_i32 = arith.constant 0 : i32
    %c0_i32_0 = arith.constant 0 : i32
    %c0_i32_1 = arith.constant 0 : i32
    return %c0_i32, %c0_i32_0 : i32, i32
  }
  func.func @transform_15(%arg0: i32) -> (i32, i32) {
    %c0_i32 = arith.constant 0 : i32
    %c0_i32_0 = arith.constant 0 : i32
    %c0_i32_1 = arith.constant 0 : i32
    return %c0_i32, %c0_i32_0 : i32, i32
  }
  func.func @transform_16(%arg0: i32) -> (i32, i32, i32) {
    %c0_i32 = arith.constant 0 : i32
    %c0_i32_0 = arith.constant 0 : i32
    %c0_i32_1 = arith.constant 0 : i32
    return %arg0, %c0_i32, %c0_i32_0 : i32, i32, i32
  }
  func.func @transform_17(%arg0: i32) -> (i32, i32, i32, i32) {
    %c0_i32 = arith.constant 0 : i32
    %c2_i32 = arith.constant 2 : i32
    %c0_i32_0 = arith.constant 0 : i32
    %c0_i32_1 = arith.constant 0 : i32
    return %arg0, %c0_i32, %c2_i32, %c0_i32_0 : i32, i32, i32, i32
  }
  func.func @transform_18(%arg0: i32) -> (i32, i32, i32, i32) {
    %c0_i32 = arith.constant 0 : i32
    %c2_i32 = arith.constant 2 : i32
    %c0_i32_0 = arith.constant 0 : i32
    %c0_i32_1 = arith.constant 0 : i32
    return %arg0, %c0_i32, %c2_i32, %c0_i32_0 : i32, i32, i32, i32
  }
}

</mosaic_0001>

<llo_original>
// kernel: tpu_custom_call.1
$region0: #{tpu_custom_call.1}
  #allocation0 [shape = 'u32[]', space=smem, size = 0x4, offset = 0x4, fixed_abs, tag = 'smem constant byte address 0x4 - core index']
  #allocation1 [shape = 'u32[72,128]{1,0:T(1,128)}', space=vmem, size = 0x9000, scoped, tag = 'internal scratch']
  #allocation29 [shape = 's32[]', space=sflag, size = 0x4, offset = 0, fixed_abs, tag = 'sflag constant byte address 0x0 - dummy sync flag']
  #allocation31 [shape = 's32[]', space=sflag, size = 0x4, offset = 0, fixed_abs, tag = 'sflag constant byte address 0x0 - dummy sync flag']
  %s0 = inlined_call_operand.vmem [shape: f32[2,8,256], index: 0, kind: input, shape index: {}]
  %s1 = inlined_call_operand.hbm [shape: f32[2,8,128], index: 1, kind: input, shape index: {}]
  %s2 = inlined_call_operand.hbm [shape: f32[2,8,128], index: 2, kind: input, shape index: {}]
  %s3 = inlined_call_operand.hbm [shape: f32[2,8,16], index: 3, kind: input, shape index: {}]
  %s4 = inlined_call_operand.hbm [shape: f32[2,8,8], index: 4, kind: input, shape index: {}]
  %s5 = inlined_call_operand.hbm [shape: f32[2,2,24,128], index: 5, kind: input, shape index: {}, may-alias: {5,17}]
  %s6 = inlined_call_operand.hbm [shape: f32[2,2,24,128], index: 6, kind: input, shape index: {}, may-alias: {6,18}]
  %s7 = inlined_call_operand.vmem [shape: bf16[2,256,128], index: 7, kind: input, shape index: {}]
  %s8 = inlined_call_operand.hbm [shape: bf16[2,256,128], index: 8, kind: input, shape index: {}]
  %s9 = inlined_call_operand.hbm [shape: bf16[2,256,128], index: 9, kind: input, shape index: {}]
  %s10 = inlined_call_operand.hbm [shape: bf16[2,128,256], index: 10, kind: input, shape index: {}]
  %s11 = inlined_call_operand.hbm [shape: bf16[256,512], index: 11, kind: input, shape index: {}]
  %s12 = inlined_call_operand.hbm [shape: bf16[256,512], index: 12, kind: input, shape index: {}]
  %s13 = inlined_call_operand.hbm [shape: bf16[512,256], index: 13, kind: input, shape index: {}]
  %s14 = inlined_call_operand.hbm [shape: f32[1,256], index: 14, kind: input, shape index: {}]
  %s15 = inlined_call_operand.hbm [shape: f32[1,256], index: 15, kind: input, shape index: {}]
  %s16 = inlined_call_operand.hbm [shape: f32[2,8,256], index: 16, kind: output, shape index: {0}]
  %s17 = inlined_call_operand.hbm [shape: f32[2,2,24,128], index: 17, kind: output, shape index: {1}, may-alias: {5,17}]
  %s18 = inlined_call_operand.hbm [shape: f32[2,2,24,128], index: 18, kind: output, shape index: {2}, may-alias: {6,18}]
  %19 = xla_tuple %s16, %s17, %s18
  %s20 = sld [smem:[#allocation0]]
  $region169: #{tpu_custom_call.1} parent=0
    _
  %s22 = ssub.s32 1, %s20
  %s23 = scalar_select 0, %s22, %s20
  $region1: #{tpu_custom_call.1} parent=0
    #allocation2 [shape = 'u8[8192]{0}', space=vmem, size = 0x2000, scoped, tag = 'input window, operand 1']
    #allocation3 [shape = 's32[2]{0}', space=sflag, size = 0x8, scoped, tag = 'scoped memory for tpu_custom_call.1']
    #allocation4 [shape = 's32[2]{0}', space=sflag, size = 0x8, scoped, tag = 'scoped memory for tpu_custom_call.1']
    #allocation5 [shape = 'u8[8192]{0}', space=vmem, size = 0x2000, scoped, tag = 'input window, operand 2']
    #allocation6 [shape = 's32[2]{0}', space=sflag, size = 0x8, scoped, tag = 'scoped memory for tpu_custom_call.1']
    #allocation7 [shape = 'u8[8192]{0}', space=vmem, size = 0x2000, scoped, tag = 'input window, operand 3']
    #allocation8 [shape = 'u8[8192]{0}', space=vmem, size = 0x2000, scoped, tag = 'input window, operand 4']
    #allocation9 [shape = 's32[2]{0}', space=sflag, size = 0x8, scoped, tag = 'scoped memory for tpu_custom_call.1']
    #allocation10 [shape = 'u8[32768]{0}', space=vmem, size = 0x8000, scoped, tag = 'input window, operand 5']
    #allocation11 [shape = 'u8[32768]{0}', space=vmem, size = 0x8000, scoped, tag = 'input window, operand 6']
    #allocation12 [shape = 's32[2]{0}', space=sflag, size = 0x8, scoped, tag = 'scoped memory for tpu_custom_call.1']
    #allocation13 [shape = 'u8[131072]{0}', space=vmem, size = 0x20000, scoped, tag = 'input window, operand 8, single buffered']
    #allocation14 [shape = 'u8[131072]{0}', space=vmem, size = 0x20000, scoped, tag = 'input window, operand 9, single buffered']
    #allocation15 [shape = 's32[1]{0}', space=sflag, size = 0x4, scoped, tag = 'scoped memory for tpu_custom_call.1']
    #allocation16 [shape = 'u8[131072]{0}', space=vmem, size = 0x20000, scoped, tag = 'input window, operand 10, single buffered']
    #allocation17 [shape = 'u8[262144]{0}', space=vmem, size = 0x40000, scoped, tag = 'input window, operand 11, single buffered']
    #allocation18 [shape = 's32[1]{0}', space=sflag, size = 0x4, scoped, tag = 'scoped memory for tpu_custom_call.1']
    #allocation19 [shape = 'u8[262144]{0}', space=vmem, size = 0x40000, scoped, tag = 'input window, operand 12, single buffered']
    #allocation20 [shape = 'u8[262144]{0}', space=vmem, size = 0x40000, scoped, tag = 'input window, operand 13, single buffered']
    #allocation21 [shape = 's32[1]{0}', space=sflag, size = 0x4, scoped, tag = 'scoped memory for tpu_custom_call.1']
    #allocation22 [shape = 'u8[1024]{0}', space=vmem, size = 0x400, scoped, tag = 'input window, operand 14, single buffered']
    #allocation23 [shape = 'u8[1024]{0}', space=vmem, size = 0x400, scoped, tag = 'input window, operand 15, single buffered']
    #allocation24 [shape = 's32[1]{0}', space=sflag, size = 0x4, scoped, tag = 'scoped memory for tpu_custom_call.1']
    #allocation25 [shape = 'u8[16384]{0}', space=vmem, size = 0x4000, scoped, tag = 'output window, operand 0']
    #allocation26 [shape = 'u8[16384]{0}', space=vmem, size = 0x4000, scoped, tag = 'output window, operand 1']
    #allocation27 [shape = 's32[2]{0}', space=sflag, size = 0x8, scoped, tag = 'scoped memory for tpu_custom_call.1']
    #allocation28 [shape = 'u8[16384]{0}', space=vmem, size = 0x4000, scoped, tag = 'output window, operand 2']
    %24 = vsyncpa [#allocation3], 0
    %s25 = scalar_lea.sflag [#allocation3], 1
    %26 = vsyncpa %s25, 0
    %27 = vsyncpa [#allocation6], 0
    %s28 = scalar_lea.sflag [#allocation6], 1
    %29 = vsyncpa %s28, 0
    %30 = vsyncpa [#allocation9], 0
    %s31 = scalar_lea.sflag [#allocation9], 1
    %32 = vsyncpa %s31, 0
    %33 = vsyncpa [#allocation12], 0
    %s34 = scalar_lea.sflag [#allocation12], 1
    %35 = vsyncpa %s34, 0
    %36 = vsyncpa [#allocation15], 0
    %37 = vsyncpa [#allocation18], 0
    %38 = vsyncpa [#allocation21], 0
    %39 = vsyncpa [#allocation24], 0
    %40 = vsyncpa [#allocation4], 0
    %s41 = scalar_lea.sflag [#allocation4], 1
    %42 = vsyncpa %s41, 0
    %43 = vsyncpa [#allocation27], 0
    %s44 = scalar_lea.sflag [#allocation27], 1
    %45 = vsyncpa %s44, 0
    loop: start=0, step=1, limit=4
    $region2: #{tpu_custom_call.1} parent=1 // loop_pre_header
      _
    $region3: #{tpu_custom_call.1} parent=1 // loop_header
      %s47 = sphi 0, %s51
      %p48 = scmp.ge.s32.totalorder %s47, 4
      %s57 = sphi 0, %s59
      %s60 = sphi 0, %s57
      %s61 = sphi 0, %s60
      %s77 = sphi 0, %s61
      %s83 = sphi 0, %s85
      %s86 = sphi 0, %s83
      %s87 = sphi 0, %s86
      %s103 = sphi 0, %s87
      %s109 = sphi 0, %s111
      %s112 = sphi 0, %s109
      %s113 = sphi 0, %s112
      %s129 = sphi 0, %s113
      %s135 = sphi 0, %s137
      %s138 = sphi 0, %s135
      %s139 = sphi 0, %s138
      %s155 = sphi 0, %s139
      %s161 = sphi 0, %s163
      %s164 = sphi 0, %s161
      %s165 = sphi 0, %s164
      %s181 = sphi 0, %s165
      %s187 = sphi 0, %s189
      %s190 = sphi 0, %s187
      %s191 = sphi 0, %s190
      %s207 = sphi 0, %s191
      %s213 = sphi 0, %s215
      %s216 = sphi 0, %s213
      %s217 = sphi 0, %s216
      %s233 = sphi 0, %s217
      %s237 = sphi 0, %s237
      %s239 = sphi 0, %s237
      %s240 = sphi 0, %s239
      %s254 = sphi 0, %s240
      %s258 = sphi 0, %s258
      %s260 = sphi 0, %s258
      %s261 = sphi 0, %s260
      %s275 = sphi 0, %s261
      %s279 = sphi 0, %s279
      %s281 = sphi 0, %s279
      %s282 = sphi 0, %s281
      %s296 = sphi 0, %s282
      %s300 = sphi 0, %s300
      %s302 = sphi 0, %s300
      %s303 = sphi 0, %s302
      %s317 = sphi 0, %s303
      %s321 = sphi 0, %s321
      %s323 = sphi 0, %s321
      %s324 = sphi 0, %s323
      %s338 = sphi 0, %s324
      %s342 = sphi 0, %s342
      %s344 = sphi 0, %s342
      %s345 = sphi 0, %s344
      %s359 = sphi 0, %s345
      %s363 = sphi 0, %s363
      %s365 = sphi 0, %s363
      %s366 = sphi 0, %s365
      %s380 = sphi 0, %s366
      %s384 = sphi 0, %s384
      %s386 = sphi 0, %s384
      %s387 = sphi 0, %s386
      %s401 = sphi 0, %s387
      %s405 = sphi 0, %s405
      %s407 = sphi 0, %s405
      %s408 = sphi 0, %s407
      %s422 = sphi 0, %s408
      %s428 = sphi 0, %s430
      %s431 = sphi 0, %s428
      %s432 = sphi 0, %s431
      %s448 = sphi 0, %s432
      %s454 = sphi 0, %s456
      %s457 = sphi 0, %s454
      %s458 = sphi 0, %s457
      %s474 = sphi 0, %s458
      %s480 = sphi 0, %s482
      %s483 = sphi 0, %s480
      %s484 = sphi 0, %s483
      %s500 = sphi 0, %s484
    $region4: #{tpu_custom_call.1} parent=1 // loop_header_branch
      %50 = sbr.rel (%p48) target = $region8
    $region5: #{tpu_custom_call.1} parent=1 // loop_body
      %s52 = ssub.s32 %s47, 1
      %s53 = ssub.s32 %s47, 2
      %s54 = sadd.s32 %s47, 1
      %s55 = ssub.s32 %s47, %s54
      %p56 = scmp.eq.s32.totalorder %s55, 0
      %s58 = sadd.s32 %s57, 1
      %s59 = scalar_select %p56, %s57, %s58
      %p62 = pneg %p56
      %p63 = scmp.eq.s32.totalorder %s47, 1
      %p64 = por %p62, %p63
      %p65 = scmp.ne.s32.totalorder %s57, %s60
      %p66 = scmp.eq.s32.totalorder %s47, 0
      %p67 = por %p65, %p66
      %p68 = scmp.ne.s32.totalorder %s57, %s60
      %p69 = scmp.eq.s32.totalorder %s52, 1
      %p70 = por %p68, %p69
      %p71 = scmp.ne.s32.totalorder %s60, %s61
      %p72 = scmp.eq.s32.totalorder %s52, 0
      %p73 = por %p71, %p72
      %p74 = scmp.ne.s32.totalorder %s60, %s61
      %p75 = scmp.eq.s32.totalorder %s53, 1
      %p76 = por %p74, %p75
      %p78 = scmp.ne.s32.totalorder %s61, %s77
      %p79 = scmp.eq.s32.totalorder %s53, 0
      %p80 = por %p78, %p79
      %s81 = ssub.s32 %s47, %s54
      %p82 = scmp.eq.s32.totalorder %s81, 0
      %s84 = sadd.s32 %s83, 1
      %s85 = scalar_select %p82, %s83, %s84
      %p88 = pneg %p82
      %p89 = scmp.eq.s32.totalorder %s47, 1
      %p90 = por %p88, %p89
      %p91 = scmp.ne.s32.totalorder %s83, %s86
      %p92 = scmp.eq.s32.totalorder %s47, 0
      %p93 = por %p91, %p92
      %p94 = scmp.ne.s32.totalorder %s83, %s86
      %p95 = scmp.eq.s32.totalorder %s52, 1
      %p96 = por %p94, %p95
      %p97 = scmp.ne.s32.totalorder %s86, %s87
      %p98 = scmp.eq.s32.totalorder %s52, 0
      %p99 = por %p97, %p98
      %p100 = scmp.ne.s32.totalorder %s86, %s87
      %p101 = scmp.eq.s32.totalorder %s53, 1
      %p102 = por %p100, %p101
      %p104 = scmp.ne.s32.totalorder %s87, %s103
      %p105 = scmp.eq.s32.totalorder %s53, 0
      %p106 = por %p104, %p105
      %s107 = ssub.s32 %s47, %s54
      %p108 = scmp.eq.s32.totalorder %s107, 0
      %s110 = sadd.s32 %s109, 1
      %s111 = scalar_select %p108, %s109, %s110
      %p114 = pneg %p108
      %p115 = scmp.eq.s32.totalorder %s47, 1
      %p116 = por %p114, %p115
      %p117 = scmp.ne.s32.totalorder %s109, %s112
      %p118 = scmp.eq.s32.totalorder %s47, 0
      %p119 = por %p117, %p118
      %p120 = scmp.ne.s32.totalorder %s109, %s112
      %p121 = scmp.eq.s32.totalorder %s52, 1
      %p122 = por %p120, %p121
      %p123 = scmp.ne.s32.totalorder %s112, %s113
      %p124 = scmp.eq.s32.totalorder %s52, 0
      %p125 = por %p123, %p124
      %p126 = scmp.ne.s32.totalorder %s112, %s113
      %p127 = scmp.eq.s32.totalorder %s53, 1
      %p128 = por %p126, %p127
      %p130 = scmp.ne.s32.totalorder %s113, %s129
      %p131 = scmp.eq.s32.totalorder %s53, 0
      %p132 = por %p130, %p131
      %s133 = ssub.s32 %s47, %s54
      %p134 = scmp.eq.s32.totalorder %s133, 0
      %s136 = sadd.s32 %s135, 1
      %s137 = scalar_select %p134, %s135, %s136
      %p140 = pneg %p134
      %p141 = scmp.eq.s32.totalorder %s47, 1
      %p142 = por %p140, %p141
      %p143 = scmp.ne.s32.totalorder %s135, %s138
      %p144 = scmp.eq.s32.totalorder %s47, 0
      %p145 = por %p143, %p144
      %p146 = scmp.ne.s32.totalorder %s135, %s138
      %p147 = scmp.eq.s32.totalorder %s52, 1
      %p148 = por %p146, %p147
      %p149 = scmp.ne.s32.totalorder %s138, %s139
      %p150 = scmp.eq.s32.totalorder %s52, 0
      %p151 = por %p149, %p150
      %p152 = scmp.ne.s32.totalorder %s138, %s139
      %p153 = scmp.eq.s32.totalorder %s53, 1
      %p154 = por %p152, %p153
      %p156 = scmp.ne.s32.totalorder %s139, %s155
      %p157 = scmp.eq.s32.totalorder %s53, 0
      %p158 = por %p156, %p157
      %s159 = ssub.s32 %s47, %s54
      %p160 = scmp.eq.s32.totalorder %s159, 0
      %s162 = sadd.s32 %s161, 1
      %s163 = scalar_select %p160, %s161, %s162
      %p166 = pneg %p160
      %p167 = scmp.eq.s32.totalorder %s47, 1
      %p168 = por %p166, %p167
      %p169 = scmp.ne.s32.totalorder %s161, %s164
      %p170 = scmp.eq.s32.totalorder %s47, 0
      %p171 = por %p169, %p170
      %p172 = scmp.ne.s32.totalorder %s161, %s164
      %p173 = scmp.eq.s32.totalorder %s52, 1
      %p174 = por %p172, %p173
      %p175 = scmp.ne.s32.totalorder %s164, %s165
      %p176 = scmp.eq.s32.totalorder %s52, 0
      %p177 = por %p175, %p176
      %p178 = scmp.ne.s32.totalorder %s164, %s165
      %p179 = scmp.eq.s32.totalorder %s53, 1
      %p180 = por %p178, %p179
      %p182 = scmp.ne.s32.totalorder %s165, %s181
      %p183 = scmp.eq.s32.totalorder %s53, 0
      %p184 = por %p182, %p183
      %s185 = ssub.s32 %s47, %s54
      %p186 = scmp.eq.s32.totalorder %s185, 0
      %s188 = sadd.s32 %s187, 1
      %s189 = scalar_select %p186, %s187, %s188
      %p192 = pneg %p186
      %p193 = scmp.eq.s32.totalorder %s47, 1
      %p194 = por %p192, %p193
      %p195 = scmp.ne.s32.totalorder %s187, %s190
      %p196 = scmp.eq.s32.totalorder %s47, 0
      %p197 = por %p195, %p196
      %p198 = scmp.ne.s32.totalorder %s187, %s190
      %p199 = scmp.eq.s32.totalorder %s52, 1
      %p200 = por %p198, %p199
      %p201 = scmp.ne.s32.totalorder %s190, %s191
      %p202 = scmp.eq.s32.totalorder %s52, 0
      %p203 = por %p201, %p202
      %p204 = scmp.ne.s32.totalorder %s190, %s191
      %p205 = scmp.eq.s32.totalorder %s53, 1
      %p206 = por %p204, %p205
      %p208 = scmp.ne.s32.totalorder %s191, %s207
      %p209 = scmp.eq.s32.totalorder %s53, 0
      %p210 = por %p208, %p209
      %s211 = ssub.s32 %s47, %s54
      %p212 = scmp.eq.s32.totalorder %s211, 0
      %s214 = sadd.s32 %s213, 1
      %s215 = scalar_select %p212, %s213, %s214
      %p218 = pneg %p212
      %p219 = scmp.eq.s32.totalorder %s47, 1
      %p220 = por %p218, %p219
      %p221 = scmp.ne.s32.totalorder %s213, %s216
      %p222 = scmp.eq.s32.totalorder %s47, 0
      %p223 = por %p221, %p222
      %p224 = scmp.ne.s32.totalorder %s213, %s216
      %p225 = scmp.eq.s32.totalorder %s52, 1
      %p226 = por %p224, %p225
      %p227 = scmp.ne.s32.totalorder %s216, %s217
      %p228 = scmp.eq.s32.totalorder %s52, 0
      %p229 = por %p227, %p228
      %p230 = scmp.ne.s32.totalorder %s216, %s217
      %p231 = scmp.eq.s32.totalorder %s53, 1
      %p232 = por %p230, %p231
      %p234 = scmp.ne.s32.totalorder %s217, %s233
      %p235 = scmp.eq.s32.totalorder %s53, 0
      %p236 = por %p234, %p235
      %s238 = sadd.s32 %s237, 1
      %p241 = scmp.eq.s32.totalorder %s47, 1
      %p242 = scmp.ne.s32.totalorder %s237, %s239
      %p243 = scmp.eq.s32.totalorder %s47, 0
      %p244 = por %p242, %p243
      %p245 = scmp.ne.s32.totalorder %s237, %s239
      %p246 = scmp.eq.s32.totalorder %s52, 1
      %p247 = por %p245, %p246
      %p248 = scmp.ne.s32.totalorder %s239, %s240
      %p249 = scmp.eq.s32.totalorder %s52, 0
      %p250 = por %p248, %p249
      %p251 = scmp.ne.s32.totalorder %s239, %s240
      %p252 = scmp.eq.s32.totalorder %s53, 1
      %p253 = por %p251, %p252
      %p255 = scmp.ne.s32.totalorder %s240, %s254
      %p256 = scmp.eq.s32.totalorder %s53, 0
      %p257 = por %p255, %p256
      %s259 = sadd.s32 %s258, 1
      %p262 = scmp.eq.s32.totalorder %s47, 1
      %p263 = scmp.ne.s32.totalorder %s258, %s260
      %p264 = scmp.eq.s32.totalorder %s47, 0
      %p265 = por %p263, %p264
      %p266 = scmp.ne.s32.totalorder %s258, %s260
      %p267 = scmp.eq.s32.totalorder %s52, 1
      %p268 = por %p266, %p267
      %p269 = scmp.ne.s32.totalorder %s260, %s261
      %p270 = scmp.eq.s32.totalorder %s52, 0
      %p271 = por %p269, %p270
      %p272 = scmp.ne.s32.totalorder %s260, %s261
      %p273 = scmp.eq.s32.totalorder %s53, 1
      %p274 = por %p272, %p273
      %p276 = scmp.ne.s32.totalorder %s261, %s275
      %p277 = scmp.eq.s32.totalorder %s53, 0
      %p278 = por %p276, %p277
      %s280 = sadd.s32 %s279, 1
      %p283 = scmp.eq.s32.totalorder %s47, 1
      %p284 = scmp.ne.s32.totalorder %s279, %s281
      %p285 = scmp.eq.s32.totalorder %s47, 0
      %p286 = por %p284, %p285
      %p287 = scmp.ne.s32.totalorder %s279, %s281
      %p288 = scmp.eq.s32.totalorder %s52, 1
      %p289 = por %p287, %p288
      %p290 = scmp.ne.s32.totalorder %s281, %s282
      %p291 = scmp.eq.s32.totalorder %s52, 0
      %p292 = por %p290, %p291
      %p293 = scmp.ne.s32.totalorder %s281, %s282
      %p294 = scmp.eq.s32.totalorder %s53, 1
      %p295 = por %p293, %p294
      %p297 = scmp.ne.s32.totalorder %s282, %s296
      %p298 = scmp.eq.s32.totalorder %s53, 0
      %p299 = por %p297, %p298
      %s301 = sadd.s32 %s300, 1
      %p304 = scmp.eq.s32.totalorder %s47, 1
      %p305 = scmp.ne.s32.totalorder %s300, %s302
      %p306 = scmp.eq.s32.totalorder %s47, 0
      %p307 = por %p305, %p306
      %p308 = scmp.ne.s32.totalorder %s300, %s302
      %p309 = scmp.eq.s32.totalorder %s52, 1
      %p310 = por %p308, %p309
      %p311 = scmp.ne.s32.totalorder %s302, %s303
      %p312 = scmp.eq.s32.totalorder %s52, 0
      %p313 = por %p311, %p312
      %p314 = scmp.ne.s32.totalorder %s302, %s303
      %p315 = scmp.eq.s32.totalorder %s53, 1
      %p316 = por %p314, %p315
      %p318 = scmp.ne.s32.totalorder %s303, %s317
      %p319 = scmp.eq.s32.totalorder %s53, 0
      %p320 = por %p318, %p319
      %s322 = sadd.s32 %s321, 1
      %p325 = scmp.eq.s32.totalorder %s47, 1
      %p326 = scmp.ne.s32.totalorder %s321, %s323
      %p327 = scmp.eq.s32.totalorder %s47, 0
      %p328 = por %p326, %p327
      %p329 = scmp.ne.s32.totalorder %s321, %s323
      %p330 = scmp.eq.s32.totalorder %s52, 1
      %p331 = por %p329, %p330
      %p332 = scmp.ne.s32.totalorder %s323, %s324
      %p333 = scmp.eq.s32.totalorder %s52, 0
      %p334 = por %p332, %p333
      %p335 = scmp.ne.s32.totalorder %s323, %s324
      %p336 = scmp.eq.s32.totalorder %s53, 1
      %p337 = por %p335, %p336
      %p339 = scmp.ne.s32.totalorder %s324, %s338
      %p340 = scmp.eq.s32.totalorder %s53, 0
      %p341 = por %p339, %p340
      %s343 = sadd.s32 %s342, 1
      %p346 = scmp.eq.s32.totalorder %s47, 1
      %p347 = scmp.ne.s32.totalorder %s342, %s344
      %p348 = scmp.eq.s32.totalorder %s47, 0
      %p349 = por %p347, %p348
      %p350 = scmp.ne.s32.totalorder %s342, %s344
      %p351 = scmp.eq.s32.totalorder %s52, 1
      %p352 = por %p350, %p351
      %p353 = scmp.ne.s32.totalorder %s344, %s345
      %p354 = scmp.eq.s32.totalorder %s52, 0
      %p355 = por %p353, %p354
      %p356 = scmp.ne.s32.totalorder %s344, %s345
      %p357 = scmp.eq.s32.totalorder %s53, 1
      %p358 = por %p356, %p357
      %p360 = scmp.ne.s32.totalorder %s345, %s359
      %p361 = scmp.eq.s32.totalorder %s53, 0
      %p362 = por %p360, %p361
      %s364 = sadd.s32 %s363, 1
      %p367 = scmp.eq.s32.totalorder %s47, 1
      %p368 = scmp.ne.s32.totalorder %s363, %s365
      %p369 = scmp.eq.s32.totalorder %s47, 0
      %p370 = por %p368, %p369
      %p371 = scmp.ne.s32.totalorder %s363, %s365
      %p372 = scmp.eq.s32.totalorder %s52, 1
      %p373 = por %p371, %p372
      %p374 = scmp.ne.s32.totalorder %s365, %s366
      %p375 = scmp.eq.s32.totalorder %s52, 0
      %p376 = por %p374, %p375
      %p377 = scmp.ne.s32.totalorder %s365, %s366
      %p378 = scmp.eq.s32.totalorder %s53, 1
      %p379 = por %p377, %p378
      %p381 = scmp.ne.s32.totalorder %s366, %s380
      %p382 = scmp.eq.s32.totalorder %s53, 0
      %p383 = por %p381, %p382
      %s385 = sadd.s32 %s384, 1
      %p388 = scmp.eq.s32.totalorder %s47, 1
      %p389 = scmp.ne.s32.totalorder %s384, %s386
      %p390 = scmp.eq.s32.totalorder %s47, 0
      %p391 = por %p389, %p390
      %p392 = scmp.ne.s32.totalorder %s384, %s386
      %p393 = scmp.eq.s32.totalorder %s52, 1
      %p394 = por %p392, %p393
      %p395 = scmp.ne.s32.totalorder %s386, %s387
      %p396 = scmp.eq.s32.totalorder %s52, 0
      %p397 = por %p395, %p396
      %p398 = scmp.ne.s32.totalorder %s386, %s387
      %p399 = scmp.eq.s32.totalorder %s53, 1
      %p400 = por %p398, %p399
      %p402 = scmp.ne.s32.totalorder %s387, %s401
      %p403 = scmp.eq.s32.totalorder %s53, 0
      %p404 = por %p402, %p403
      %s406 = sadd.s32 %s405, 1
      %p409 = scmp.eq.s32.totalorder %s47, 1
      %p410 = scmp.ne.s32.totalorder %s405, %s407
      %p411 = scmp.eq.s32.totalorder %s47, 0
      %p412 = por %p410, %p411
      %p413 = scmp.ne.s32.totalorder %s405, %s407
      %p414 = scmp.eq.s32.totalorder %s52, 1
      %p415 = por %p413, %p414
      %p416 = scmp.ne.s32.totalorder %s407, %s408
      %p417 = scmp.eq.s32.totalorder %s52, 0
      %p418 = por %p416, %p417
      %p419 = scmp.ne.s32.totalorder %s407, %s408
      %p420 = scmp.eq.s32.totalorder %s53, 1
      %p421 = por %p419, %p420
      %p423 = scmp.ne.s32.totalorder %s408, %s422
      %p424 = scmp.eq.s32.totalorder %s53, 0
      %p425 = por %p423, %p424
      %s426 = ssub.s32 %s47, %s54
      %p427 = scmp.eq.s32.totalorder %s426, 0
      %s429 = sadd.s32 %s428, 1
      %s430 = scalar_select %p427, %s428, %s429
      %p433 = pneg %p427
      %p434 = scmp.eq.s32.totalorder %s47, 1
      %p435 = por %p433, %p434
      %p436 = scmp.ne.s32.totalorder %s428, %s431
      %p437 = scmp.eq.s32.totalorder %s47, 0
      %p438 = por %p436, %p437
      %p439 = scmp.ne.s32.totalorder %s428, %s431
      %p440 = scmp.eq.s32.totalorder %s52, 1
      %p441 = por %p439, %p440
      %p442 = scmp.ne.s32.totalorder %s431, %s432
      %p443 = scmp.eq.s32.totalorder %s52, 0
      %p444 = por %p442, %p443
      %p445 = scmp.ne.s32.totalorder %s431, %s432
      %p446 = scmp.eq.s32.totalorder %s53, 1
      %p447 = por %p445, %p446
      %p449 = scmp.ne.s32.totalorder %s432, %s448
      %p450 = scmp.eq.s32.totalorder %s53, 0
      %p451 = por %p449, %p450
      %s452 = ssub.s32 %s47, %s54
      %p453 = scmp.eq.s32.totalorder %s452, 0
      %s455 = sadd.s32 %s454, 1
      %s456 = scalar_select %p453, %s454, %s455
      %p459 = pneg %p453
      %p460 = scmp.eq.s32.totalorder %s47, 1
      %p461 = por %p459, %p460
      %p462 = scmp.ne.s32.totalorder %s454, %s457
      %p463 = scmp.eq.s32.totalorder %s47, 0
      %p464 = por %p462, %p463
      %p465 = scmp.ne.s32.totalorder %s454, %s457
      %p466 = scmp.eq.s32.totalorder %s52, 1
      %p467 = por %p465, %p466
      %p468 = scmp.ne.s32.totalorder %s457, %s458
      %p469 = scmp.eq.s32.totalorder %s52, 0
      %p470 = por %p468, %p469
      %p471 = scmp.ne.s32.totalorder %s457, %s458
      %p472 = scmp.eq.s32.totalorder %s53, 1
      %p473 = por %p471, %p472
      %p475 = scmp.ne.s32.totalorder %s458, %s474
      %p476 = scmp.eq.s32.totalorder %s53, 0
      %p477 = por %p475, %p476
      %s478 = ssub.s32 %s47, %s54
      %p479 = scmp.eq.s32.totalorder %s478, 0
      %s481 = sadd.s32 %s480, 1
      %s482 = scalar_select %p479, %s480, %s481
      %p485 = pneg %p479
      %p486 = scmp.eq.s32.totalorder %s47, 1
      %p487 = por %p485, %p486
      %p488 = scmp.ne.s32.totalorder %s480, %s483
      %p489 = scmp.eq.s32.totalorder %s47, 0
      %p490 = por %p488, %p489
      %p491 = scmp.ne.s32.totalorder %s480, %s483
      %p492 = scmp.eq.s32.totalorder %s52, 1
      %p493 = por %p491, %p492
      %p494 = scmp.ne.s32.totalorder %s483, %s484
      %p495 = scmp.eq.s32.totalorder %s52, 0
      %p496 = por %p494, %p495
      %p497 = scmp.ne.s32.totalorder %s483, %s484
      %p498 = scmp.eq.s32.totalorder %s53, 1
      %p499 = por %p497, %p498
      %p501 = scmp.ne.s32.totalorder %s484, %s500
      %p502 = scmp.eq.s32.totalorder %s53, 0
      %p503 = por %p501, %p502
      %p504 = scmp.le.s32.totalorder 1, %s47
      %p505 = scmp.lt.s32.totalorder %s47, 3
      %p506 = pnand %p504, %p505
      %p507 = pneg %p506
      // Predicated region
      $region9: #{tpu_custom_call.1} parent=5 // pred_check
        _
      $region10: #{tpu_custom_call.1} parent=5 // pred_check_branch
        %509 = sbr.rel (%p506) target = $region12
      $region11: #{tpu_custom_call.1} parent=5 // pred_region
        %s510 = ssub.s32 %s47, 1
        // Predicated region
        $region13: #{tpu_custom_call.1} parent=11 // pred_check
          %p511 = pneg %p250
        $region14: #{tpu_custom_call.1} parent=11 // pred_check_branch
          %513 = sbr.rel (%p511) target = $region16
        $region15: #{tpu_custom_call.1} parent=11 // pred_region
          _
        $region16: #{tpu_custom_call.1} parent=11 // pred_fallthru
          _
        // Predicated region
        $region17: #{tpu_custom_call.1} parent=11 // pred_check
          %p514 = pneg %p271
        $region18: #{tpu_custom_call.1} parent=11 // pred_check_branch
          %516 = sbr.rel (%p514) target = $region20
        $region19: #{tpu_custom_call.1} parent=11 // pred_region
          %518 = vsyncadd [#allocation12], 0
          %s519 = sshll.u32 %s8, 4
          %s520 = int_to_ptr.hbm [resolvable:$true] %s519
          %s521 = sshll.u32 [#allocation13], 4
          %s522 = int_to_ptr.vmem [resolvable:$true] %s521
          %527 = dma.hbm_to_vmem [thread:$0]  %s520, 4096, %s522, [#allocation12], 64, 64, 4
        $region20: #{tpu_custom_call.1} parent=11 // pred_fallthru
          _
        // Predicated region
        $region21: #{tpu_custom_call.1} parent=11 // pred_check
          %p528 = pneg %p292
        $region22: #{tpu_custom_call.1} parent=11 // pred_check_branch
          %530 = sbr.rel (%p528) target = $region24
        $region23: #{tpu_custom_call.1} parent=11 // pred_region
          %532 = vsyncadd [#allocation15], 0
          %s533 = sshll.u32 %s9, 4
          %s534 = int_to_ptr.hbm [resolvable:$true] %s533
          %s535 = sshll.u32 [#allocation14], 4
          %s536 = int_to_ptr.vmem [resolvable:$true] %s535
          %541 = dma.hbm_to_vmem [thread:$0]  %s534, 4096, %s536, [#allocation15], 64, 64, 4
        $region24: #{tpu_custom_call.1} parent=11 // pred_fallthru
          _
        // Predicated region
        $region25: #{tpu_custom_call.1} parent=11 // pred_check
          %p542 = pneg %p313
        $region26: #{tpu_custom_call.1} parent=11 // pred_check_branch
          %544 = sbr.rel (%p542) target = $region28
        $region27: #{tpu_custom_call.1} parent=11 // pred_region
          %546 = vsyncadd [#allocation15], 0
          %s547 = sshll.u32 %s10, 4
          %s548 = int_to_ptr.hbm [resolvable:$true] %s547
          %s549 = sshll.u32 [#allocation16], 4
          %s550 = int_to_ptr.vmem [resolvable:$true] %s549
          %555 = dma.hbm_to_vmem [thread:$0]  %s548, 4096, %s550, [#allocation15], 128, 128, 8
        $region28: #{tpu_custom_call.1} parent=11 // pred_fallthru
          _
        // Predicated region
        $region29: #{tpu_custom_call.1} parent=11 // pred_check
          %p556 = pneg %p334
        $region30: #{tpu_custom_call.1} parent=11 // pred_check_branch
          %558 = sbr.rel (%p556) target = $region32
        $region31: #{tpu_custom_call.1} parent=11 // pred_region
          %560 = vsyncadd [#allocation18], 0
          %s561 = sshll.u32 %s11, 4
          %s562 = int_to_ptr.hbm [resolvable:$true] %s561
          %s563 = sshll.u32 [#allocation17], 4
          %s564 = int_to_ptr.vmem [resolvable:$true] %s563
          %569 = dma.hbm_to_vmem [thread:$0]  %s562, 8192, %s564, [#allocation18], 256, 256, 16
        $region32: #{tpu_custom_call.1} parent=11 // pred_fallthru
          _
        // Predicated region
        $region33: #{tpu_custom_call.1} parent=11 // pred_check
          %p570 = pneg %p355
        $region34: #{tpu_custom_call.1} parent=11 // pred_check_branch
          %572 = sbr.rel (%p570) target = $region36
        $region35: #{tpu_custom_call.1} parent=11 // pred_region
          %574 = vsyncadd [#allocation18], 0
          %s575 = sshll.u32 %s12, 4
          %s576 = int_to_ptr.hbm [resolvable:$true] %s575
          %s577 = sshll.u32 [#allocation19], 4
          %s578 = int_to_ptr.vmem [resolvable:$true] %s577
          %583 = dma.hbm_to_vmem [thread:$0]  %s576, 8192, %s578, [#allocation18], 256, 256, 16
        $region36: #{tpu_custom_call.1} parent=11 // pred_fallthru
          _
        // Predicated region
        $region37: #{tpu_custom_call.1} parent=11 // pred_check
          %p584 = pneg %p376
        $region38: #{tpu_custom_call.1} parent=11 // pred_check_branch
          %586 = sbr.rel (%p584) target = $region40
        $region39: #{tpu_custom_call.1} parent=11 // pred_region
          %588 = vsyncadd [#allocation21], 0
          %s589 = sshll.u32 %s13, 4
          %s590 = int_to_ptr.hbm [resolvable:$true] %s589
          %s591 = sshll.u32 [#allocation20], 4
          %s592 = int_to_ptr.vmem [resolvable:$true] %s591
          %597 = dma.hbm_to_vmem [thread:$0]  %s590, 8192, %s592, [#allocation21], 128, 128, 8
        $region40: #{tpu_custom_call.1} parent=11 // pred_fallthru
          _
        // Predicated region
        $region41: #{tpu_custom_call.1} parent=11 // pred_check
          %p598 = pneg %p397
        $region42: #{tpu_custom_call.1} parent=11 // pred_check_branch
          %600 = sbr.rel (%p598) target = $region44
        $region43: #{tpu_custom_call.1} parent=11 // pred_region
          %602 = vsyncadd [#allocation21], 0
          %s604 = sshll.u32 %s14, 4
          %s605 = int_to_ptr.hbm [resolvable:$true] %s604
          %s606 = sshll.u32 [#allocation22], 4
          %s607 = int_to_ptr.vmem [resolvable:$true] %s606
          %609 = dma.hbm_to_vmem [thread:$0]  %s605, 32, %s607, [#allocation21]
        $region44: #{tpu_custom_call.1} parent=11 // pred_fallthru
          _
        // Predicated region
        $region45: #{tpu_custom_call.1} parent=11 // pred_check
          %p610 = pneg %p418
        $region46: #{tpu_custom_call.1} parent=11 // pred_check_branch
          %612 = sbr.rel (%p610) target = $region48
        $region47: #{tpu_custom_call.1} parent=11 // pred_region
          %614 = vsyncadd [#allocation24], 0
          %s616 = sshll.u32 %s15, 4
          %s617 = int_to_ptr.hbm [resolvable:$true] %s616
          %s618 = sshll.u32 [#allocation23], 4
          %s619 = int_to_ptr.vmem [resolvable:$true] %s618
          %621 = dma.hbm_to_vmem [thread:$0]  %s617, 32, %s619, [#allocation24]
        $region48: #{tpu_custom_call.1} parent=11 // pred_fallthru
          _
      $region12: #{tpu_custom_call.1} parent=5 // pred_fallthru
        _
      %p622 = scmp.lt.s32.totalorder %s47, 2
      // Predicated region
      $region49: #{tpu_custom_call.1} parent=5 // pred_check
        %p623 = pneg %p622
      $region50: #{tpu_custom_call.1} parent=5 // pred_check_branch
        %625 = sbr.rel (%p623) target = $region52
      $region51: #{tpu_custom_call.1} parent=5 // pred_region
        // Predicated region
        $region53: #{tpu_custom_call.1} parent=51 // pred_check
          %p626 = pneg %p67
        $region54: #{tpu_custom_call.1} parent=51 // pred_check_branch
          %628 = sbr.rel (%p626) target = $region56
        $region55: #{tpu_custom_call.1} parent=51 // pred_region
          %p629 = scmp.lt.s32.totalorder %s47, 1
          %s630 = scalar_select %p629, %s47, 1
          %s631 = smul.addr %s630, 2
          %s632 = smul.addr %s631, 8
          %s633 = scalar_lea.vmem %s0, %s632
        $region56: #{tpu_custom_call.1} parent=51 // pred_fallthru
          _
        // Predicated region
        $region57: #{tpu_custom_call.1} parent=51 // pred_check
          %p634 = pneg %p93
        $region58: #{tpu_custom_call.1} parent=51 // pred_check_branch
          %636 = sbr.rel (%p634) target = $region60
        $region59: #{tpu_custom_call.1} parent=51 // pred_region
          %s637 = sand.u32 %s83, 1
          %s638 = scalar_lea.sflag [#allocation3], %s637
          %s639 = sand.u32 %s83, 1
          %s640 = smul.addr %s639, 8
          %s641 = scalar_lea.vmem [#allocation2], %s640
          %643 = vsyncadd %s638, 0
          %s644 = smul.addr %s47, 8
          %s645 = scalar_lea.hbm %s1, %s644
          %s647 = sshll.u32 %s645, 4
          %s648 = int_to_ptr.hbm [resolvable:$true] %s647
          %s649 = sshll.u32 %s641, 4
          %s650 = int_to_ptr.vmem [resolvable:$true] %s649
          %652 = dma.hbm_to_vmem [thread:$0]  %s648, 128, %s650, %s638
        $region60: #{tpu_custom_call.1} parent=51 // pred_fallthru
          _
        // Predicated region
        $region61: #{tpu_custom_call.1} parent=51 // pred_check
          %p653 = pneg %p119
        $region62: #{tpu_custom_call.1} parent=51 // pred_check_branch
          %655 = sbr.rel (%p653) target = $region64
        $region63: #{tpu_custom_call.1} parent=51 // pred_region
          %s656 = sand.u32 %s47, 1
          %s657 = scalar_lea.sflag [#allocation6], %s656
          %s658 = sand.u32 %s109, 1
          %s659 = smul.addr %s658, 8
          %s660 = scalar_lea.vmem [#allocation5], %s659
          %662 = vsyncadd %s657, 0
          %s663 = smul.addr %s47, 8
          %s664 = scalar_lea.hbm %s2, %s663
          %s666 = sshll.u32 %s664, 4
          %s667 = int_to_ptr.hbm [resolvable:$true] %s666
          %s668 = sshll.u32 %s660, 4
          %s669 = int_to_ptr.vmem [resolvable:$true] %s668
          %671 = dma.hbm_to_vmem [thread:$0]  %s667, 128, %s669, %s657
        $region64: #{tpu_custom_call.1} parent=51 // pred_fallthru
          _
        // Predicated region
        $region65: #{tpu_custom_call.1} parent=51 // pred_check
          %p672 = pneg %p145
        $region66: #{tpu_custom_call.1} parent=51 // pred_check_branch
          %674 = sbr.rel (%p672) target = $region68
        $region67: #{tpu_custom_call.1} parent=51 // pred_region
          %s675 = sand.u32 %s47, 1
          %s676 = scalar_lea.sflag [#allocation6], %s675
          %s677 = sand.u32 %s135, 1
          %s678 = smul.addr %s677, 8
          %s679 = scalar_lea.vmem [#allocation7], %s678
          %681 = vsyncadd %s676, 0
          %s682 = smul.addr %s47, 8
          %s683 = scalar_lea.hbm %s3, %s682
          %s685 = sshll.u32 %s683, 4
          %s686 = int_to_ptr.hbm [resolvable:$true] %s685
          %s687 = sshll.u32 %s679, 4
          %s688 = int_to_ptr.vmem [resolvable:$true] %s687
          %690 = dma.hbm_to_vmem [thread:$0]  %s686, 128, %s688, %s676
        $region68: #{tpu_custom_call.1} parent=51 // pred_fallthru
          _
        // Predicated region
        $region69: #{tpu_custom_call.1} parent=51 // pred_check
          %p691 = pneg %p171
        $region70: #{tpu_custom_call.1} parent=51 // pred_check_branch
          %693 = sbr.rel (%p691) target = $region72
        $region71: #{tpu_custom_call.1} parent=51 // pred_region
          %s694 = sand.u32 %s47, 1
          %s695 = scalar_lea.sflag [#allocation9], %s694
          %s696 = sand.u32 %s161, 1
          %s697 = smul.addr %s696, 8
          %s698 = scalar_lea.vmem [#allocation8], %s697
          %700 = vsyncadd %s695, 0
          %s701 = smul.addr %s47, 8
          %s702 = scalar_lea.hbm %s4, %s701
          %s704 = sshll.u32 %s702, 4
          %s705 = int_to_ptr.hbm [resolvable:$true] %s704
          %s706 = sshll.u32 %s698, 4
          %s707 = int_to_ptr.vmem [resolvable:$true] %s706
          %709 = dma.hbm_to_vmem [thread:$0]  %s705, 128, %s707, %s695
        $region72: #{tpu_custom_call.1} parent=51 // pred_fallthru
          _
        // Predicated region
        $region73: #{tpu_custom_call.1} parent=51 // pred_check
          %p710 = pneg %p197
        $region74: #{tpu_custom_call.1} parent=51 // pred_check_branch
          %712 = sbr.rel (%p710) target = $region76
        $region75: #{tpu_custom_call.1} parent=51 // pred_region
          #allocation30 [shape = 'u32[6]{0}', space=smem, size = 0x18, scoped, tag = 'DMA stride descriptor']
          %s713 = sand.u32 %s47, 1
          %s714 = scalar_lea.sflag [#allocation9], %s713
          %s715 = sand.u32 %s187, 1
          %s716 = smul.addr %s715, 32
          %s717 = scalar_lea.vmem [#allocation10], %s716
          %719 = vsyncadd %s714, 0
          %s720 = smul.addr %s47, 6
          %s721 = smul.addr %s720, 8
          %s722 = scalar_lea.hbm %s5, %s721
          %s724 = sshll.u32 1, 14
          %s725 = sxor.u32 4294967295, %s724
          %s727 = sld [smem:[#allocation0]]
          %s728 = sadd.s32 2, %s727
          %s730 = sshll.u32 7, 26
          %s731 = sxor.u32 4294967295, %s730
          %s732 = sand.u32 0, %s731
          %s733 = sshll.u32 %s728, 26
          %s734 = sor.u32 %s732, %s733
          %s735 = sshll.u32 %s722, 4
          %s736 = int_to_ptr.hbm [resolvable:$true] %s735
          %s737 = sshll.u32 %s717, 4
          %s738 = int_to_ptr.vmem [resolvable:$true] %s737
          %744 = sst [smem:[#allocation30]] 384
          %s745 = scalar_lea.smem [#allocation30], 1
          %746 = sst [smem:[%s745]] 256
          %s747 = scalar_lea.smem [#allocation30], 2
          %748 = sst [smem:[%s747]] 2
          %s749 = scalar_lea.smem [#allocation30], 3
          %750 = sst [smem:[%s749]] 128
          %s751 = scalar_lea.smem [#allocation30], 4
          %752 = sst [smem:[%s751]] 128
          %s753 = scalar_lea.smem [#allocation30], 5
          %754 = sst [smem:[%s753]] 8
          %756 = dma.general %s736, 512, %s738, %s714, [#allocation29], [#allocation30], %s734, 0
        $region76: #{tpu_custom_call.1} parent=51 // pred_fallthru
          _
        // Predicated region
        $region77: #{tpu_custom_call.1} parent=51 // pred_check
          %p757 = pneg %p223
        $region78: #{tpu_custom_call.1} parent=51 // pred_check_branch
          %759 = sbr.rel (%p757) target = $region80
        $region79: #{tpu_custom_call.1} parent=51 // pred_region
          #allocation32 [shape = 'u32[6]{0}', space=smem, size = 0x18, scoped, tag = 'DMA stride descriptor']
          %s760 = sand.u32 %s47, 1
          %s761 = scalar_lea.sflag [#allocation12], %s760
          %s762 = sand.u32 %s213, 1
          %s763 = smul.addr %s762, 32
          %s764 = scalar_lea.vmem [#allocation11], %s763
          %766 = vsyncadd %s761, 0
          %s767 = smul.addr %s47, 6
          %s768 = smul.addr %s767, 8
          %s769 = scalar_lea.hbm %s6, %s768
          %s771 = sshll.u32 1, 14
          %s772 = sxor.u32 4294967295, %s771
          %s774 = sld [smem:[#allocation0]]
          %s775 = sadd.s32 2, %s774
          %s777 = sshll.u32 7, 26
          %s778 = sxor.u32 4294967295, %s777
          %s779 = sand.u32 0, %s778
          %s780 = sshll.u32 %s775, 26
          %s781 = sor.u32 %s779, %s780
          %s782 = sshll.u32 %s769, 4
          %s783 = int_to_ptr.hbm [resolvable:$true] %s782
          %s784 = sshll.u32 %s764, 4
          %s785 = int_to_ptr.vmem [resolvable:$true] %s784
          %791 = sst [smem:[#allocation32]] 384
          %s792 = scalar_lea.smem [#allocation32], 1
          %793 = sst [smem:[%s792]] 256
          %s794 = scalar_lea.smem [#allocation32], 2
          %795 = sst [smem:[%s794]] 2
          %s796 = scalar_lea.smem [#allocation32], 3
          %797 = sst [smem:[%s796]] 128
          %s798 = scalar_lea.smem [#allocation32], 4
          %799 = sst [smem:[%s798]] 128
          %s800 = scalar_lea.smem [#allocation32], 5
          %801 = sst [smem:[%s800]] 8
          %803 = dma.general %s783, 512, %s785, %s761, [#allocation31], [#allocation32], %s781, 0
        $region80: #{tpu_custom_call.1} parent=51 // pred_fallthru
          _
      $region52: #{tpu_custom_call.1} parent=5 // pred_fallthru
        _
      %p804 = scmp.le.s32.totalorder 1, %s47
      %p805 = scmp.lt.s32.totalorder %s47, 3
      %p806 = pnand %p804, %p805
      %p807 = pneg %p806
      // Predicated region
      $region81: #{tpu_custom_call.1} parent=5 // pred_check
        _
      $region82: #{tpu_custom_call.1} parent=5 // pred_check_branch
        %809 = sbr.rel (%p806) target = $region84
      $region83: #{tpu_custom_call.1} parent=5 // pred_region
        %s810 = ssub.s32 %s47, 1
        %s811 = sand.u32 %s86, 1
        %s812 = scalar_lea.sflag [#allocation3], %s811
        %s813 = sand.u32 %s86, 1
        %s814 = smul.addr %s813, 8
        %s815 = scalar_lea.vmem [#allocation2], %s814
        // Predicated region
        $region85: #{tpu_custom_call.1} parent=83 // pred_check
          %p816 = pneg %p99
        $region86: #{tpu_custom_call.1} parent=83 // pred_check_branch
          %818 = sbr.rel (%p816) target = $region88
        $region87: #{tpu_custom_call.1} parent=83 // pred_region
          %820 = dma.done %s812, 128
        $region88: #{tpu_custom_call.1} parent=83 // pred_fallthru
          _
        %s821 = sand.u32 %s52, 1
        %s822 = scalar_lea.sflag [#allocation6], %s821
        %s823 = sand.u32 %s112, 1
        %s824 = smul.addr %s823, 8
        %s825 = scalar_lea.vmem [#allocation5], %s824
        // Predicated region
        $region89: #{tpu_custom_call.1} parent=83 // pred_check
          %p826 = pneg %p125
        $region90: #{tpu_custom_call.1} parent=83 // pred_check_branch
          %828 = sbr.rel (%p826) target = $region92
        $region91: #{tpu_custom_call.1} parent=83 // pred_region
          %830 = dma.done %s822, 128
        $region92: #{tpu_custom_call.1} parent=83 // pred_fallthru
          _
        %s831 = sand.u32 %s52, 1
        %s832 = scalar_lea.sflag [#allocation6], %s831
        %s833 = sand.u32 %s138, 1
        %s834 = smul.addr %s833, 8
        %s835 = scalar_lea.vmem [#allocation7], %s834
        // Predicated region
        $region93: #{tpu_custom_call.1} parent=83 // pred_check
          %p836 = pneg %p151
        $region94: #{tpu_custom_call.1} parent=83 // pred_check_branch
          %838 = sbr.rel (%p836) target = $region96
        $region95: #{tpu_custom_call.1} parent=83 // pred_region
          %840 = dma.done %s832, 128
        $region96: #{tpu_custom_call.1} parent=83 // pred_fallthru
          _
        %s841 = sand.u32 %s52, 1
        %s842 = scalar_lea.sflag [#allocation9], %s841
        %s843 = sand.u32 %s164, 1
        %s844 = smul.addr %s843, 8
        %s845 = scalar_lea.vmem [#allocation8], %s844
        // Predicated region
        $region97: #{tpu_custom_call.1} parent=83 // pred_check
          %p846 = pneg %p177
        $region98: #{tpu_custom_call.1} parent=83 // pred_check_branch
          %848 = sbr.rel (%p846) target = $region100
        $region99: #{tpu_custom_call.1} parent=83 // pred_region
          %850 = dma.done %s842, 128
        $region100: #{tpu_custom_call.1} parent=83 // pred_fallthru
          _
        %s851 = sand.u32 %s52, 1
        %s852 = scalar_lea.sflag [#allocation9], %s851
        %s853 = sand.u32 %s190, 1
        %s854 = smul.addr %s853, 32
        %s855 = scalar_lea.vmem [#allocation10], %s854
        // Predicated region
        $region101: #{tpu_custom_call.1} parent=83 // pred_check
          %p856 = pneg %p203
        $region102: #{tpu_custom_call.1} parent=83 // pred_check_branch
          %858 = sbr.rel (%p856) target = $region104
        $region103: #{tpu_custom_call.1} parent=83 // pred_region
          %860 = dma.done %s852, 512
        $region104: #{tpu_custom_call.1} parent=83 // pred_fallthru
          _
        %s861 = sand.u32 %s52, 1
        %s862 = scalar_lea.sflag [#allocation12], %s861
        %s863 = sand.u32 %s216, 1
        %s864 = smul.addr %s863, 32
        %s865 = scalar_lea.vmem [#allocation11], %s864
        // Predicated region
        $region105: #{tpu_custom_call.1} parent=83 // pred_check
          %p866 = pneg %p229
        $region106: #{tpu_custom_call.1} parent=83 // pred_check_branch
          %868 = sbr.rel (%p866) target = $region108
        $region107: #{tpu_custom_call.1} parent=83 // pred_region
          %870 = dma.done %s862, 512
        $region108: #{tpu_custom_call.1} parent=83 // pred_fallthru
          _
        // Predicated region
        $region109: #{tpu_custom_call.1} parent=83 // pred_check
          %p871 = pneg %p271
        $region110: #{tpu_custom_call.1} parent=83 // pred_check_branch
          %873 = sbr.rel (%p871) target = $region112
        $region111: #{tpu_custom_call.1} parent=83 // pred_region
          %875 = dma.done [#allocation12], 4096
        $region112: #{tpu_custom_call.1} parent=83 // pred_fallthru
          _
        // Predicated region
        $region113: #{tpu_custom_call.1} parent=83 // pred_check
          %p876 = pneg %p292
        $region114: #{tpu_custom_call.1} parent=83 // pred_check_branch
          %878 = sbr.rel (%p876) target = $region116
        $region115: #{tpu_custom_call.1} parent=83 // pred_region
          %880 = dma.done [#allocation15], 4096
        $region116: #{tpu_custom_call.1} parent=83 // pred_fallthru
          _
        // Predicated region
        $region117: #{tpu_custom_call.1} parent=83 // pred_check
          %p881 = pneg %p313
        $region118: #{tpu_custom_call.1} parent=83 // pred_check_branch
          %883 = sbr.rel (%p881) target = $region120
        $region119: #{tpu_custom_call.1} parent=83 // pred_region
          %885 = dma.done [#allocation15], 4096
        $region120: #{tpu_custom_call.1} parent=83 // pred_fallthru
          _
        // Predicated region
        $region121: #{tpu_custom_call.1} parent=83 // pred_check
          %p886 = pneg %p334
        $region122: #{tpu_custom_call.1} parent=83 // pred_check_branch
          %888 = sbr.rel (%p886) target = $region124
        $region123: #{tpu_custom_call.1} parent=83 // pred_region
          %890 = dma.done [#allocation18], 8192
        $region124: #{tpu_custom_call.1} parent=83 // pred_fallthru
          _
        // Predicated region
        $region125: #{tpu_custom_call.1} parent=83 // pred_check
          %p891 = pneg %p355
        $region126: #{tpu_custom_call.1} parent=83 // pred_check_branch
          %893 = sbr.rel (%p891) target = $region128
        $region127: #{tpu_custom_call.1} parent=83 // pred_region
          %895 = dma.done [#allocation18], 8192
        $region128: #{tpu_custom_call.1} parent=83 // pred_fallthru
          _
        // Predicated region
        $region129: #{tpu_custom_call.1} parent=83 // pred_check
          %p896 = pneg %p376
        $region130: #{tpu_custom_call.1} parent=83 // pred_check_branch
          %898 = sbr.rel (%p896) target = $region132
        $region131: #{tpu_custom_call.1} parent=83 // pred_region
          %900 = dma.done [#allocation21], 8192
        $region132: #{tpu_custom_call.1} parent=83 // pred_fallthru
          _
        // Predicated region
        $region133: #{tpu_custom_call.1} parent=83 // pred_check
          %p901 = pneg %p397
        $region134: #{tpu_custom_call.1} parent=83 // pred_check_branch
          %903 = sbr.rel (%p901) target = $region136
        $region135: #{tpu_custom_call.1} parent=83 // pred_region
          %905 = dma.done [#allocation21], 32
        $region136: #{tpu_custom_call.1} parent=83 // pred_fallthru
          _
        // Predicated region
        $region137: #{tpu_custom_call.1} parent=83 // pred_check
          %p906 = pneg %p418
        $region138: #{tpu_custom_call.1} parent=83 // pred_check_branch
          %908 = sbr.rel (%p906) target = $region140
        $region139: #{tpu_custom_call.1} parent=83 // pred_region
          %910 = dma.done [#allocation24], 32
        $region140: #{tpu_custom_call.1} parent=83 // pred_fallthru
          _
        %p911 = scmp.lt.s32.totalorder %s52, 1
        %s912 = scalar_select %p911, %s52, 1
        %s913 = smul.addr %s912, 2
        %s914 = smul.addr %s913, 8
        %s915 = scalar_lea.vmem %s0, %s914
        %p916 = pneg %p73
        %p917 = pneg %p70
        %s918 = sand.u32 %s86, 1
        %s919 = scalar_lea.sflag [#allocation3], %s918
        %s920 = sand.u32 %s86, 1
        %s921 = smul.addr %s920, 8
        %s922 = scalar_lea.vmem [#allocation2], %s921
        %p923 = pneg %p99
        %p924 = pneg %p96
        %s925 = sand.u32 %s52, 1
        %s926 = scalar_lea.sflag [#allocation6], %s925
        %s927 = sand.u32 %s112, 1
        %s928 = smul.addr %s927, 8
        %s929 = scalar_lea.vmem [#allocation5], %s928
        %p930 = pneg %p125
        %p931 = pneg %p122
        %s932 = sand.u32 %s52, 1
        %s933 = scalar_lea.sflag [#allocation6], %s932
        %s934 = sand.u32 %s138, 1
        %s935 = smul.addr %s934, 8
        %s936 = scalar_lea.vmem [#allocation7], %s935
        %p937 = pneg %p151
        %p938 = pneg %p148
        %s939 = sand.u32 %s52, 1
        %s940 = scalar_lea.sflag [#allocation9], %s939
        %s941 = sand.u32 %s164, 1
        %s942 = smul.addr %s941, 8
        %s943 = scalar_lea.vmem [#allocation8], %s942
        %p944 = pneg %p177
        %p945 = pneg %p174
        %s946 = sand.u32 %s52, 1
        %s947 = scalar_lea.sflag [#allocation9], %s946
        %s948 = sand.u32 %s190, 1
        %s949 = smul.addr %s948, 32
        %s950 = scalar_lea.vmem [#allocation10], %s949
        %p951 = pneg %p203
        %p952 = pneg %p200
        %s953 = sand.u32 %s52, 1
        %s954 = scalar_lea.sflag [#allocation12], %s953
        %s955 = sand.u32 %s216, 1
        %s956 = smul.addr %s955, 32
        %s957 = scalar_lea.vmem [#allocation11], %s956
        %p958 = pneg %p229
        %p959 = pneg %p226
        %p960 = pneg %p250
        %p961 = pneg %p247
        %p962 = pneg %p271
        %p963 = pneg %p268
        %p964 = pneg %p292
        %p965 = pneg %p289
        %p966 = pneg %p313
        %p967 = pneg %p310
        %p968 = pneg %p334
        %p969 = pneg %p331
        %p970 = pneg %p355
        %p971 = pneg %p352
        %p972 = pneg %p376
        %p973 = pneg %p373
        %p974 = pneg %p397
        %p975 = pneg %p394
        %p976 = pneg %p418
        %p977 = pneg %p415
        %p978 = pneg %p444
        %p979 = pneg %p441
        %s980 = sand.u32 %s431, 1
        %s981 = scalar_lea.sflag [#allocation4], %s980
        %s982 = sand.u32 %s431, 1
        %s983 = smul.addr %s982, 16
        %s984 = scalar_lea.vmem [#allocation25], %s983
        %p985 = pneg %p470
        %p986 = pneg %p467
        %s987 = sand.u32 %s52, 1
        %s988 = scalar_lea.sflag [#allocation27], %s987
        %s989 = sand.u32 %s457, 1
        %s990 = smul.addr %s989, 16
        %s991 = scalar_lea.vmem [#allocation26], %s990
        %p992 = pneg %p496
        %p993 = pneg %p493
        %s994 = sand.u32 %s52, 1
        %s995 = scalar_lea.sflag [#allocation27], %s994
        %s996 = sand.u32 %s483, 1
        %s997 = smul.addr %s996, 16
        %s998 = scalar_lea.vmem [#allocation28], %s997
        %p999 = scmp.lt.s32.totalorder %s52, 1
        %s1000 = scalar_select %p999, %s52, 1
        %s1001 = smul.addr %s1000, 2
        %s1002 = smul.addr %s1001, 8
        %s1003 = scalar_lea.vmem %s0, %s1002
        %v1005 = vld [vmem:[%s1003] sm:$0xff]
        %v1006 = vld [vmem:[%s1003 + $0x8] sm:$0xff]
        %v1007 = vmul.f32 %v1005, %v1005
        %v1008 = vmul.f32 %v1006, %v1006
        %v1009 = vadd.f32 %v1007, %v1008
        %1010 = vadd.xlane.f32.xlu0 %v1009
        %v1011 = vpop.xlane.xlu0 %1010
        %v1012 = vrcp.pop 256.0
        %v1013 = vmul.f32 256.0, %v1012
        %v1014 = vsub.f32 1.0, %v1013
        %v1015 = vmul.f32 %v1012, %v1014
        %v1016 = vadd.f32 %v1012, %v1015
        %vm1017 = vweird.f32 %v1012
        %v1018 = vsel %vm1017, %v1012, %v1016
        %v1019 = vmul.f32 %v1011, %v1018
        %v1020 = vadd.f32 %v1019, 1e-05
        %v1021 = vrsqrt.pop %v1020
        %v1022 = vmul.f32 %v1021, %v1020
        %v1023 = vmul.f32 %v1022, %v1021
        %v1024 = vmul.f32 0.5, %v1023
        %v1025 = vsub.f32 1.5, %v1024
        %v1026 = vmul.f32 %v1021, %v1025
        %vm1027 = vweird.f32 %v1020
        %vm1028 = vweird.f32 %v1021
        %vm1029 = vmor %vm1027, %vm1028
        %v1030 = vsel %vm1029, %v1021, %v1026
        %v1031 = vmul.f32 %v1005, %v1030
        %v1032 = vmul.f32 %v1006, %v1030
        %v1033 = vld [vmem:[#allocation22] sm:$0x3]
        %v1035 = vperm.slane %v1033, 0
        %v1036 = vperm.slane %v1033, 1
        %v1039 = vmul.f32 %v1031, %v1035
        %v1040 = vmul.f32 %v1032, %v1036
        %v1041 = vpack.c.bf16 %v1040, %v1039
        %v1042 = vld [vmem:[%s7] sm:$0xf]
        %v1043 = vld [vmem:[%s7 + $0x4] sm:$0xf]
        %v1044 = vld [vmem:[%s7 + $0x8] sm:$0xf]
        %v1045 = vld [vmem:[%s7 + $0xc] sm:$0xf]
        %v1046 = vld [vmem:[%s7 + $0x10] sm:$0xf]
        %v1047 = vld [vmem:[%s7 + $0x14] sm:$0xf]
        %v1048 = vld [vmem:[%s7 + $0x18] sm:$0xf]
        %v1049 = vld [vmem:[%s7 + $0x1c] sm:$0xf]
        %v1050 = vld [vmem:[%s7 + $0x20] sm:$0xf]
        %v1051 = vld [vmem:[%s7 + $0x24] sm:$0xf]
        %v1052 = vld [vmem:[%s7 + $0x28] sm:$0xf]
        %v1053 = vld [vmem:[%s7 + $0x2c] sm:$0xf]
        %v1054 = vld [vmem:[%s7 + $0x30] sm:$0xf]
        %v1055 = vld [vmem:[%s7 + $0x34] sm:$0xf]
        %v1056 = vld [vmem:[%s7 + $0x38] sm:$0xf]
        %v1057 = vld [vmem:[%s7 + $0x3c] sm:$0xf]
        %v1058 = vld [vmem:[%s7 + $0x40] sm:$0xf]
        %v1059 = vld [vmem:[%s7 + $0x44] sm:$0xf]
        %v1060 = vld [vmem:[%s7 + $0x48] sm:$0xf]
        %v1061 = vld [vmem:[%s7 + $0x4c] sm:$0xf]
        %v1062 = vld [vmem:[%s7 + $0x50] sm:$0xf]
        %v1063 = vld [vmem:[%s7 + $0x54] sm:$0xf]
        %v1064 = vld [vmem:[%s7 + $0x58] sm:$0xf]
        %v1065 = vld [vmem:[%s7 + $0x5c] sm:$0xf]
        %v1066 = vld [vmem:[%s7 + $0x60] sm:$0xf]
        %v1067 = vld [vmem:[%s7 + $0x64] sm:$0xf]
        %v1068 = vld [vmem:[%s7 + $0x68] sm:$0xf]
        %v1069 = vld [vmem:[%s7 + $0x6c] sm:$0xf]
        %v1070 = vld [vmem:[%s7 + $0x70] sm:$0xf]
        %v1071 = vld [vmem:[%s7 + $0x74] sm:$0xf]
        %v1072 = vld [vmem:[%s7 + $0x78] sm:$0xf]
        %v1073 = vld [vmem:[%s7 + $0x7c] sm:$0xf]
        %v1074 = vld [vmem:[%s7 + $0x80] sm:$0xf]
        %v1075 = vld [vmem:[%s7 + $0x84] sm:$0xf]
        %v1076 = vld [vmem:[%s7 + $0x88] sm:$0xf]
        %v1077 = vld [vmem:[%s7 + $0x8c] sm:$0xf]
        %v1078 = vld [vmem:[%s7 + $0x90] sm:$0xf]
        %v1079 = vld [vmem:[%s7 + $0x94] sm:$0xf]
        %v1080 = vld [vmem:[%s7 + $0x98] sm:$0xf]
        %v1081 = vld [vmem:[%s7 + $0x9c] sm:$0xf]
        %v1082 = vld [vmem:[%s7 + $0xa0] sm:$0xf]
        %v1083 = vld [vmem:[%s7 + $0xa4] sm:$0xf]
        %v1084 = vld [vmem:[%s7 + $0xa8] sm:$0xf]
        %v1085 = vld [vmem:[%s7 + $0xac] sm:$0xf]
        %v1086 = vld [vmem:[%s7 + $0xb0] sm:$0xf]
        %v1087 = vld [vmem:[%s7 + $0xb4] sm:$0xf]
        %v1088 = vld [vmem:[%s7 + $0xb8] sm:$0xf]
        %v1089 = vld [vmem:[%s7 + $0xbc] sm:$0xf]
        %v1090 = vld [vmem:[%s7 + $0xc0] sm:$0xf]
        %v1091 = vld [vmem:[%s7 + $0xc4] sm:$0xf]
        %v1092 = vld [vmem:[%s7 + $0xc8] sm:$0xf]
        %v1093 = vld [vmem:[%s7 + $0xcc] sm:$0xf]
        %v1094 = vld [vmem:[%s7 + $0xd0] sm:$0xf]
        %v1095 = vld [vmem:[%s7 + $0xd4] sm:$0xf]
        %v1096 = vld [vmem:[%s7 + $0xd8] sm:$0xf]
        %v1097 = vld [vmem:[%s7 + $0xdc] sm:$0xf]
        %v1098 = vld [vmem:[%s7 + $0xe0] sm:$0xf]
        %v1099 = vld [vmem:[%s7 + $0xe4] sm:$0xf]
        %v1100 = vld [vmem:[%s7 + $0xe8] sm:$0xf]
        %v1101 = vld [vmem:[%s7 + $0xec] sm:$0xf]
        %v1102 = vld [vmem:[%s7 + $0xf0] sm:$0xf]
        %v1103 = vld [vmem:[%s7 + $0xf4] sm:$0xf]
        %v1104 = vld [vmem:[%s7 + $0xf8] sm:$0xf]
        %v1105 = vld [vmem:[%s7 + $0xfc] sm:$0xf]
        %v1107 = vunpack.c.l.b16 %v1041
        %v1108 = vunpack.c.h.b16 %v1041
        %v1109 = vpack.c.b16 %v1107, %v1107
        %v1110 = vpack.c.b16 %v1108, %v1108
        %v1145 = vunpack.c.l.b16 %v1042
        %v1146 = vunpack.c.l.b16 %v1043
        %v1147 = vunpack.c.l.b16 %v1044
        %v1148 = vunpack.c.l.b16 %v1045
        %v1149 = vunpack.c.l.b16 %v1046
        %v1150 = vunpack.c.l.b16 %v1047
        %v1151 = vunpack.c.l.b16 %v1048
        %v1152 = vunpack.c.l.b16 %v1049
        %v1153 = vunpack.c.l.b16 %v1050
        %v1154 = vunpack.c.l.b16 %v1051
        %v1155 = vunpack.c.l.b16 %v1052
        %v1156 = vunpack.c.l.b16 %v1053
        %v1157 = vunpack.c.l.b16 %v1054
        %v1158 = vunpack.c.l.b16 %v1055
        %v1159 = vunpack.c.l.b16 %v1056
        %v1160 = vunpack.c.l.b16 %v1057
        %v1161 = vunpack.c.l.b16 %v1058
        %v1162 = vunpack.c.l.b16 %v1059
        %v1163 = vunpack.c.l.b16 %v1060
        %v1164 = vunpack.c.l.b16 %v1061
        %v1165 = vunpack.c.l.b16 %v1062
        %v1166 = vunpack.c.l.b16 %v1063
        %v1167 = vunpack.c.l.b16 %v1064
        %v1168 = vunpack.c.l.b16 %v1065
        %v1169 = vunpack.c.l.b16 %v1066
        %v1170 = vunpack.c.l.b16 %v1067
        %v1171 = vunpack.c.l.b16 %v1068
        %v1172 = vunpack.c.l.b16 %v1069
        %v1173 = vunpack.c.l.b16 %v1070
        %v1174 = vunpack.c.l.b16 %v1071
        %v1175 = vunpack.c.l.b16 %v1072
        %v1176 = vunpack.c.l.b16 %v1073
        %v1177 = vpack.c.b16 %v1146, %v1145
        %v1178 = vpack.c.b16 %v1148, %v1147
        %v1179 = vpack.c.b16 %v1150, %v1149
        %v1180 = vpack.c.b16 %v1152, %v1151
        %v1181 = vpack.c.b16 %v1154, %v1153
        %v1182 = vpack.c.b16 %v1156, %v1155
        %v1183 = vpack.c.b16 %v1158, %v1157
        %v1184 = vpack.c.b16 %v1160, %v1159
        %v1185 = vpack.c.b16 %v1162, %v1161
        %v1186 = vpack.c.b16 %v1164, %v1163
        %v1187 = vpack.c.b16 %v1166, %v1165
        %v1188 = vpack.c.b16 %v1168, %v1167
        %v1189 = vpack.c.b16 %v1170, %v1169
        %v1190 = vpack.c.b16 %v1172, %v1171
        %v1191 = vpack.c.b16 %v1174, %v1173
        %v1192 = vpack.c.b16 %v1176, %v1175
        %1209 = vmatpush.bf16.msra.mxu0 %v1184
        %1210 = vmatpush.bf16.msra.mxu0 %v1183
        %1211 = vmatpush.bf16.msra.mxu0 %v1182
        %1212 = vmatpush.bf16.msra.mxu0 %v1181
        %1213 = vmatpush.bf16.msra.mxu0 %v1180
        %1214 = vmatpush.bf16.msra.mxu0 %v1179
        %1215 = vmatpush.bf16.msra.mxu0 %v1178
        %1216 = vmatpush.bf16.msra.mxu0 %v1177
        %1217 = vmatmul.bf16.gmra.mxu0 %v1109
        %v1218 = vpop.f32.mrf.mxu0
        %v1219 = vadd.f32 0.0, %v1218
        %v1220 = vpop.f32.mrf.mxu0
        %1221 = vdwg.mxu0
        %1222 = vmatpush.bf16.msra.mxu0 %v1192
        %1223 = vmatpush.bf16.msra.mxu0 %v1191
        %1224 = vmatpush.bf16.msra.mxu0 %v1190
        %1225 = vmatpush.bf16.msra.mxu0 %v1189
        %1226 = vmatpush.bf16.msra.mxu0 %v1188
        %1227 = vmatpush.bf16.msra.mxu0 %v1187
        %1228 = vmatpush.bf16.msra.mxu0 %v1186
        %1229 = vmatpush.bf16.msra.mxu0 %v1185
        %1230 = vmatmul.bf16.gmra.mxu0 %v1110
        %v1231 = vpop.f32.mrf.mxu0
        %v1232 = vadd.f32 %v1219, %v1231
        %v1233 = vpop.f32.mrf.mxu0
        %1234 = vdwg.mxu0
        %v1267 = vunpack.c.l.b16 %v1074
        %v1268 = vunpack.c.l.b16 %v1075
        %v1269 = vunpack.c.l.b16 %v1076
        %v1270 = vunpack.c.l.b16 %v1077
        %v1271 = vunpack.c.l.b16 %v1078
        %v1272 = vunpack.c.l.b16 %v1079
        %v1273 = vunpack.c.l.b16 %v1080
        %v1274 = vunpack.c.l.b16 %v1081
        %v1275 = vunpack.c.l.b16 %v1082
        %v1276 = vunpack.c.l.b16 %v1083
        %v1277 = vunpack.c.l.b16 %v1084
        %v1278 = vunpack.c.l.b16 %v1085
        %v1279 = vunpack.c.l.b16 %v1086
        %v1280 = vunpack.c.l.b16 %v1087
        %v1281 = vunpack.c.l.b16 %v1088
        %v1282 = vunpack.c.l.b16 %v1089
        %v1283 = vunpack.c.l.b16 %v1090
        %v1284 = vunpack.c.l.b16 %v1091
        %v1285 = vunpack.c.l.b16 %v1092
        %v1286 = vunpack.c.l.b16 %v1093
        %v1287 = vunpack.c.l.b16 %v1094
        %v1288 = vunpack.c.l.b16 %v1095
        %v1289 = vunpack.c.l.b16 %v1096
        %v1290 = vunpack.c.l.b16 %v1097
        %v1291 = vunpack.c.l.b16 %v1098
        %v1292 = vunpack.c.l.b16 %v1099
        %v1293 = vunpack.c.l.b16 %v1100
        %v1294 = vunpack.c.l.b16 %v1101
        %v1295 = vunpack.c.l.b16 %v1102
        %v1296 = vunpack.c.l.b16 %v1103
        %v1297 = vunpack.c.l.b16 %v1104
        %v1298 = vunpack.c.l.b16 %v1105
        %v1299 = vpack.c.b16 %v1268, %v1267
        %v1300 = vpack.c.b16 %v1270, %v1269
        %v1301 = vpack.c.b16 %v1272, %v1271
        %v1302 = vpack.c.b16 %v1274, %v1273
        %v1303 = vpack.c.b16 %v1276, %v1275
        %v1304 = vpack.c.b16 %v1278, %v1277
        %v1305 = vpack.c.b16 %v1280, %v1279
        %v1306 = vpack.c.b16 %v1282, %v1281
        %v1307 = vpack.c.b16 %v1284, %v1283
        %v1308 = vpack.c.b16 %v1286, %v1285
        %v1309 = vpack.c.b16 %v1288, %v1287
        %v1310 = vpack.c.b16 %v1290, %v1289
        %v1311 = vpack.c.b16 %v1292, %v1291
        %v1312 = vpack.c.b16 %v1294, %v1293
        %v1313 = vpack.c.b16 %v1296, %v1295
        %v1314 = vpack.c.b16 %v1298, %v1297
        %1331 = vmatpush.bf16.msra.mxu0 %v1306
        %1332 = vmatpush.bf16.msra.mxu0 %v1305
        %1333 = vmatpush.bf16.msra.mxu0 %v1304
        %1334 = vmatpush.bf16.msra.mxu0 %v1303
        %1335 = vmatpush.bf16.msra.mxu0 %v1302
        %1336 = vmatpush.bf16.msra.mxu0 %v1301
        %1337 = vmatpush.bf16.msra.mxu0 %v1300
        %1338 = vmatpush.bf16.msra.mxu0 %v1299
        %1339 = vmatmul.bf16.gmra.mxu0 %v1109
        %v1340 = vpop.f32.mrf.mxu0
        %v1341 = vadd.f32 0.0, %v1340
        %v1342 = vpop.f32.mrf.mxu0
        %1343 = vdwg.mxu0
        %1344 = vmatpush.bf16.msra.mxu0 %v1314
        %1345 = vmatpush.bf16.msra.mxu0 %v1313
        %1346 = vmatpush.bf16.msra.mxu0 %v1312
        %1347 = vmatpush.bf16.msra.mxu0 %v1311
        %1348 = vmatpush.bf16.msra.mxu0 %v1310
        %1349 = vmatpush.bf16.msra.mxu0 %v1309
        %1350 = vmatpush.bf16.msra.mxu0 %v1308
        %1351 = vmatpush.bf16.msra.mxu0 %v1307
        %1352 = vmatmul.bf16.gmra.mxu0 %v1110
        %v1353 = vpop.f32.mrf.mxu0
        %v1354 = vadd.f32 %v1341, %v1353
        %v1355 = vpop.f32.mrf.mxu0
        %1356 = vdwg.mxu0
        %v1357 = vld [vmem:[#allocation13] sm:$0xf]
        %v1358 = vld [vmem:[#allocation13 + $0x4] sm:$0xf]
        %v1359 = vld [vmem:[#allocation13 + $0x8] sm:$0xf]
        %v1360 = vld [vmem:[#allocation13 + $0xc] sm:$0xf]
        %v1361 = vld [vmem:[#allocation13 + $0x10] sm:$0xf]
        %v1362 = vld [vmem:[#allocation13 + $0x14] sm:$0xf]
        %v1363 = vld [vmem:[#allocation13 + $0x18] sm:$0xf]
        %v1364 = vld [vmem:[#allocation13 + $0x1c] sm:$0xf]
        %v1365 = vld [vmem:[#allocation13 + $0x20] sm:$0xf]
        %v1366 = vld [vmem:[#allocation13 + $0x24] sm:$0xf]
        %v1367 = vld [vmem:[#allocation13 + $0x28] sm:$0xf]
        %v1368 = vld [vmem:[#allocation13 + $0x2c] sm:$0xf]
        %v1369 = vld [vmem:[#allocation13 + $0x30] sm:$0xf]
        %v1370 = vld [vmem:[#allocation13 + $0x34] sm:$0xf]
        %v1371 = vld [vmem:[#allocation13 + $0x38] sm:$0xf]
        %v1372 = vld [vmem:[#allocation13 + $0x3c] sm:$0xf]
        %v1373 = vld [vmem:[#allocation13 + $0x40] sm:$0xf]
        %v1374 = vld [vmem:[#allocation13 + $0x44] sm:$0xf]
        %v1375 = vld [vmem:[#allocation13 + $0x48] sm:$0xf]
        %v1376 = vld [vmem:[#allocation13 + $0x4c] sm:$0xf]
        %v1377 = vld [vmem:[#allocation13 + $0x50] sm:$0xf]
        %v1378 = vld [vmem:[#allocation13 + $0x54] sm:$0xf]
        %v1379 = vld [vmem:[#allocation13 + $0x58] sm:$0xf]
        %v1380 = vld [vmem:[#allocation13 + $0x5c] sm:$0xf]
        %v1381 = vld [vmem:[#allocation13 + $0x60] sm:$0xf]
        %v1382 = vld [vmem:[#allocation13 + $0x64] sm:$0xf]
        %v1383 = vld [vmem:[#allocation13 + $0x68] sm:$0xf]
        %v1384 = vld [vmem:[#allocation13 + $0x6c] sm:$0xf]
        %v1385 = vld [vmem:[#allocation13 + $0x70] sm:$0xf]
        %v1386 = vld [vmem:[#allocation13 + $0x74] sm:$0xf]
        %v1387 = vld [vmem:[#allocation13 + $0x78] sm:$0xf]
        %v1388 = vld [vmem:[#allocation13 + $0x7c] sm:$0xf]
        %v1389 = vld [vmem:[#allocation13 + $0x80] sm:$0xf]
        %v1390 = vld [vmem:[#allocation13 + $0x84] sm:$0xf]
        %v1391 = vld [vmem:[#allocation13 + $0x88] sm:$0xf]
        %v1392 = vld [vmem:[#allocation13 + $0x8c] sm:$0xf]
        %v1393 = vld [vmem:[#allocation13 + $0x90] sm:$0xf]
        %v1394 = vld [vmem:[#allocation13 + $0x94] sm:$0xf]
        %v1395 = vld [vmem:[#allocation13 + $0x98] sm:$0xf]
        %v1396 = vld [vmem:[#allocation13 + $0x9c] sm:$0xf]
        %v1397 = vld [vmem:[#allocation13 + $0xa0] sm:$0xf]
        %v1398 = vld [vmem:[#allocation13 + $0xa4] sm:$0xf]
        %v1399 = vld [vmem:[#allocation13 + $0xa8] sm:$0xf]
        %v1400 = vld [vmem:[#allocation13 + $0xac] sm:$0xf]
        %v1401 = vld [vmem:[#allocation13 + $0xb0] sm:$0xf]
        %v1402 = vld [vmem:[#allocation13 + $0xb4] sm:$0xf]
        %v1403 = vld [vmem:[#allocation13 + $0xb8] sm:$0xf]
        %v1404 = vld [vmem:[#allocation13 + $0xbc] sm:$0xf]
        %v1405 = vld [vmem:[#allocation13 + $0xc0] sm:$0xf]
        %v1406 = vld [vmem:[#allocation13 + $0xc4] sm:$0xf]
        %v1407 = vld [vmem:[#allocation13 + $0xc8] sm:$0xf]
        %v1408 = vld [vmem:[#allocation13 + $0xcc] sm:$0xf]
        %v1409 = vld [vmem:[#allocation13 + $0xd0] sm:$0xf]
        %v1410 = vld [vmem:[#allocation13 + $0xd4] sm:$0xf]
        %v1411 = vld [vmem:[#allocation13 + $0xd8] sm:$0xf]
        %v1412 = vld [vmem:[#allocation13 + $0xdc] sm:$0xf]
        %v1413 = vld [vmem:[#allocation13 + $0xe0] sm:$0xf]
        %v1414 = vld [vmem:[#allocation13 + $0xe4] sm:$0xf]
        %v1415 = vld [vmem:[#allocation13 + $0xe8] sm:$0xf]
        %v1416 = vld [vmem:[#allocation13 + $0xec] sm:$0xf]
        %v1417 = vld [vmem:[#allocation13 + $0xf0] sm:$0xf]
        %v1418 = vld [vmem:[#allocation13 + $0xf4] sm:$0xf]
        %v1419 = vld [vmem:[#allocation13 + $0xf8] sm:$0xf]
        %v1420 = vld [vmem:[#allocation13 + $0xfc] sm:$0xf]
        %v1453 = vunpack.c.l.b16 %v1357
        %v1454 = vunpack.c.l.b16 %v1358
        %v1455 = vunpack.c.l.b16 %v1359
        %v1456 = vunpack.c.l.b16 %v1360
        %v1457 = vunpack.c.l.b16 %v1361
        %v1458 = vunpack.c.l.b16 %v1362
        %v1459 = vunpack.c.l.b16 %v1363
        %v1460 = vunpack.c.l.b16 %v1364
        %v1461 = vunpack.c.l.b16 %v1365
        %v1462 = vunpack.c.l.b16 %v1366
        %v1463 = vunpack.c.l.b16 %v1367
        %v1464 = vunpack.c.l.b16 %v1368
        %v1465 = vunpack.c.l.b16 %v1369
        %v1466 = vunpack.c.l.b16 %v1370
        %v1467 = vunpack.c.l.b16 %v1371
        %v1468 = vunpack.c.l.b16 %v1372
        %v1469 = vunpack.c.l.b16 %v1373
        %v1470 = vunpack.c.l.b16 %v1374
        %v1471 = vunpack.c.l.b16 %v1375
        %v1472 = vunpack.c.l.b16 %v1376
        %v1473 = vunpack.c.l.b16 %v1377
        %v1474 = vunpack.c.l.b16 %v1378
        %v1475 = vunpack.c.l.b16 %v1379
        %v1476 = vunpack.c.l.b16 %v1380
        %v1477 = vunpack.c.l.b16 %v1381
        %v1478 = vunpack.c.l.b16 %v1382
        %v1479 = vunpack.c.l.b16 %v1383
        %v1480 = vunpack.c.l.b16 %v1384
        %v1481 = vunpack.c.l.b16 %v1385
        %v1482 = vunpack.c.l.b16 %v1386
        %v1483 = vunpack.c.l.b16 %v1387
        %v1484 = vunpack.c.l.b16 %v1388
        %v1485 = vpack.c.b16 %v1454, %v1453
        %v1486 = vpack.c.b16 %v1456, %v1455
        %v1487 = vpack.c.b16 %v1458, %v1457
        %v1488 = vpack.c.b16 %v1460, %v1459
        %v1489 = vpack.c.b16 %v1462, %v1461
        %v1490 = vpack.c.b16 %v1464, %v1463
        %v1491 = vpack.c.b16 %v1466, %v1465
        %v1492 = vpack.c.b16 %v1468, %v1467
        %v1493 = vpack.c.b16 %v1470, %v1469
        %v1494 = vpack.c.b16 %v1472, %v1471
        %v1495 = vpack.c.b16 %v1474, %v1473
        %v1496 = vpack.c.b16 %v1476, %v1475
        %v1497 = vpack.c.b16 %v1478, %v1477
        %v1498 = vpack.c.b16 %v1480, %v1479
        %v1499 = vpack.c.b16 %v1482, %v1481
        %v1500 = vpack.c.b16 %v1484, %v1483
        %1517 = vmatpush.bf16.msra.mxu0 %v1492
        %1518 = vmatpush.bf16.msra.mxu0 %v1491
        %1519 = vmatpush.bf16.msra.mxu0 %v1490
        %1520 = vmatpush.bf16.msra.mxu0 %v1489
        %1521 = vmatpush.bf16.msra.mxu0 %v1488
        %1522 = vmatpush.bf16.msra.mxu0 %v1487
        %1523 = vmatpush.bf16.msra.mxu0 %v1486
        %1524 = vmatpush.bf16.msra.mxu0 %v1485
        %1525 = vmatmul.bf16.gmra.mxu0 %v1109
        %v1526 = vpop.f32.mrf.mxu0
        %v1527 = vadd.f32 0.0, %v1526
        %v1528 = vpop.f32.mrf.mxu0
        %1529 = vdwg.mxu0
        %1530 = vmatpush.bf16.msra.mxu0 %v1500
        %1531 = vmatpush.bf16.msra.mxu0 %v1499
        %1532 = vmatpush.bf16.msra.mxu0 %v1498
        %1533 = vmatpush.bf16.msra.mxu0 %v1497
        %1534 = vmatpush.bf16.msra.mxu0 %v1496
        %1535 = vmatpush.bf16.msra.mxu0 %v1495
        %1536 = vmatpush.bf16.msra.mxu0 %v1494
        %1537 = vmatpush.bf16.msra.mxu0 %v1493
        %1538 = vmatmul.bf16.gmra.mxu0 %v1110
        %v1539 = vpop.f32.mrf.mxu0
        %v1540 = vadd.f32 %v1527, %v1539
        %v1541 = vpop.f32.mrf.mxu0
        %1542 = vdwg.mxu0
        %v1575 = vunpack.c.l.b16 %v1389
        %v1576 = vunpack.c.l.b16 %v1390
        %v1577 = vunpack.c.l.b16 %v1391
        %v1578 = vunpack.c.l.b16 %v1392
        %v1579 = vunpack.c.l.b16 %v1393
        %v1580 = vunpack.c.l.b16 %v1394
        %v1581 = vunpack.c.l.b16 %v1395
        %v1582 = vunpack.c.l.b16 %v1396
        %v1583 = vunpack.c.l.b16 %v1397
        %v1584 = vunpack.c.l.b16 %v1398
        %v1585 = vunpack.c.l.b16 %v1399
        %v1586 = vunpack.c.l.b16 %v1400
        %v1587 = vunpack.c.l.b16 %v1401
        %v1588 = vunpack.c.l.b16 %v1402
        %v1589 = vunpack.c.l.b16 %v1403
        %v1590 = vunpack.c.l.b16 %v1404
        %v1591 = vunpack.c.l.b16 %v1405
        %v1592 = vunpack.c.l.b16 %v1406
        %v1593 = vunpack.c.l.b16 %v1407
        %v1594 = vunpack.c.l.b16 %v1408
        %v1595 = vunpack.c.l.b16 %v1409
        %v1596 = vunpack.c.l.b16 %v1410
        %v1597 = vunpack.c.l.b16 %v1411
        %v1598 = vunpack.c.l.b16 %v1412
        %v1599 = vunpack.c.l.b16 %v1413
        %v1600 = vunpack.c.l.b16 %v1414
        %v1601 = vunpack.c.l.b16 %v1415
        %v1602 = vunpack.c.l.b16 %v1416
        %v1603 = vunpack.c.l.b16 %v1417
        %v1604 = vunpack.c.l.b16 %v1418
        %v1605 = vunpack.c.l.b16 %v1419
        %v1606 = vunpack.c.l.b16 %v1420
        %v1607 = vpack.c.b16 %v1576, %v1575
        %v1608 = vpack.c.b16 %v1578, %v1577
        %v1609 = vpack.c.b16 %v1580, %v1579
        %v1610 = vpack.c.b16 %v1582, %v1581
        %v1611 = vpack.c.b16 %v1584, %v1583
        %v1612 = vpack.c.b16 %v1586, %v1585
        %v1613 = vpack.c.b16 %v1588, %v1587
        %v1614 = vpack.c.b16 %v1590, %v1589
        %v1615 = vpack.c.b16 %v1592, %v1591
        %v1616 = vpack.c.b16 %v1594, %v1593
        %v1617 = vpack.c.b16 %v1596, %v1595
        %v1618 = vpack.c.b16 %v1598, %v1597
        %v1619 = vpack.c.b16 %v1600, %v1599
        %v1620 = vpack.c.b16 %v1602, %v1601
        %v1621 = vpack.c.b16 %v1604, %v1603
        %v1622 = vpack.c.b16 %v1606, %v1605
        %1639 = vmatpush.bf16.msra.mxu0 %v1614
        %1640 = vmatpush.bf16.msra.mxu0 %v1613
        %1641 = vmatpush.bf16.msra.mxu0 %v1612
        %1642 = vmatpush.bf16.msra.mxu0 %v1611
        %1643 = vmatpush.bf16.msra.mxu0 %v1610
        %1644 = vmatpush.bf16.msra.mxu0 %v1609
        %1645 = vmatpush.bf16.msra.mxu0 %v1608
        %1646 = vmatpush.bf16.msra.mxu0 %v1607
        %1647 = vmatmul.bf16.gmra.mxu0 %v1109
        %v1648 = vpop.f32.mrf.mxu0
        %v1649 = vadd.f32 0.0, %v1648
        %v1650 = vpop.f32.mrf.mxu0
        %1651 = vdwg.mxu0
        %1652 = vmatpush.bf16.msra.mxu0 %v1622
        %1653 = vmatpush.bf16.msra.mxu0 %v1621
        %1654 = vmatpush.bf16.msra.mxu0 %v1620
        %1655 = vmatpush.bf16.msra.mxu0 %v1619
        %1656 = vmatpush.bf16.msra.mxu0 %v1618
        %1657 = vmatpush.bf16.msra.mxu0 %v1617
        %1658 = vmatpush.bf16.msra.mxu0 %v1616
        %1659 = vmatpush.bf16.msra.mxu0 %v1615
        %1660 = vmatmul.bf16.gmra.mxu0 %v1110
        %v1661 = vpop.f32.mrf.mxu0
        %v1662 = vadd.f32 %v1649, %v1661
        %v1663 = vpop.f32.mrf.mxu0
        %1664 = vdwg.mxu0
        %v1665 = vld [vmem:[#allocation14] sm:$0xf]
        %v1666 = vld [vmem:[#allocation14 + $0x4] sm:$0xf]
        %v1667 = vld [vmem:[#allocation14 + $0x8] sm:$0xf]
        %v1668 = vld [vmem:[#allocation14 + $0xc] sm:$0xf]
        %v1669 = vld [vmem:[#allocation14 + $0x10] sm:$0xf]
        %v1670 = vld [vmem:[#allocation14 + $0x14] sm:$0xf]
        %v1671 = vld [vmem:[#allocation14 + $0x18] sm:$0xf]
        %v1672 = vld [vmem:[#allocation14 + $0x1c] sm:$0xf]
        %v1673 = vld [vmem:[#allocation14 + $0x20] sm:$0xf]
        %v1674 = vld [vmem:[#allocation14 + $0x24] sm:$0xf]
        %v1675 = vld [vmem:[#allocation14 + $0x28] sm:$0xf]
        %v1676 = vld [vmem:[#allocation14 + $0x2c] sm:$0xf]
        %v1677 = vld [vmem:[#allocation14 + $0x30] sm:$0xf]
        %v1678 = vld [vmem:[#allocation14 + $0x34] sm:$0xf]
        %v1679 = vld [vmem:[#allocation14 + $0x38] sm:$0xf]
        %v1680 = vld [vmem:[#allocation14 + $0x3c] sm:$0xf]
        %v1681 = vld [vmem:[#allocation14 + $0x40] sm:$0xf]
        %v1682 = vld [vmem:[#allocation14 + $0x44] sm:$0xf]
        %v1683 = vld [vmem:[#allocation14 + $0x48] sm:$0xf]
        %v1684 = vld [vmem:[#allocation14 + $0x4c] sm:$0xf]
        %v1685 = vld [vmem:[#allocation14 + $0x50] sm:$0xf]
        %v1686 = vld [vmem:[#allocation14 + $0x54] sm:$0xf]
        %v1687 = vld [vmem:[#allocation14 + $0x58] sm:$0xf]
        %v1688 = vld [vmem:[#allocation14 + $0x5c] sm:$0xf]
        %v1689 = vld [vmem:[#allocation14 + $0x60] sm:$0xf]
        %v1690 = vld [vmem:[#allocation14 + $0x64] sm:$0xf]
        %v1691 = vld [vmem:[#allocation14 + $0x68] sm:$0xf]
        %v1692 = vld [vmem:[#allocation14 + $0x6c] sm:$0xf]
        %v1693 = vld [vmem:[#allocation14 + $0x70] sm:$0xf]
        %v1694 = vld [vmem:[#allocation14 + $0x74] sm:$0xf]
        %v1695 = vld [vmem:[#allocation14 + $0x78] sm:$0xf]
        %v1696 = vld [vmem:[#allocation14 + $0x7c] sm:$0xf]
        %v1697 = vld [vmem:[#allocation14 + $0x80] sm:$0xf]
        %v1698 = vld [vmem:[#allocation14 + $0x84] sm:$0xf]
        %v1699 = vld [vmem:[#allocation14 + $0x88] sm:$0xf]
        %v1700 = vld [vmem:[#allocation14 + $0x8c] sm:$0xf]
        %v1701 = vld [vmem:[#allocation14 + $0x90] sm:$0xf]
        %v1702 = vld [vmem:[#allocation14 + $0x94] sm:$0xf]
        %v1703 = vld [vmem:[#allocation14 + $0x98] sm:$0xf]
        %v1704 = vld [vmem:[#allocation14 + $0x9c] sm:$0xf]
        %v1705 = vld [vmem:[#allocation14 + $0xa0] sm:$0xf]
        %v1706 = vld [vmem:[#allocation14 + $0xa4] sm:$0xf]
        %v1707 = vld [vmem:[#allocation14 + $0xa8] sm:$0xf]
        %v1708 = vld [vmem:[#allocation14 + $0xac] sm:$0xf]
        %v1709 = vld [vmem:[#allocation14 + $0xb0] sm:$0xf]
        %v1710 = vld [vmem:[#allocation14 + $0xb4] sm:$0xf]
        %v1711 = vld [vmem:[#allocation14 + $0xb8] sm:$0xf]
        %v1712 = vld [vmem:[#allocation14 + $0xbc] sm:$0xf]
        %v1713 = vld [vmem:[#allocation14 + $0xc0] sm:$0xf]
        %v1714 = vld [vmem:[#allocation14 + $0xc4] sm:$0xf]
        %v1715 = vld [vmem:[#allocation14 + $0xc8] sm:$0xf]
        %v1716 = vld [vmem:[#allocation14 + $0xcc] sm:$0xf]
        %v1717 = vld [vmem:[#allocation14 + $0xd0] sm:$0xf]
        %v1718 = vld [vmem:[#allocation14 + $0xd4] sm:$0xf]
        %v1719 = vld [vmem:[#allocation14 + $0xd8] sm:$0xf]
        %v1720 = vld [vmem:[#allocation14 + $0xdc] sm:$0xf]
        %v1721 = vld [vmem:[#allocation14 + $0xe0] sm:$0xf]
        %v1722 = vld [vmem:[#allocation14 + $0xe4] sm:$0xf]
        %v1723 = vld [vmem:[#allocation14 + $0xe8] sm:$0xf]
        %v1724 = vld [vmem:[#allocation14 + $0xec] sm:$0xf]
        %v1725 = vld [vmem:[#allocation14 + $0xf0] sm:$0xf]
        %v1726 = vld [vmem:[#allocation14 + $0xf4] sm:$0xf]
        %v1727 = vld [vmem:[#allocation14 + $0xf8] sm:$0xf]
        %v1728 = vld [vmem:[#allocation14 + $0xfc] sm:$0xf]
        %v1761 = vunpack.c.l.b16 %v1665
        %v1762 = vunpack.c.l.b16 %v1666
        %v1763 = vunpack.c.l.b16 %v1667
        %v1764 = vunpack.c.l.b16 %v1668
        %v1765 = vunpack.c.l.b16 %v1669
        %v1766 = vunpack.c.l.b16 %v1670
        %v1767 = vunpack.c.l.b16 %v1671
        %v1768 = vunpack.c.l.b16 %v1672
        %v1769 = vunpack.c.l.b16 %v1673
        %v1770 = vunpack.c.l.b16 %v1674
        %v1771 = vunpack.c.l.b16 %v1675
        %v1772 = vunpack.c.l.b16 %v1676
        %v1773 = vunpack.c.l.b16 %v1677
        %v1774 = vunpack.c.l.b16 %v1678
        %v1775 = vunpack.c.l.b16 %v1679
        %v1776 = vunpack.c.l.b16 %v1680
        %v1777 = vunpack.c.l.b16 %v1681
        %v1778 = vunpack.c.l.b16 %v1682
        %v1779 = vunpack.c.l.b16 %v1683
        %v1780 = vunpack.c.l.b16 %v1684
        %v1781 = vunpack.c.l.b16 %v1685
        %v1782 = vunpack.c.l.b16 %v1686
        %v1783 = vunpack.c.l.b16 %v1687
        %v1784 = vunpack.c.l.b16 %v1688
        %v1785 = vunpack.c.l.b16 %v1689
        %v1786 = vunpack.c.l.b16 %v1690
        %v1787 = vunpack.c.l.b16 %v1691
        %v1788 = vunpack.c.l.b16 %v1692
        %v1789 = vunpack.c.l.b16 %v1693
        %v1790 = vunpack.c.l.b16 %v1694
        %v1791 = vunpack.c.l.b16 %v1695
        %v1792 = vunpack.c.l.b16 %v1696
        %v1793 = vpack.c.b16 %v1762, %v1761
        %v1794 = vpack.c.b16 %v1764, %v1763
        %v1795 = vpack.c.b16 %v1766, %v1765
        %v1796 = vpack.c.b16 %v1768, %v1767
        %v1797 = vpack.c.b16 %v1770, %v1769
        %v1798 = vpack.c.b16 %v1772, %v1771
        %v1799 = vpack.c.b16 %v1774, %v1773
        %v1800 = vpack.c.b16 %v1776, %v1775
        %v1801 = vpack.c.b16 %v1778, %v1777
        %v1802 = vpack.c.b16 %v1780, %v1779
        %v1803 = vpack.c.b16 %v1782, %v1781
        %v1804 = vpack.c.b16 %v1784, %v1783
        %v1805 = vpack.c.b16 %v1786, %v1785
        %v1806 = vpack.c.b16 %v1788, %v1787
        %v1807 = vpack.c.b16 %v1790, %v1789
        %v1808 = vpack.c.b16 %v1792, %v1791
        %1825 = vmatpush.bf16.msra.mxu0 %v1800
        %1826 = vmatpush.bf16.msra.mxu0 %v1799
        %1827 = vmatpush.bf16.msra.mxu0 %v1798
        %1828 = vmatpush.bf16.msra.mxu0 %v1797
        %1829 = vmatpush.bf16.msra.mxu0 %v1796
        %1830 = vmatpush.bf16.msra.mxu0 %v1795
        %1831 = vmatpush.bf16.msra.mxu0 %v1794
        %1832 = vmatpush.bf16.msra.mxu0 %v1793
        %1833 = vmatmul.bf16.gmra.mxu0 %v1109
        %v1834 = vpop.f32.mrf.mxu0
        %v1835 = vadd.f32 0.0, %v1834
        %v1836 = vpop.f32.mrf.mxu0
        %1837 = vdwg.mxu0
        %1838 = vmatpush.bf16.msra.mxu0 %v1808
        %1839 = vmatpush.bf16.msra.mxu0 %v1807
        %1840 = vmatpush.bf16.msra.mxu0 %v1806
        %1841 = vmatpush.bf16.msra.mxu0 %v1805
        %1842 = vmatpush.bf16.msra.mxu0 %v1804
        %1843 = vmatpush.bf16.msra.mxu0 %v1803
        %1844 = vmatpush.bf16.msra.mxu0 %v1802
        %1845 = vmatpush.bf16.msra.mxu0 %v1801
        %1846 = vmatmul.bf16.gmra.mxu0 %v1110
        %v1847 = vpop.f32.mrf.mxu0
        %v1848 = vadd.f32 %v1835, %v1847
        %v1849 = vpop.f32.mrf.mxu0
        %1850 = vdwg.mxu0
        %v1883 = vunpack.c.l.b16 %v1697
        %v1884 = vunpack.c.l.b16 %v1698
        %v1885 = vunpack.c.l.b16 %v1699
        %v1886 = vunpack.c.l.b16 %v1700
        %v1887 = vunpack.c.l.b16 %v1701
        %v1888 = vunpack.c.l.b16 %v1702
        %v1889 = vunpack.c.l.b16 %v1703
        %v1890 = vunpack.c.l.b16 %v1704
        %v1891 = vunpack.c.l.b16 %v1705
        %v1892 = vunpack.c.l.b16 %v1706
        %v1893 = vunpack.c.l.b16 %v1707
        %v1894 = vunpack.c.l.b16 %v1708
        %v1895 = vunpack.c.l.b16 %v1709
        %v1896 = vunpack.c.l.b16 %v1710
        %v1897 = vunpack.c.l.b16 %v1711
        %v1898 = vunpack.c.l.b16 %v1712
        %v1899 = vunpack.c.l.b16 %v1713
        %v1900 = vunpack.c.l.b16 %v1714
        %v1901 = vunpack.c.l.b16 %v1715
        %v1902 = vunpack.c.l.b16 %v1716
        %v1903 = vunpack.c.l.b16 %v1717
        %v1904 = vunpack.c.l.b16 %v1718
        %v1905 = vunpack.c.l.b16 %v1719
        %v1906 = vunpack.c.l.b16 %v1720
        %v1907 = vunpack.c.l.b16 %v1721
        %v1908 = vunpack.c.l.b16 %v1722
        %v1909 = vunpack.c.l.b16 %v1723
        %v1910 = vunpack.c.l.b16 %v1724
        %v1911 = vunpack.c.l.b16 %v1725
        %v1912 = vunpack.c.l.b16 %v1726
        %v1913 = vunpack.c.l.b16 %v1727
        %v1914 = vunpack.c.l.b16 %v1728
        %v1915 = vpack.c.b16 %v1884, %v1883
        %v1916 = vpack.c.b16 %v1886, %v1885
        %v1917 = vpack.c.b16 %v1888, %v1887
        %v1918 = vpack.c.b16 %v1890, %v1889
        %v1919 = vpack.c.b16 %v1892, %v1891
        %v1920 = vpack.c.b16 %v1894, %v1893
        %v1921 = vpack.c.b16 %v1896, %v1895
        %v1922 = vpack.c.b16 %v1898, %v1897
        %v1923 = vpack.c.b16 %v1900, %v1899
        %v1924 = vpack.c.b16 %v1902, %v1901
        %v1925 = vpack.c.b16 %v1904, %v1903
        %v1926 = vpack.c.b16 %v1906, %v1905
        %v1927 = vpack.c.b16 %v1908, %v1907
        %v1928 = vpack.c.b16 %v1910, %v1909
        %v1929 = vpack.c.b16 %v1912, %v1911
        %v1930 = vpack.c.b16 %v1914, %v1913
        %1947 = vmatpush.bf16.msra.mxu0 %v1922
        %1948 = vmatpush.bf16.msra.mxu0 %v1921
        %1949 = vmatpush.bf16.msra.mxu0 %v1920
        %1950 = vmatpush.bf16.msra.mxu0 %v1919
        %1951 = vmatpush.bf16.msra.mxu0 %v1918
        %1952 = vmatpush.bf16.msra.mxu0 %v1917
        %1953 = vmatpush.bf16.msra.mxu0 %v1916
        %1954 = vmatpush.bf16.msra.mxu0 %v1915
        %1955 = vmatmul.bf16.gmra.mxu0 %v1109
        %v1956 = vpop.f32.mrf.mxu0
        %v1957 = vadd.f32 0.0, %v1956
        %v1958 = vpop.f32.mrf.mxu0
        %1959 = vdwg.mxu0
        %1960 = vmatpush.bf16.msra.mxu0 %v1930
        %1961 = vmatpush.bf16.msra.mxu0 %v1929
        %1962 = vmatpush.bf16.msra.mxu0 %v1928
        %1963 = vmatpush.bf16.msra.mxu0 %v1927
        %1964 = vmatpush.bf16.msra.mxu0 %v1926
        %1965 = vmatpush.bf16.msra.mxu0 %v1925
        %1966 = vmatpush.bf16.msra.mxu0 %v1924
        %1967 = vmatpush.bf16.msra.mxu0 %v1923
        %1968 = vmatmul.bf16.gmra.mxu0 %v1110
        %v1969 = vpop.f32.mrf.mxu0
        %v1970 = vadd.f32 %v1957, %v1969
        %v1971 = vpop.f32.mrf.mxu0
        %1972 = vdwg.mxu0
        %v1973 = vld [vmem:[%s815] sm:$0xff]
        %v1974 = vld [vmem:[%s825] sm:$0xff]
        %v1975 = vmul.f32 %v1232, %v1973
        %v1976 = vmul.f32 %v1354, %v1973
        %1977 = vrot.lane.b32.xlu0 %v1232, 64
        %v1978 = vpop.permute.xlu0 %1977
        %1979 = vrot.lane.b32.xlu0 %v1354, 64
        %v1980 = vpop.permute.xlu0 %1979
        %v1981 = vmul.f32 %v1978, %v1974
        %v1982 = vmul.f32 %v1980, %v1974
        %v1983 = vadd.f32 %v1975, %v1981
        %v1984 = vadd.f32 %v1976, %v1982
        %v1985 = vmul.f32 %v1983, 0.088388346
        %v1986 = vmul.f32 %v1984, 0.088388346
        %v1987 = vmul.f32 %v1540, %v1973
        %v1988 = vmul.f32 %v1662, %v1973
        %1989 = vrot.lane.b32.xlu0 %v1540, 64
        %v1990 = vpop.permute.xlu0 %1989
        %1991 = vrot.lane.b32.xlu0 %v1662, 64
        %v1992 = vpop.permute.xlu0 %1991
        %v1993 = vmul.f32 %v1990, %v1974
        %v1994 = vmul.f32 %v1992, %v1974
        %v1995 = vadd.f32 %v1987, %v1993
        %v1996 = vadd.f32 %v1988, %v1994
        %1997 = vst [vmem:[%s991] sm:$0xff] %v1995
        %1998 = vst [vmem:[%s991 + $0x8] sm:$0xff] %v1996
        %1999 = vst [vmem:[%s998] sm:$0xff] %v1848
        %2000 = vst [vmem:[%s998 + $0x8] sm:$0xff] %v1970
        %v2001 = vpack.c.bf16 %v1985, %v1985
        %v2002 = vpack.c.bf16 %v1986, %v1986
        %v2003 = vpack.c.bf16 %v1995, %v1995
        %v2004 = vpack.c.bf16 %v1996, %v1996
        %v2005 = vpack.c.bf16 %v1848, %v1848
        %v2006 = vpack.c.bf16 %v1970, %v1970
        %v2007 = vld [vmem:[%s855] sm:$0xff]
        %v2008 = vld [vmem:[%s855 + $0x8] sm:$0xff]
        %v2009 = vld [vmem:[%s855 + $0x10] sm:$0xff]
        %v2010 = vld [vmem:[%s855 + $0x18] sm:$0xff]
        %v2011 = vpack.c.bf16 %v2007, %v2007
        %v2012 = vpack.c.bf16 %v2008, %v2008
        %v2013 = vpack.c.bf16 %v2009, %v2009
        %v2014 = vpack.c.bf16 %v2010, %v2010
        %v2015 = vld [vmem:[%s865] sm:$0xff]
        %v2016 = vld [vmem:[%s865 + $0x8] sm:$0xff]
        %v2017 = vld [vmem:[%s865 + $0x10] sm:$0xff]
        %v2018 = vld [vmem:[%s865 + $0x18] sm:$0xff]
        %v2019 = vpack.c.bf16 %v2015, %v2015
        %v2020 = vpack.c.bf16 %v2016, %v2016
        %v2021 = vpack.c.bf16 %v2017, %v2017
        %v2022 = vpack.c.bf16 %v2018, %v2018
        %v2023 = vld [vmem:[%s835] sm:$0xff]
        %v2026 = vunpack.c.l.b16 %v2011
        %v2027 = vunpack.c.l.b16 %v2012
        %v2028 = vpack.c.b16 %v2027, %v2026
        %2030 = vmatpush.bf16.xpose.msra.mxu0 0
        %2031 = vmatpush.bf16.xpose.msra.mxu0 0
        %2032 = vmatpush.bf16.xpose.msra.mxu0 0
        %2033 = vmatpush.bf16.xpose.msra.mxu0 0
        %2034 = vmatpush.bf16.xpose.msra.mxu0 0
        %2035 = vmatpush.bf16.xpose.msra.mxu0 0
        %2036 = vmatpush.bf16.xpose.msra.mxu0 0
        %2037 = vmatpush.bf16.xpose.msra.mxu0 %v2028
        %2038 = vmatmul.bf16.gmra.mxu0 %v2001
        %v2039 = vpop.f32.mrf.mxu0
        %v2040 = vadd.f32 %v2023, %v2039
        %v2041 = vpop.f32.mrf.mxu0
        %2042 = vdwg.mxu0
        %v2045 = vunpack.c.l.b16 %v2013
        %v2046 = vunpack.c.l.b16 %v2014
        %v2047 = vpack.c.b16 %v2046, %v2045
        %2049 = vmatpush.bf16.xpose.msra.mxu0 0
        %2050 = vmatpush.bf16.xpose.msra.mxu0 0
        %2051 = vmatpush.bf16.xpose.msra.mxu0 0
        %2052 = vmatpush.bf16.xpose.msra.mxu0 0
        %2053 = vmatpush.bf16.xpose.msra.mxu0 0
        %2054 = vmatpush.bf16.xpose.msra.mxu0 0
        %2055 = vmatpush.bf16.xpose.msra.mxu0 0
        %2056 = vmatpush.bf16.xpose.msra.mxu0 %v2047
        %2057 = vmatmul.bf16.gmra.mxu0 %v2002
        %v2058 = vpop.f32.mrf.mxu0
        %v2059 = vadd.f32 %v2023, %v2058
        %v2060 = vpop.f32.mrf.mxu0
        %2061 = vdwg.mxu0
        %v2062 = vld [vmem:[%s845] sm:$0xff]
        %2063 = vmatpush.bf16.xpose.msra.mxu0 0
        %2064 = vmatpush.bf16.xpose.msra.mxu0 0
        %2065 = vmatpush.bf16.xpose.msra.mxu0 0
        %2066 = vmatpush.bf16.xpose.msra.mxu0 0
        %2067 = vmatpush.bf16.xpose.msra.mxu0 0
        %2068 = vmatpush.bf16.xpose.msra.mxu0 0
        %2069 = vmatpush.bf16.xpose.msra.mxu0 0
        %2070 = vmatpush.bf16.xpose.msra.mxu0 %v2003
        %2071 = vmatmul.bf16.gmra.mxu0 %v2001
        %v2072 = vpop.f32.mrf.mxu0
        %v2073 = vadd.f32 %v2062, %v2072
        %v2074 = vpop.f32.mrf.mxu0
        %2075 = vdwg.mxu0
        %2076 = vmatpush.bf16.xpose.msra.mxu0 0
        %2077 = vmatpush.bf16.xpose.msra.mxu0 0
        %2078 = vmatpush.bf16.xpose.msra.mxu0 0
        %2079 = vmatpush.bf16.xpose.msra.mxu0 0
        %2080 = vmatpush.bf16.xpose.msra.mxu0 0
        %2081 = vmatpush.bf16.xpose.msra.mxu0 0
        %2082 = vmatpush.bf16.xpose.msra.mxu0 0
        %2083 = vmatpush.bf16.xpose.msra.mxu0 %v2004
        %2084 = vmatmul.bf16.gmra.mxu0 %v2002
        %v2085 = vpop.f32.mrf.mxu0
        %v2086 = vadd.f32 %v2062, %v2085
        %v2087 = vpop.f32.mrf.mxu0
        %2088 = vdwg.mxu0
        %vm2089 = vcmask 130048
        %v2090 = vsel %vm2089, %v2040, -inf
        %2091 = vmax.xlane.f32.xlu0 %v2090
        %v2092 = vpop.xlane.xlu0 %2091
        %v2093 = vsel %vm2089, %v2059, -inf
        %2094 = vmax.xlane.f32.xlu0 %v2093
        %v2095 = vpop.xlane.xlu0 %2094
        %vm2096 = vcmask 64512
        %v2097 = vsel %vm2096, %v2073, -inf
        %2098 = vmax.xlane.f32.xlu0 %v2097
        %v2099 = vpop.xlane.xlu0 %2098
        %v2100 = vsel %vm2096, %v2086, -inf
        %2101 = vmax.xlane.f32.xlu0 %v2100
        %v2102 = vpop.xlane.xlu0 %2101
        %v2103 = vmax.f32 %v2092, %v2099
        %v2104 = vmax.f32 %v2095, %v2102
        %v2105 = vsub.f32 %v2040, %v2103
        %v2106 = vsub.f32 %v2059, %v2104
        %v2107 = vmul.f32 %v2105, 1.442695
        %v2108 = vpow.pop %v2107
        %v2109 = vmul.f32 %v2106, 1.442695
        %v2110 = vpow.pop %v2109
        %v2111 = vsub.f32 %v2073, %v2103
        %v2112 = vsub.f32 %v2086, %v2104
        %v2113 = vmul.f32 %v2111, 1.442695
        %v2114 = vpow.pop %v2113
        %v2115 = vmul.f32 %v2112, 1.442695
        %v2116 = vpow.pop %v2115
        %v2117 = vsel %vm2089, %v2108, 0.0
        %2118 = vadd.xlane.f32.xlu0 %v2117
        %v2119 = vpop.xlane.xlu0 %2118
        %v2120 = vsel %vm2089, %v2110, 0.0
        %2121 = vadd.xlane.f32.xlu0 %v2120
        %v2122 = vpop.xlane.xlu0 %2121
        %v2123 = vsel %vm2096, %v2114, 0.0
        %2124 = vadd.xlane.f32.xlu0 %v2123
        %v2125 = vpop.xlane.xlu0 %2124
        %v2126 = vsel %vm2096, %v2116, 0.0
        %2127 = vadd.xlane.f32.xlu0 %v2126
        %v2128 = vpop.xlane.xlu0 %2127
        %v2129 = vadd.f32 %v2119, %v2125
        %v2130 = vadd.f32 %v2122, %v2128
        %v2131 = vrcp.pop %v2129
        %v2132 = vrcp.pop %v2130
        %v2133 = vpack.c.bf16 %v2108, %v2108
        %v2134 = vpack.c.bf16 %v2110, %v2110
        %v2135 = vpack.c.bf16 %v2114, %v2114
        %v2136 = vpack.c.bf16 %v2116, %v2116
        %v2138 = vsel %vm2096, %v2135, 0
        %vm2140 = vcmask 1043456
        %v2142 = vsel %vm2140, %v2005, 0
        %2144 = vmatpush.bf16.msra.mxu0 0
        %2145 = vmatpush.bf16.msra.mxu0 0
        %2146 = vmatpush.bf16.msra.mxu0 0
        %2147 = vmatpush.bf16.msra.mxu0 0
        %2148 = vmatpush.bf16.msra.mxu0 0
        %2149 = vmatpush.bf16.msra.mxu0 0
        %2150 = vmatpush.bf16.msra.mxu0 0
        %2151 = vmatpush.bf16.msra.mxu0 %v2142
        %2152 = vmatmul.bf16.gmra.mxu0 %v2138
        %v2153 = vpop.f32.mrf.mxu0
        %v2154 = vadd.f32 0.0, %v2153
        %v2155 = vpop.f32.mrf.mxu0
        %2156 = vdwg.mxu0
        %v2158 = vsel %vm2096, %v2136, 0
        %v2161 = vsel %vm2140, %v2006, 0
        %2163 = vmatpush.bf16.msra.mxu0 0
        %2164 = vmatpush.bf16.msra.mxu0 0
        %2165 = vmatpush.bf16.msra.mxu0 0
        %2166 = vmatpush.bf16.msra.mxu0 0
        %2167 = vmatpush.bf16.msra.mxu0 0
        %2168 = vmatpush.bf16.msra.mxu0 0
        %2169 = vmatpush.bf16.msra.mxu0 0
        %2170 = vmatpush.bf16.msra.mxu0 %v2161
        %2171 = vmatmul.bf16.gmra.mxu0 %v2158
        %v2172 = vpop.f32.mrf.mxu0
        %v2173 = vadd.f32 0.0, %v2172
        %v2174 = vpop.f32.mrf.mxu0
        %2175 = vdwg.mxu0
        %v2178 = vunpack.c.l.b16 %v2019
        %v2179 = vunpack.c.l.b16 %v2020
        %v2180 = vpack.c.b16 %v2179, %v2178
        %v2183 = vsel %vm2089, %v2133, 0
        %2185 = vmatpush.bf16.msra.mxu0 0
        %2186 = vmatpush.bf16.msra.mxu0 0
        %2187 = vmatpush.bf16.msra.mxu0 0
        %2188 = vmatpush.bf16.msra.mxu0 0
        %2189 = vmatpush.bf16.msra.mxu0 0
        %2190 = vmatpush.bf16.msra.mxu0 0
        %2191 = vmatpush.bf16.msra.mxu0 0
        %2192 = vmatpush.bf16.msra.mxu0 %v2180
        %2193 = vmatmul.bf16.gmra.mxu0 %v2183
        %v2194 = vpop.f32.mrf.mxu0
        %v2195 = vadd.f32 %v2154, %v2194
        %v2196 = vpop.f32.mrf.mxu0
        %2197 = vdwg.mxu0
        %v2200 = vunpack.c.l.b16 %v2021
        %v2201 = vunpack.c.l.b16 %v2022
        %v2202 = vpack.c.b16 %v2201, %v2200
        %v2205 = vsel %vm2089, %v2134, 0
        %2207 = vmatpush.bf16.msra.mxu0 0
        %2208 = vmatpush.bf16.msra.mxu0 0
        %2209 = vmatpush.bf16.msra.mxu0 0
        %2210 = vmatpush.bf16.msra.mxu0 0
        %2211 = vmatpush.bf16.msra.mxu0 0
        %2212 = vmatpush.bf16.msra.mxu0 0
        %2213 = vmatpush.bf16.msra.mxu0 0
        %2214 = vmatpush.bf16.msra.mxu0 %v2202
        %2215 = vmatmul.bf16.gmra.mxu0 %v2205
        %v2216 = vpop.f32.mrf.mxu0
        %v2217 = vadd.f32 %v2173, %v2216
        %v2218 = vpop.f32.mrf.mxu0
        %2219 = vdwg.mxu0
        %v2220 = vmul.f32 %v2195, %v2131
        %v2221 = vmul.f32 %v2217, %v2132
        %v2222 = vpack.c.bf16 %v2220, %v2220
        %v2223 = vpack.c.bf16 %v2221, %v2221
        %v2224 = vld [vmem:[#allocation16] sm:$0xff]
        %v2225 = vld [vmem:[#allocation16 + $0x8] sm:$0xff]
        %v2226 = vld [vmem:[#allocation16 + $0x10] sm:$0xff]
        %v2227 = vld [vmem:[#allocation16 + $0x18] sm:$0xff]
        %v2228 = vld [vmem:[#allocation16 + $0x20] sm:$0xff]
        %v2229 = vld [vmem:[#allocation16 + $0x28] sm:$0xff]
        %v2230 = vld [vmem:[#allocation16 + $0x30] sm:$0xff]
        %v2231 = vld [vmem:[#allocation16 + $0x38] sm:$0xff]
        %v2232 = vld [vmem:[#allocation16 + $0x40] sm:$0xff]
        %v2233 = vld [vmem:[#allocation16 + $0x48] sm:$0xff]
        %v2234 = vld [vmem:[#allocation16 + $0x50] sm:$0xff]
        %v2235 = vld [vmem:[#allocation16 + $0x58] sm:$0xff]
        %v2236 = vld [vmem:[#allocation16 + $0x60] sm:$0xff]
        %v2237 = vld [vmem:[#allocation16 + $0x68] sm:$0xff]
        %v2238 = vld [vmem:[#allocation16 + $0x70] sm:$0xff]
        %v2239 = vld [vmem:[#allocation16 + $0x78] sm:$0xff]
        %v2240 = vld [vmem:[#allocation16 + $0x80] sm:$0xff]
        %v2241 = vld [vmem:[#allocation16 + $0x88] sm:$0xff]
        %v2242 = vld [vmem:[#allocation16 + $0x90] sm:$0xff]
        %v2243 = vld [vmem:[#allocation16 + $0x98] sm:$0xff]
        %v2244 = vld [vmem:[#allocation16 + $0xa0] sm:$0xff]
        %v2245 = vld [vmem:[#allocation16 + $0xa8] sm:$0xff]
        %v2246 = vld [vmem:[#allocation16 + $0xb0] sm:$0xff]
        %v2247 = vld [vmem:[#allocation16 + $0xb8] sm:$0xff]
        %v2248 = vld [vmem:[#allocation16 + $0xc0] sm:$0xff]
        %v2249 = vld [vmem:[#allocation16 + $0xc8] sm:$0xff]
        %v2250 = vld [vmem:[#allocation16 + $0xd0] sm:$0xff]
        %v2251 = vld [vmem:[#allocation16 + $0xd8] sm:$0xff]
        %v2252 = vld [vmem:[#allocation16 + $0xe0] sm:$0xff]
        %v2253 = vld [vmem:[#allocation16 + $0xe8] sm:$0xff]
        %v2254 = vld [vmem:[#allocation16 + $0xf0] sm:$0xff]
        %v2255 = vld [vmem:[#allocation16 + $0xf8] sm:$0xff]
        %v2272 = vunpack.c.l.b16 %v2224
        %v2273 = vunpack.c.h.b16 %v2224
        %v2274 = vunpack.c.l.b16 %v2225
        %v2275 = vunpack.c.h.b16 %v2225
        %v2276 = vunpack.c.l.b16 %v2226
        %v2277 = vunpack.c.h.b16 %v2226
        %v2278 = vunpack.c.l.b16 %v2227
        %v2279 = vunpack.c.h.b16 %v2227
        %v2280 = vunpack.c.l.b16 %v2228
        %v2281 = vunpack.c.h.b16 %v2228
        %v2282 = vunpack.c.l.b16 %v2229
        %v2283 = vunpack.c.h.b16 %v2229
        %v2284 = vunpack.c.l.b16 %v2230
        %v2285 = vunpack.c.h.b16 %v2230
        %v2286 = vunpack.c.l.b16 %v2231
        %v2287 = vunpack.c.h.b16 %v2231
        %v2288 = vunpack.c.l.b16 %v2232
        %v2289 = vunpack.c.h.b16 %v2232
        %v2290 = vunpack.c.l.b16 %v2233
        %v2291 = vunpack.c.h.b16 %v2233
        %v2292 = vunpack.c.l.b16 %v2234
        %v2293 = vunpack.c.h.b16 %v2234
        %v2294 = vunpack.c.l.b16 %v2235
        %v2295 = vunpack.c.h.b16 %v2235
        %v2296 = vunpack.c.l.b16 %v2236
        %v2297 = vunpack.c.h.b16 %v2236
        %v2298 = vunpack.c.l.b16 %v2237
        %v2299 = vunpack.c.h.b16 %v2237
        %v2300 = vunpack.c.l.b16 %v2238
        %v2301 = vunpack.c.h.b16 %v2238
        %v2302 = vunpack.c.l.b16 %v2239
        %v2303 = vunpack.c.h.b16 %v2239
        %v2304 = vpack.c.b16 %v2274, %v2272
        %v2305 = vpack.c.b16 %v2275, %v2273
        %v2306 = vpack.c.b16 %v2278, %v2276
        %v2307 = vpack.c.b16 %v2279, %v2277
        %v2308 = vpack.c.b16 %v2282, %v2280
        %v2309 = vpack.c.b16 %v2283, %v2281
        %v2310 = vpack.c.b16 %v2286, %v2284
        %v2311 = vpack.c.b16 %v2287, %v2285
        %v2312 = vpack.c.b16 %v2290, %v2288
        %v2313 = vpack.c.b16 %v2291, %v2289
        %v2314 = vpack.c.b16 %v2294, %v2292
        %v2315 = vpack.c.b16 %v2295, %v2293
        %v2316 = vpack.c.b16 %v2298, %v2296
        %v2317 = vpack.c.b16 %v2299, %v2297
        %v2318 = vpack.c.b16 %v2302, %v2300
        %v2319 = vpack.c.b16 %v2303, %v2301
        %2336 = vmatpush.bf16.msra.mxu0 %v2318
        %2337 = vmatpush.bf16.msra.mxu0 %v2316
        %2338 = vmatpush.bf16.msra.mxu0 %v2314
        %2339 = vmatpush.bf16.msra.mxu0 %v2312
        %2340 = vmatpush.bf16.msra.mxu0 %v2310
        %2341 = vmatpush.bf16.msra.mxu0 %v2308
        %2342 = vmatpush.bf16.msra.mxu0 %v2306
        %2343 = vmatpush.bf16.msra.mxu0 %v2304
        %2344 = vmatmul.bf16.gmra.mxu0 %v2222
        %v2345 = vpop.f32.mrf.mxu0
        %v2346 = vadd.f32 0.0, %v2345
        %v2347 = vpop.f32.mrf.mxu0
        %2348 = vdwg.mxu0
        %2349 = vmatpush.bf16.msra.mxu0 %v2319
        %2350 = vmatpush.bf16.msra.mxu0 %v2317
        %2351 = vmatpush.bf16.msra.mxu0 %v2315
        %2352 = vmatpush.bf16.msra.mxu0 %v2313
        %2353 = vmatpush.bf16.msra.mxu0 %v2311
        %2354 = vmatpush.bf16.msra.mxu0 %v2309
        %2355 = vmatpush.bf16.msra.mxu0 %v2307
        %2356 = vmatpush.bf16.msra.mxu0 %v2305
        %2357 = vmatmul.bf16.gmra.mxu0 %v2222
        %v2358 = vpop.f32.mrf.mxu0
        %v2359 = vadd.f32 0.0, %v2358
        %v2360 = vpop.f32.mrf.mxu0
        %2361 = vdwg.mxu0
        %v2378 = vunpack.c.l.b16 %v2240
        %v2379 = vunpack.c.h.b16 %v2240
        %v2380 = vunpack.c.l.b16 %v2241
        %v2381 = vunpack.c.h.b16 %v2241
        %v2382 = vunpack.c.l.b16 %v2242
        %v2383 = vunpack.c.h.b16 %v2242
        %v2384 = vunpack.c.l.b16 %v2243
        %v2385 = vunpack.c.h.b16 %v2243
        %v2386 = vunpack.c.l.b16 %v2244
        %v2387 = vunpack.c.h.b16 %v2244
        %v2388 = vunpack.c.l.b16 %v2245
        %v2389 = vunpack.c.h.b16 %v2245
        %v2390 = vunpack.c.l.b16 %v2246
        %v2391 = vunpack.c.h.b16 %v2246
        %v2392 = vunpack.c.l.b16 %v2247
        %v2393 = vunpack.c.h.b16 %v2247
        %v2394 = vunpack.c.l.b16 %v2248
        %v2395 = vunpack.c.h.b16 %v2248
        %v2396 = vunpack.c.l.b16 %v2249
        %v2397 = vunpack.c.h.b16 %v2249
        %v2398 = vunpack.c.l.b16 %v2250
        %v2399 = vunpack.c.h.b16 %v2250
        %v2400 = vunpack.c.l.b16 %v2251
        %v2401 = vunpack.c.h.b16 %v2251
        %v2402 = vunpack.c.l.b16 %v2252
        %v2403 = vunpack.c.h.b16 %v2252
        %v2404 = vunpack.c.l.b16 %v2253
        %v2405 = vunpack.c.h.b16 %v2253
        %v2406 = vunpack.c.l.b16 %v2254
        %v2407 = vunpack.c.h.b16 %v2254
        %v2408 = vunpack.c.l.b16 %v2255
        %v2409 = vunpack.c.h.b16 %v2255
        %v2410 = vpack.c.b16 %v2380, %v2378
        %v2411 = vpack.c.b16 %v2381, %v2379
        %v2412 = vpack.c.b16 %v2384, %v2382
        %v2413 = vpack.c.b16 %v2385, %v2383
        %v2414 = vpack.c.b16 %v2388, %v2386
        %v2415 = vpack.c.b16 %v2389, %v2387
        %v2416 = vpack.c.b16 %v2392, %v2390
        %v2417 = vpack.c.b16 %v2393, %v2391
        %v2418 = vpack.c.b16 %v2396, %v2394
        %v2419 = vpack.c.b16 %v2397, %v2395
        %v2420 = vpack.c.b16 %v2400, %v2398
        %v2421 = vpack.c.b16 %v2401, %v2399
        %v2422 = vpack.c.b16 %v2404, %v2402
        %v2423 = vpack.c.b16 %v2405, %v2403
        %v2424 = vpack.c.b16 %v2408, %v2406
        %v2425 = vpack.c.b16 %v2409, %v2407
        %2442 = vmatpush.bf16.msra.mxu0 %v2424
        %2443 = vmatpush.bf16.msra.mxu0 %v2422
        %2444 = vmatpush.bf16.msra.mxu0 %v2420
        %2445 = vmatpush.bf16.msra.mxu0 %v2418
        %2446 = vmatpush.bf16.msra.mxu0 %v2416
        %2447 = vmatpush.bf16.msra.mxu0 %v2414
        %2448 = vmatpush.bf16.msra.mxu0 %v2412
        %2449 = vmatpush.bf16.msra.mxu0 %v2410
        %2450 = vmatmul.bf16.gmra.mxu0 %v2223
        %v2451 = vpop.f32.mrf.mxu0
        %v2452 = vadd.f32 0.0, %v2451
        %v2453 = vpop.f32.mrf.mxu0
        %2454 = vdwg.mxu0
        %2455 = vmatpush.bf16.msra.mxu0 %v2425
        %2456 = vmatpush.bf16.msra.mxu0 %v2423
        %2457 = vmatpush.bf16.msra.mxu0 %v2421
        %2458 = vmatpush.bf16.msra.mxu0 %v2419
        %2459 = vmatpush.bf16.msra.mxu0 %v2417
        %2460 = vmatpush.bf16.msra.mxu0 %v2415
        %2461 = vmatpush.bf16.msra.mxu0 %v2413
        %2462 = vmatpush.bf16.msra.mxu0 %v2411
        %2463 = vmatmul.bf16.gmra.mxu0 %v2223
        %v2464 = vpop.f32.mrf.mxu0
        %v2465 = vadd.f32 0.0, %v2464
        %v2466 = vpop.f32.mrf.mxu0
        %2467 = vdwg.mxu0
        %v2468 = vadd.f32 %v2346, %v2452
        %v2469 = vadd.f32 %v2359, %v2465
        %v2470 = vadd.f32 %v1005, %v2468
        %v2471 = vadd.f32 %v1006, %v2469
        %v2472 = vmul.f32 %v2470, %v2470
        %v2473 = vmul.f32 %v2471, %v2471
        %v2474 = vadd.f32 %v2472, %v2473
        %2475 = vadd.xlane.f32.xlu0 %v2474
        %v2476 = vpop.xlane.xlu0 %2475
        %v2477 = vmul.f32 %v2476, %v1018
        %v2478 = vadd.f32 %v2477, 1e-05
        %v2479 = vrsqrt.pop %v2478
        %v2480 = vmul.f32 %v2479, %v2478
        %v2481 = vmul.f32 %v2480, %v2479
        %v2482 = vmul.f32 0.5, %v2481
        %v2483 = vsub.f32 1.5, %v2482
        %v2484 = vmul.f32 %v2479, %v2483
        %vm2485 = vweird.f32 %v2478
        %vm2486 = vweird.f32 %v2479
        %vm2487 = vmor %vm2485, %vm2486
        %v2488 = vsel %vm2487, %v2479, %v2484
        %v2489 = vmul.f32 %v2470, %v2488
        %v2490 = vmul.f32 %v2471, %v2488
        %v2491 = vld [vmem:[#allocation23] sm:$0x3]
        %v2493 = vperm.slane %v2491, 0
        %v2494 = vperm.slane %v2491, 1
        %v2497 = vmul.f32 %v2489, %v2493
        %v2498 = vmul.f32 %v2490, %v2494
        %v2499 = vpack.c.bf16 %v2497, %v2497
        %v2500 = vpack.c.bf16 %v2498, %v2498
        %v2501 = vld [vmem:[#allocation17] sm:$0xff]
        %v2502 = vld [vmem:[#allocation17 + $0x8] sm:$0xff]
        %v2503 = vld [vmem:[#allocation17 + $0x10] sm:$0xff]
        %v2504 = vld [vmem:[#allocation17 + $0x18] sm:$0xff]
        %v2505 = vld [vmem:[#allocation17 + $0x20] sm:$0xff]
        %v2506 = vld [vmem:[#allocation17 + $0x28] sm:$0xff]
        %v2507 = vld [vmem:[#allocation17 + $0x30] sm:$0xff]
        %v2508 = vld [vmem:[#allocation17 + $0x38] sm:$0xff]
        %v2509 = vld [vmem:[#allocation17 + $0x40] sm:$0xff]
        %v2510 = vld [vmem:[#allocation17 + $0x48] sm:$0xff]
        %v2511 = vld [vmem:[#allocation17 + $0x50] sm:$0xff]
        %v2512 = vld [vmem:[#allocation17 + $0x58] sm:$0xff]
        %v2513 = vld [vmem:[#allocation17 + $0x60] sm:$0xff]
        %v2514 = vld [vmem:[#allocation17 + $0x68] sm:$0xff]
        %v2515 = vld [vmem:[#allocation17 + $0x70] sm:$0xff]
        %v2516 = vld [vmem:[#allocation17 + $0x78] sm:$0xff]
        %v2517 = vld [vmem:[#allocation17 + $0x80] sm:$0xff]
        %v2518 = vld [vmem:[#allocation17 + $0x88] sm:$0xff]
        %v2519 = vld [vmem:[#allocation17 + $0x90] sm:$0xff]
        %v2520 = vld [vmem:[#allocation17 + $0x98] sm:$0xff]
        %v2521 = vld [vmem:[#allocation17 + $0xa0] sm:$0xff]
        %v2522 = vld [vmem:[#allocation17 + $0xa8] sm:$0xff]
        %v2523 = vld [vmem:[#allocation17 + $0xb0] sm:$0xff]
        %v2524 = vld [vmem:[#allocation17 + $0xb8] sm:$0xff]
        %v2525 = vld [vmem:[#allocation17 + $0xc0] sm:$0xff]
        %v2526 = vld [vmem:[#allocation17 + $0xc8] sm:$0xff]
        %v2527 = vld [vmem:[#allocation17 + $0xd0] sm:$0xff]
        %v2528 = vld [vmem:[#allocation17 + $0xd8] sm:$0xff]
        %v2529 = vld [vmem:[#allocation17 + $0xe0] sm:$0xff]
        %v2530 = vld [vmem:[#allocation17 + $0xe8] sm:$0xff]
        %v2531 = vld [vmem:[#allocation17 + $0xf0] sm:$0xff]
        %v2532 = vld [vmem:[#allocation17 + $0xf8] sm:$0xff]
        %v2533 = vld [vmem:[#allocation17 + $0x100] sm:$0xff]
        %v2534 = vld [vmem:[#allocation17 + $0x108] sm:$0xff]
        %v2535 = vld [vmem:[#allocation17 + $0x110] sm:$0xff]
        %v2536 = vld [vmem:[#allocation17 + $0x118] sm:$0xff]
        %v2537 = vld [vmem:[#allocation17 + $0x120] sm:$0xff]
        %v2538 = vld [vmem:[#allocation17 + $0x128] sm:$0xff]
        %v2539 = vld [vmem:[#allocation17 + $0x130] sm:$0xff]
        %v2540 = vld [vmem:[#allocation17 + $0x138] sm:$0xff]
        %v2541 = vld [vmem:[#allocation17 + $0x140] sm:$0xff]
        %v2542 = vld [vmem:[#allocation17 + $0x148] sm:$0xff]
        %v2543 = vld [vmem:[#allocation17 + $0x150] sm:$0xff]
        %v2544 = vld [vmem:[#allocation17 + $0x158] sm:$0xff]
        %v2545 = vld [vmem:[#allocation17 + $0x160] sm:$0xff]
        %v2546 = vld [vmem:[#allocation17 + $0x168] sm:$0xff]
        %v2547 = vld [vmem:[#allocation17 + $0x170] sm:$0xff]
        %v2548 = vld [vmem:[#allocation17 + $0x178] sm:$0xff]
        %v2549 = vld [vmem:[#allocation17 + $0x180] sm:$0xff]
        %v2550 = vld [vmem:[#allocation17 + $0x188] sm:$0xff]
        %v2551 = vld [vmem:[#allocation17 + $0x190] sm:$0xff]
        %v2552 = vld [vmem:[#allocation17 + $0x198] sm:$0xff]
        %v2553 = vld [vmem:[#allocation17 + $0x1a0] sm:$0xff]
        %v2554 = vld [vmem:[#allocation17 + $0x1a8] sm:$0xff]
        %v2555 = vld [vmem:[#allocation17 + $0x1b0] sm:$0xff]
        %v2556 = vld [vmem:[#allocation17 + $0x1b8] sm:$0xff]
        %v2557 = vld [vmem:[#allocation17 + $0x1c0] sm:$0xff]
        %v2558 = vld [vmem:[#allocation17 + $0x1c8] sm:$0xff]
        %v2559 = vld [vmem:[#allocation17 + $0x1d0] sm:$0xff]
        %v2560 = vld [vmem:[#allocation17 + $0x1d8] sm:$0xff]
        %v2561 = vld [vmem:[#allocation17 + $0x1e0] sm:$0xff]
        %v2562 = vld [vmem:[#allocation17 + $0x1e8] sm:$0xff]
        %v2563 = vld [vmem:[#allocation17 + $0x1f0] sm:$0xff]
        %v2564 = vld [vmem:[#allocation17 + $0x1f8] sm:$0xff]
        %v2629 = vunpack.c.l.b16 %v2501
        %v2630 = vunpack.c.h.b16 %v2501
        %v2631 = vunpack.c.l.b16 %v2502
        %v2632 = vunpack.c.h.b16 %v2502
        %v2633 = vunpack.c.l.b16 %v2503
        %v2634 = vunpack.c.h.b16 %v2503
        %v2635 = vunpack.c.l.b16 %v2504
        %v2636 = vunpack.c.h.b16 %v2504
        %v2637 = vunpack.c.l.b16 %v2505
        %v2638 = vunpack.c.h.b16 %v2505
        %v2639 = vunpack.c.l.b16 %v2506
        %v2640 = vunpack.c.h.b16 %v2506
        %v2641 = vunpack.c.l.b16 %v2507
        %v2642 = vunpack.c.h.b16 %v2507
        %v2643 = vunpack.c.l.b16 %v2508
        %v2644 = vunpack.c.h.b16 %v2508
        %v2645 = vunpack.c.l.b16 %v2509
        %v2646 = vunpack.c.h.b16 %v2509
        %v2647 = vunpack.c.l.b16 %v2510
        %v2648 = vunpack.c.h.b16 %v2510
        %v2649 = vunpack.c.l.b16 %v2511
        %v2650 = vunpack.c.h.b16 %v2511
        %v2651 = vunpack.c.l.b16 %v2512
        %v2652 = vunpack.c.h.b16 %v2512
        %v2653 = vunpack.c.l.b16 %v2513
        %v2654 = vunpack.c.h.b16 %v2513
        %v2655 = vunpack.c.l.b16 %v2514
        %v2656 = vunpack.c.h.b16 %v2514
        %v2657 = vunpack.c.l.b16 %v2515
        %v2658 = vunpack.c.h.b16 %v2515
        %v2659 = vunpack.c.l.b16 %v2516
        %v2660 = vunpack.c.h.b16 %v2516
        %v2661 = vunpack.c.l.b16 %v2517
        %v2662 = vunpack.c.h.b16 %v2517
        %v2663 = vunpack.c.l.b16 %v2518
        %v2664 = vunpack.c.h.b16 %v2518
        %v2665 = vunpack.c.l.b16 %v2519
        %v2666 = vunpack.c.h.b16 %v2519
        %v2667 = vunpack.c.l.b16 %v2520
        %v2668 = vunpack.c.h.b16 %v2520
        %v2669 = vunpack.c.l.b16 %v2521
        %v2670 = vunpack.c.h.b16 %v2521
        %v2671 = vunpack.c.l.b16 %v2522
        %v2672 = vunpack.c.h.b16 %v2522
        %v2673 = vunpack.c.l.b16 %v2523
        %v2674 = vunpack.c.h.b16 %v2523
        %v2675 = vunpack.c.l.b16 %v2524
        %v2676 = vunpack.c.h.b16 %v2524
        %v2677 = vunpack.c.l.b16 %v2525
        %v2678 = vunpack.c.h.b16 %v2525
        %v2679 = vunpack.c.l.b16 %v2526
        %v2680 = vunpack.c.h.b16 %v2526
        %v2681 = vunpack.c.l.b16 %v2527
        %v2682 = vunpack.c.h.b16 %v2527
        %v2683 = vunpack.c.l.b16 %v2528
        %v2684 = vunpack.c.h.b16 %v2528
        %v2685 = vunpack.c.l.b16 %v2529
        %v2686 = vunpack.c.h.b16 %v2529
        %v2687 = vunpack.c.l.b16 %v2530
        %v2688 = vunpack.c.h.b16 %v2530
        %v2689 = vunpack.c.l.b16 %v2531
        %v2690 = vunpack.c.h.b16 %v2531
        %v2691 = vunpack.c.l.b16 %v2532
        %v2692 = vunpack.c.h.b16 %v2532
        %v2693 = vunpack.c.l.b16 %v2533
        %v2694 = vunpack.c.h.b16 %v2533
        %v2695 = vunpack.c.l.b16 %v2534
        %v2696 = vunpack.c.h.b16 %v2534
        %v2697 = vunpack.c.l.b16 %v2535
        %v2698 = vunpack.c.h.b16 %v2535
        %v2699 = vunpack.c.l.b16 %v2536
        %v2700 = vunpack.c.h.b16 %v2536
        %v2701 = vunpack.c.l.b16 %v2537
        %v2702 = vunpack.c.h.b16 %v2537
        %v2703 = vunpack.c.l.b16 %v2538
        %v2704 = vunpack.c.h.b16 %v2538
        %v2705 = vunpack.c.l.b16 %v2539
        %v2706 = vunpack.c.h.b16 %v2539
        %v2707 = vunpack.c.l.b16 %v2540
        %v2708 = vunpack.c.h.b16 %v2540
        %v2709 = vunpack.c.l.b16 %v2541
        %v2710 = vunpack.c.h.b16 %v2541
        %v2711 = vunpack.c.l.b16 %v2542
        %v2712 = vunpack.c.h.b16 %v2542
        %v2713 = vunpack.c.l.b16 %v2543
        %v2714 = vunpack.c.h.b16 %v2543
        %v2715 = vunpack.c.l.b16 %v2544
        %v2716 = vunpack.c.h.b16 %v2544
        %v2717 = vunpack.c.l.b16 %v2545
        %v2718 = vunpack.c.h.b16 %v2545
        %v2719 = vunpack.c.l.b16 %v2546
        %v2720 = vunpack.c.h.b16 %v2546
        %v2721 = vunpack.c.l.b16 %v2547
        %v2722 = vunpack.c.h.b16 %v2547
        %v2723 = vunpack.c.l.b16 %v2548
        %v2724 = vunpack.c.h.b16 %v2548
        %v2725 = vunpack.c.l.b16 %v2549
        %v2726 = vunpack.c.h.b16 %v2549
        %v2727 = vunpack.c.l.b16 %v2550
        %v2728 = vunpack.c.h.b16 %v2550
        %v2729 = vunpack.c.l.b16 %v2551
        %v2730 = vunpack.c.h.b16 %v2551
        %v2731 = vunpack.c.l.b16 %v2552
        %v2732 = vunpack.c.h.b16 %v2552
        %v2733 = vunpack.c.l.b16 %v2553
        %v2734 = vunpack.c.h.b16 %v2553
        %v2735 = vunpack.c.l.b16 %v2554
        %v2736 = vunpack.c.h.b16 %v2554
        %v2737 = vunpack.c.l.b16 %v2555
        %v2738 = vunpack.c.h.b16 %v2555
        %v2739 = vunpack.c.l.b16 %v2556
        %v2740 = vunpack.c.h.b16 %v2556
        %v2741 = vunpack.c.l.b16 %v2557
        %v2742 = vunpack.c.h.b16 %v2557
        %v2743 = vunpack.c.l.b16 %v2558
        %v2744 = vunpack.c.h.b16 %v2558
        %v2745 = vunpack.c.l.b16 %v2559
        %v2746 = vunpack.c.h.b16 %v2559
        %v2747 = vunpack.c.l.b16 %v2560
        %v2748 = vunpack.c.h.b16 %v2560
        %v2749 = vunpack.c.l.b16 %v2561
        %v2750 = vunpack.c.h.b16 %v2561
        %v2751 = vunpack.c.l.b16 %v2562
        %v2752 = vunpack.c.h.b16 %v2562
        %v2753 = vunpack.c.l.b16 %v2563
        %v2754 = vunpack.c.h.b16 %v2563
        %v2755 = vunpack.c.l.b16 %v2564
        %v2756 = vunpack.c.h.b16 %v2564
        %v2757 = vpack.c.b16 %v2633, %v2629
        %v2758 = vpack.c.b16 %v2634, %v2630
        %v2759 = vpack.c.b16 %v2635, %v2631
        %v2760 = vpack.c.b16 %v2636, %v2632
        %v2761 = vpack.c.b16 %v2641, %v2637
        %v2762 = vpack.c.b16 %v2642, %v2638
        %v2763 = vpack.c.b16 %v2643, %v2639
        %v2764 = vpack.c.b16 %v2644, %v2640
        %v2765 = vpack.c.b16 %v2649, %v2645
        %v2766 = vpack.c.b16 %v2650, %v2646
        %v2767 = vpack.c.b16 %v2651, %v2647
        %v2768 = vpack.c.b16 %v2652, %v2648
        %v2769 = vpack.c.b16 %v2657, %v2653
        %v2770 = vpack.c.b16 %v2658, %v2654
        %v2771 = vpack.c.b16 %v2659, %v2655
        %v2772 = vpack.c.b16 %v2660, %v2656
        %v2773 = vpack.c.b16 %v2665, %v2661
        %v2774 = vpack.c.b16 %v2666, %v2662
        %v2775 = vpack.c.b16 %v2667, %v2663
        %v2776 = vpack.c.b16 %v2668, %v2664
        %v2777 = vpack.c.b16 %v2673, %v2669
        %v2778 = vpack.c.b16 %v2674, %v2670
        %v2779 = vpack.c.b16 %v2675, %v2671
        %v2780 = vpack.c.b16 %v2676, %v2672
        %v2781 = vpack.c.b16 %v2681, %v2677
        %v2782 = vpack.c.b16 %v2682, %v2678
        %v2783 = vpack.c.b16 %v2683, %v2679
        %v2784 = vpack.c.b16 %v2684, %v2680
        %v2785 = vpack.c.b16 %v2689, %v2685
        %v2786 = vpack.c.b16 %v2690, %v2686
        %v2787 = vpack.c.b16 %v2691, %v2687
        %v2788 = vpack.c.b16 %v2692, %v2688
        %v2789 = vpack.c.b16 %v2697, %v2693
        %v2790 = vpack.c.b16 %v2698, %v2694
        %v2791 = vpack.c.b16 %v2699, %v2695
        %v2792 = vpack.c.b16 %v2700, %v2696
        %v2793 = vpack.c.b16 %v2705, %v2701
        %v2794 = vpack.c.b16 %v2706, %v2702
        %v2795 = vpack.c.b16 %v2707, %v2703
        %v2796 = vpack.c.b16 %v2708, %v2704
        %v2797 = vpack.c.b16 %v2713, %v2709
        %v2798 = vpack.c.b16 %v2714, %v2710
        %v2799 = vpack.c.b16 %v2715, %v2711
        %v2800 = vpack.c.b16 %v2716, %v2712
        %v2801 = vpack.c.b16 %v2721, %v2717
        %v2802 = vpack.c.b16 %v2722, %v2718
        %v2803 = vpack.c.b16 %v2723, %v2719
        %v2804 = vpack.c.b16 %v2724, %v2720
        %v2805 = vpack.c.b16 %v2729, %v2725
        %v2806 = vpack.c.b16 %v2730, %v2726
        %v2807 = vpack.c.b16 %v2731, %v2727
        %v2808 = vpack.c.b16 %v2732, %v2728
        %v2809 = vpack.c.b16 %v2737, %v2733
        %v2810 = vpack.c.b16 %v2738, %v2734
        %v2811 = vpack.c.b16 %v2739, %v2735
        %v2812 = vpack.c.b16 %v2740, %v2736
        %v2813 = vpack.c.b16 %v2745, %v2741
        %v2814 = vpack.c.b16 %v2746, %v2742
        %v2815 = vpack.c.b16 %v2747, %v2743
        %v2816 = vpack.c.b16 %v2748, %v2744
        %v2817 = vpack.c.b16 %v2753, %v2749
        %v2818 = vpack.c.b16 %v2754, %v2750
        %v2819 = vpack.c.b16 %v2755, %v2751
        %v2820 = vpack.c.b16 %v2756, %v2752
        %2885 = vmatpush.bf16.msra.mxu0 %v2785
        %2886 = vmatpush.bf16.msra.mxu0 %v2781
        %2887 = vmatpush.bf16.msra.mxu0 %v2777
        %2888 = vmatpush.bf16.msra.mxu0 %v2773
        %2889 = vmatpush.bf16.msra.mxu0 %v2769
        %2890 = vmatpush.bf16.msra.mxu0 %v2765
        %2891 = vmatpush.bf16.msra.mxu0 %v2761
        %2892 = vmatpush.bf16.msra.mxu0 %v2757
        %2893 = vmatmul.bf16.gmra.mxu0 %v2499
        %v2894 = vpop.f32.mrf.mxu0
        %v2895 = vadd.f32 0.0, %v2894
        %v2896 = vpop.f32.mrf.mxu0
        %2897 = vdwg.mxu0
        %2898 = vmatpush.bf16.msra.mxu0 %v2817
        %2899 = vmatpush.bf16.msra.mxu0 %v2813
        %2900 = vmatpush.bf16.msra.mxu0 %v2809
        %2901 = vmatpush.bf16.msra.mxu0 %v2805
        %2902 = vmatpush.bf16.msra.mxu0 %v2801
        %2903 = vmatpush.bf16.msra.mxu0 %v2797
        %2904 = vmatpush.bf16.msra.mxu0 %v2793
        %2905 = vmatpush.bf16.msra.mxu0 %v2789
        %2906 = vmatmul.bf16.gmra.mxu0 %v2500
        %v2907 = vpop.f32.mrf.mxu0
        %v2908 = vadd.f32 %v2895, %v2907
        %v2909 = vpop.f32.mrf.mxu0
        %2910 = vdwg.mxu0
        %2911 = vmatpush.bf16.msra.mxu0 %v2786
        %2912 = vmatpush.bf16.msra.mxu0 %v2782
        %2913 = vmatpush.bf16.msra.mxu0 %v2778
        %2914 = vmatpush.bf16.msra.mxu0 %v2774
        %2915 = vmatpush.bf16.msra.mxu0 %v2770
        %2916 = vmatpush.bf16.msra.mxu0 %v2766
        %2917 = vmatpush.bf16.msra.mxu0 %v2762
        %2918 = vmatpush.bf16.msra.mxu0 %v2758
        %2919 = vmatmul.bf16.gmra.mxu0 %v2499
        %v2920 = vpop.f32.mrf.mxu0
        %v2921 = vadd.f32 0.0, %v2920
        %v2922 = vpop.f32.mrf.mxu0
        %2923 = vdwg.mxu0
        %2924 = vmatpush.bf16.msra.mxu0 %v2818
        %2925 = vmatpush.bf16.msra.mxu0 %v2814
        %2926 = vmatpush.bf16.msra.mxu0 %v2810
        %2927 = vmatpush.bf16.msra.mxu0 %v2806
        %2928 = vmatpush.bf16.msra.mxu0 %v2802
        %2929 = vmatpush.bf16.msra.mxu0 %v2798
        %2930 = vmatpush.bf16.msra.mxu0 %v2794
        %2931 = vmatpush.bf16.msra.mxu0 %v2790
        %2932 = vmatmul.bf16.gmra.mxu0 %v2500
        %v2933 = vpop.f32.mrf.mxu0
        %v2934 = vadd.f32 %v2921, %v2933
        %v2935 = vpop.f32.mrf.mxu0
        %2936 = vdwg.mxu0
        %2937 = vmatpush.bf16.msra.mxu0 %v2787
        %2938 = vmatpush.bf16.msra.mxu0 %v2783
        %2939 = vmatpush.bf16.msra.mxu0 %v2779
        %2940 = vmatpush.bf16.msra.mxu0 %v2775
        %2941 = vmatpush.bf16.msra.mxu0 %v2771
        %2942 = vmatpush.bf16.msra.mxu0 %v2767
        %2943 = vmatpush.bf16.msra.mxu0 %v2763
        %2944 = vmatpush.bf16.msra.mxu0 %v2759
        %2945 = vmatmul.bf16.gmra.mxu0 %v2499
        %v2946 = vpop.f32.mrf.mxu0
        %v2947 = vadd.f32 0.0, %v2946
        %v2948 = vpop.f32.mrf.mxu0
        %2949 = vdwg.mxu0
        %2950 = vmatpush.bf16.msra.mxu0 %v2819
        %2951 = vmatpush.bf16.msra.mxu0 %v2815
        %2952 = vmatpush.bf16.msra.mxu0 %v2811
        %2953 = vmatpush.bf16.msra.mxu0 %v2807
        %2954 = vmatpush.bf16.msra.mxu0 %v2803
        %2955 = vmatpush.bf16.msra.mxu0 %v2799
        %2956 = vmatpush.bf16.msra.mxu0 %v2795
        %2957 = vmatpush.bf16.msra.mxu0 %v2791
        %2958 = vmatmul.bf16.gmra.mxu0 %v2500
        %v2959 = vpop.f32.mrf.mxu0
        %v2960 = vadd.f32 %v2947, %v2959
        %v2961 = vpop.f32.mrf.mxu0
        %2962 = vdwg.mxu0
        %2963 = vmatpush.bf16.msra.mxu0 %v2788
        %2964 = vmatpush.bf16.msra.mxu0 %v2784
        %2965 = vmatpush.bf16.msra.mxu0 %v2780
        %2966 = vmatpush.bf16.msra.mxu0 %v2776
        %2967 = vmatpush.bf16.msra.mxu0 %v2772
        %2968 = vmatpush.bf16.msra.mxu0 %v2768
        %2969 = vmatpush.bf16.msra.mxu0 %v2764
        %2970 = vmatpush.bf16.msra.mxu0 %v2760
        %2971 = vmatmul.bf16.gmra.mxu0 %v2499
        %v2972 = vpop.f32.mrf.mxu0
        %v2973 = vadd.f32 0.0, %v2972
        %v2974 = vpop.f32.mrf.mxu0
        %2975 = vdwg.mxu0
        %2976 = vmatpush.bf16.msra.mxu0 %v2820
        %2977 = vmatpush.bf16.msra.mxu0 %v2816
        %2978 = vmatpush.bf16.msra.mxu0 %v2812
        %2979 = vmatpush.bf16.msra.mxu0 %v2808
        %2980 = vmatpush.bf16.msra.mxu0 %v2804
        %2981 = vmatpush.bf16.msra.mxu0 %v2800
        %2982 = vmatpush.bf16.msra.mxu0 %v2796
        %2983 = vmatpush.bf16.msra.mxu0 %v2792
        %2984 = vmatmul.bf16.gmra.mxu0 %v2500
        %v2985 = vpop.f32.mrf.mxu0
        %v2986 = vadd.f32 %v2973, %v2985
        %v2987 = vpop.f32.mrf.mxu0
        %2988 = vdwg.mxu0
        %v2989 = vld [vmem:[#allocation19] sm:$0xff]
        %v2990 = vld [vmem:[#allocation19 + $0x8] sm:$0xff]
        %v2991 = vld [vmem:[#allocation19 + $0x10] sm:$0xff]
        %v2992 = vld [vmem:[#allocation19 + $0x18] sm:$0xff]
        %v2993 = vld [vmem:[#allocation19 + $0x20] sm:$0xff]
        %v2994 = vld [vmem:[#allocation19 + $0x28] sm:$0xff]
        %v2995 = vld [vmem:[#allocation19 + $0x30] sm:$0xff]
        %v2996 = vld [vmem:[#allocation19 + $0x38] sm:$0xff]
        %v2997 = vld [vmem:[#allocation19 + $0x40] sm:$0xff]
        %v2998 = vld [vmem:[#allocation19 + $0x48] sm:$0xff]
        %v2999 = vld [vmem:[#allocation19 + $0x50] sm:$0xff]
        %v3000 = vld [vmem:[#allocation19 + $0x58] sm:$0xff]
        %v3001 = vld [vmem:[#allocation19 + $0x60] sm:$0xff]
        %v3002 = vld [vmem:[#allocation19 + $0x68] sm:$0xff]
        %v3003 = vld [vmem:[#allocation19 + $0x70] sm:$0xff]
        %v3004 = vld [vmem:[#allocation19 + $0x78] sm:$0xff]
        %v3005 = vld [vmem:[#allocation19 + $0x80] sm:$0xff]
        %v3006 = vld [vmem:[#allocation19 + $0x88] sm:$0xff]
        %v3007 = vld [vmem:[#allocation19 + $0x90] sm:$0xff]
        %v3008 = vld [vmem:[#allocation19 + $0x98] sm:$0xff]
        %v3009 = vld [vmem:[#allocation19 + $0xa0] sm:$0xff]
        %v3010 = vld [vmem:[#allocation19 + $0xa8] sm:$0xff]
        %v3011 = vld [vmem:[#allocation19 + $0xb0] sm:$0xff]
        %v3012 = vld [vmem:[#allocation19 + $0xb8] sm:$0xff]
        %v3013 = vld [vmem:[#allocation19 + $0xc0] sm:$0xff]
        %v3014 = vld [vmem:[#allocation19 + $0xc8] sm:$0xff]
        %v3015 = vld [vmem:[#allocation19 + $0xd0] sm:$0xff]
        %v3016 = vld [vmem:[#allocation19 + $0xd8] sm:$0xff]
        %v3017 = vld [vmem:[#allocation19 + $0xe0] sm:$0xff]
        %v3018 = vld [vmem:[#allocation19 + $0xe8] sm:$0xff]
        %v3019 = vld [vmem:[#allocation19 + $0xf0] sm:$0xff]
        %v3020 = vld [vmem:[#allocation19 + $0xf8] sm:$0xff]
        %v3021 = vld [vmem:[#allocation19 + $0x100] sm:$0xff]
        %v3022 = vld [vmem:[#allocation19 + $0x108] sm:$0xff]
        %v3023 = vld [vmem:[#allocation19 + $0x110] sm:$0xff]
        %v3024 = vld [vmem:[#allocation19 + $0x118] sm:$0xff]
        %v3025 = vld [vmem:[#allocation19 + $0x120] sm:$0xff]
        %v3026 = vld [vmem:[#allocation19 + $0x128] sm:$0xff]
        %v3027 = vld [vmem:[#allocation19 + $0x130] sm:$0xff]
        %v3028 = vld [vmem:[#allocation19 + $0x138] sm:$0xff]
        %v3029 = vld [vmem:[#allocation19 + $0x140] sm:$0xff]
        %v3030 = vld [vmem:[#allocation19 + $0x148] sm:$0xff]
        %v3031 = vld [vmem:[#allocation19 + $0x150] sm:$0xff]
        %v3032 = vld [vmem:[#allocation19 + $0x158] sm:$0xff]
        %v3033 = vld [vmem:[#allocation19 + $0x160] sm:$0xff]
        %v3034 = vld [vmem:[#allocation19 + $0x168] sm:$0xff]
        %v3035 = vld [vmem:[#allocation19 + $0x170] sm:$0xff]
        %v3036 = vld [vmem:[#allocation19 + $0x178] sm:$0xff]
        %v3037 = vld [vmem:[#allocation19 + $0x180] sm:$0xff]
        %v3038 = vld [vmem:[#allocation19 + $0x188] sm:$0xff]
        %v3039 = vld [vmem:[#allocation19 + $0x190] sm:$0xff]
        %v3040 = vld [vmem:[#allocation19 + $0x198] sm:$0xff]
        %v3041 = vld [vmem:[#allocation19 + $0x1a0] sm:$0xff]
        %v3042 = vld [vmem:[#allocation19 + $0x1a8] sm:$0xff]
        %v3043 = vld [vmem:[#allocation19 + $0x1b0] sm:$0xff]
        %v3044 = vld [vmem:[#allocation19 + $0x1b8] sm:$0xff]
        %v3045 = vld [vmem:[#allocation19 + $0x1c0] sm:$0xff]
        %v3046 = vld [vmem:[#allocation19 + $0x1c8] sm:$0xff]
        %v3047 = vld [vmem:[#allocation19 + $0x1d0] sm:$0xff]
        %v3048 = vld [vmem:[#allocation19 + $0x1d8] sm:$0xff]
        %v3049 = vld [vmem:[#allocation19 + $0x1e0] sm:$0xff]
        %v3050 = vld [vmem:[#allocation19 + $0x1e8] sm:$0xff]
        %v3051 = vld [vmem:[#allocation19 + $0x1f0] sm:$0xff]
        %v3052 = vld [vmem:[#allocation19 + $0x1f8] sm:$0xff]
        %v3117 = vunpack.c.l.b16 %v2989
        %v3118 = vunpack.c.h.b16 %v2989
        %v3119 = vunpack.c.l.b16 %v2990
        %v3120 = vunpack.c.h.b16 %v2990
        %v3121 = vunpack.c.l.b16 %v2991
        %v3122 = vunpack.c.h.b16 %v2991
        %v3123 = vunpack.c.l.b16 %v2992
        %v3124 = vunpack.c.h.b16 %v2992
        %v3125 = vunpack.c.l.b16 %v2993
        %v3126 = vunpack.c.h.b16 %v2993
        %v3127 = vunpack.c.l.b16 %v2994
        %v3128 = vunpack.c.h.b16 %v2994
        %v3129 = vunpack.c.l.b16 %v2995
        %v3130 = vunpack.c.h.b16 %v2995
        %v3131 = vunpack.c.l.b16 %v2996
        %v3132 = vunpack.c.h.b16 %v2996
        %v3133 = vunpack.c.l.b16 %v2997
        %v3134 = vunpack.c.h.b16 %v2997
        %v3135 = vunpack.c.l.b16 %v2998
        %v3136 = vunpack.c.h.b16 %v2998
        %v3137 = vunpack.c.l.b16 %v2999
        %v3138 = vunpack.c.h.b16 %v2999
        %v3139 = vunpack.c.l.b16 %v3000
        %v3140 = vunpack.c.h.b16 %v3000
        %v3141 = vunpack.c.l.b16 %v3001
        %v3142 = vunpack.c.h.b16 %v3001
        %v3143 = vunpack.c.l.b16 %v3002
        %v3144 = vunpack.c.h.b16 %v3002
        %v3145 = vunpack.c.l.b16 %v3003
        %v3146 = vunpack.c.h.b16 %v3003
        %v3147 = vunpack.c.l.b16 %v3004
        %v3148 = vunpack.c.h.b16 %v3004
        %v3149 = vunpack.c.l.b16 %v3005
        %v3150 = vunpack.c.h.b16 %v3005
        %v3151 = vunpack.c.l.b16 %v3006
        %v3152 = vunpack.c.h.b16 %v3006
        %v3153 = vunpack.c.l.b16 %v3007
        %v3154 = vunpack.c.h.b16 %v3007
        %v3155 = vunpack.c.l.b16 %v3008
        %v3156 = vunpack.c.h.b16 %v3008
        %v3157 = vunpack.c.l.b16 %v3009
        %v3158 = vunpack.c.h.b16 %v3009
        %v3159 = vunpack.c.l.b16 %v3010
        %v3160 = vunpack.c.h.b16 %v3010
        %v3161 = vunpack.c.l.b16 %v3011
        %v3162 = vunpack.c.h.b16 %v3011
        %v3163 = vunpack.c.l.b16 %v3012
        %v3164 = vunpack.c.h.b16 %v3012
        %v3165 = vunpack.c.l.b16 %v3013
        %v3166 = vunpack.c.h.b16 %v3013
        %v3167 = vunpack.c.l.b16 %v3014
        %v3168 = vunpack.c.h.b16 %v3014
        %v3169 = vunpack.c.l.b16 %v3015
        %v3170 = vunpack.c.h.b16 %v3015
        %v3171 = vunpack.c.l.b16 %v3016
        %v3172 = vunpack.c.h.b16 %v3016
        %v3173 = vunpack.c.l.b16 %v3017
        %v3174 = vunpack.c.h.b16 %v3017
        %v3175 = vunpack.c.l.b16 %v3018
        %v3176 = vunpack.c.h.b16 %v3018
        %v3177 = vunpack.c.l.b16 %v3019
        %v3178 = vunpack.c.h.b16 %v3019
        %v3179 = vunpack.c.l.b16 %v3020
        %v3180 = vunpack.c.h.b16 %v3020
        %v3181 = vunpack.c.l.b16 %v3021
        %v3182 = vunpack.c.h.b16 %v3021
        %v3183 = vunpack.c.l.b16 %v3022
        %v3184 = vunpack.c.h.b16 %v3022
        %v3185 = vunpack.c.l.b16 %v3023
        %v3186 = vunpack.c.h.b16 %v3023
        %v3187 = vunpack.c.l.b16 %v3024
        %v3188 = vunpack.c.h.b16 %v3024
        %v3189 = vunpack.c.l.b16 %v3025
        %v3190 = vunpack.c.h.b16 %v3025
        %v3191 = vunpack.c.l.b16 %v3026
        %v3192 = vunpack.c.h.b16 %v3026
        %v3193 = vunpack.c.l.b16 %v3027
        %v3194 = vunpack.c.h.b16 %v3027
        %v3195 = vunpack.c.l.b16 %v3028
        %v3196 = vunpack.c.h.b16 %v3028
        %v3197 = vunpack.c.l.b16 %v3029
        %v3198 = vunpack.c.h.b16 %v3029
        %v3199 = vunpack.c.l.b16 %v3030
        %v3200 = vunpack.c.h.b16 %v3030
        %v3201 = vunpack.c.l.b16 %v3031
        %v3202 = vunpack.c.h.b16 %v3031
        %v3203 = vunpack.c.l.b16 %v3032
        %v3204 = vunpack.c.h.b16 %v3032
        %v3205 = vunpack.c.l.b16 %v3033
        %v3206 = vunpack.c.h.b16 %v3033
        %v3207 = vunpack.c.l.b16 %v3034
        %v3208 = vunpack.c.h.b16 %v3034
        %v3209 = vunpack.c.l.b16 %v3035
        %v3210 = vunpack.c.h.b16 %v3035
        %v3211 = vunpack.c.l.b16 %v3036
        %v3212 = vunpack.c.h.b16 %v3036
        %v3213 = vunpack.c.l.b16 %v3037
        %v3214 = vunpack.c.h.b16 %v3037
        %v3215 = vunpack.c.l.b16 %v3038
        %v3216 = vunpack.c.h.b16 %v3038
        %v3217 = vunpack.c.l.b16 %v3039
        %v3218 = vunpack.c.h.b16 %v3039
        %v3219 = vunpack.c.l.b16 %v3040
        %v3220 = vunpack.c.h.b16 %v3040
        %v3221 = vunpack.c.l.b16 %v3041
        %v3222 = vunpack.c.h.b16 %v3041
        %v3223 = vunpack.c.l.b16 %v3042
        %v3224 = vunpack.c.h.b16 %v3042
        %v3225 = vunpack.c.l.b16 %v3043
        %v3226 = vunpack.c.h.b16 %v3043
        %v3227 = vunpack.c.l.b16 %v3044
        %v3228 = vunpack.c.h.b16 %v3044
        %v3229 = vunpack.c.l.b16 %v3045
        %v3230 = vunpack.c.h.b16 %v3045
        %v3231 = vunpack.c.l.b16 %v3046
        %v3232 = vunpack.c.h.b16 %v3046
        %v3233 = vunpack.c.l.b16 %v3047
        %v3234 = vunpack.c.h.b16 %v3047
        %v3235 = vunpack.c.l.b16 %v3048
        %v3236 = vunpack.c.h.b16 %v3048
        %v3237 = vunpack.c.l.b16 %v3049
        %v3238 = vunpack.c.h.b16 %v3049
        %v3239 = vunpack.c.l.b16 %v3050
        %v3240 = vunpack.c.h.b16 %v3050
        %v3241 = vunpack.c.l.b16 %v3051
        %v3242 = vunpack.c.h.b16 %v3051
        %v3243 = vunpack.c.l.b16 %v3052
        %v3244 = vunpack.c.h.b16 %v3052
        %v3245 = vpack.c.b16 %v3121, %v3117
        %v3246 = vpack.c.b16 %v3122, %v3118
        %v3247 = vpack.c.b16 %v3123, %v3119
        %v3248 = vpack.c.b16 %v3124, %v3120
        %v3249 = vpack.c.b16 %v3129, %v3125
        %v3250 = vpack.c.b16 %v3130, %v3126
        %v3251 = vpack.c.b16 %v3131, %v3127
        %v3252 = vpack.c.b16 %v3132, %v3128
        %v3253 = vpack.c.b16 %v3137, %v3133
        %v3254 = vpack.c.b16 %v3138, %v3134
        %v3255 = vpack.c.b16 %v3139, %v3135
        %v3256 = vpack.c.b16 %v3140, %v3136
        %v3257 = vpack.c.b16 %v3145, %v3141
        %v3258 = vpack.c.b16 %v3146, %v3142
        %v3259 = vpack.c.b16 %v3147, %v3143
        %v3260 = vpack.c.b16 %v3148, %v3144
        %v3261 = vpack.c.b16 %v3153, %v3149
        %v3262 = vpack.c.b16 %v3154, %v3150
        %v3263 = vpack.c.b16 %v3155, %v3151
        %v3264 = vpack.c.b16 %v3156, %v3152
        %v3265 = vpack.c.b16 %v3161, %v3157
        %v3266 = vpack.c.b16 %v3162, %v3158
        %v3267 = vpack.c.b16 %v3163, %v3159
        %v3268 = vpack.c.b16 %v3164, %v3160
        %v3269 = vpack.c.b16 %v3169, %v3165
        %v3270 = vpack.c.b16 %v3170, %v3166
        %v3271 = vpack.c.b16 %v3171, %v3167
        %v3272 = vpack.c.b16 %v3172, %v3168
        %v3273 = vpack.c.b16 %v3177, %v3173
        %v3274 = vpack.c.b16 %v3178, %v3174
        %v3275 = vpack.c.b16 %v3179, %v3175
        %v3276 = vpack.c.b16 %v3180, %v3176
        %v3277 = vpack.c.b16 %v3185, %v3181
        %v3278 = vpack.c.b16 %v3186, %v3182
        %v3279 = vpack.c.b16 %v3187, %v3183
        %v3280 = vpack.c.b16 %v3188, %v3184
        %v3281 = vpack.c.b16 %v3193, %v3189
        %v3282 = vpack.c.b16 %v3194, %v3190
        %v3283 = vpack.c.b16 %v3195, %v3191
        %v3284 = vpack.c.b16 %v3196, %v3192
        %v3285 = vpack.c.b16 %v3201, %v3197
        %v3286 = vpack.c.b16 %v3202, %v3198
        %v3287 = vpack.c.b16 %v3203, %v3199
        %v3288 = vpack.c.b16 %v3204, %v3200
        %v3289 = vpack.c.b16 %v3209, %v3205
        %v3290 = vpack.c.b16 %v3210, %v3206
        %v3291 = vpack.c.b16 %v3211, %v3207
        %v3292 = vpack.c.b16 %v3212, %v3208
        %v3293 = vpack.c.b16 %v3217, %v3213
        %v3294 = vpack.c.b16 %v3218, %v3214
        %v3295 = vpack.c.b16 %v3219, %v3215
        %v3296 = vpack.c.b16 %v3220, %v3216
        %v3297 = vpack.c.b16 %v3225, %v3221
        %v3298 = vpack.c.b16 %v3226, %v3222
        %v3299 = vpack.c.b16 %v3227, %v3223
        %v3300 = vpack.c.b16 %v3228, %v3224
        %v3301 = vpack.c.b16 %v3233, %v3229
        %v3302 = vpack.c.b16 %v3234, %v3230
        %v3303 = vpack.c.b16 %v3235, %v3231
        %v3304 = vpack.c.b16 %v3236, %v3232
        %v3305 = vpack.c.b16 %v3241, %v3237
        %v3306 = vpack.c.b16 %v3242, %v3238
        %v3307 = vpack.c.b16 %v3243, %v3239
        %v3308 = vpack.c.b16 %v3244, %v3240
        %3373 = vmatpush.bf16.msra.mxu0 %v3273
        %3374 = vmatpush.bf16.msra.mxu0 %v3269
        %3375 = vmatpush.bf16.msra.mxu0 %v3265
        %3376 = vmatpush.bf16.msra.mxu0 %v3261
        %3377 = vmatpush.bf16.msra.mxu0 %v3257
        %3378 = vmatpush.bf16.msra.mxu0 %v3253
        %3379 = vmatpush.bf16.msra.mxu0 %v3249
        %3380 = vmatpush.bf16.msra.mxu0 %v3245
        %3381 = vmatmul.bf16.gmra.mxu0 %v2499
        %v3382 = vpop.f32.mrf.mxu0
        %v3383 = vadd.f32 0.0, %v3382
        %v3384 = vpop.f32.mrf.mxu0
        %3385 = vdwg.mxu0
        %3386 = vmatpush.bf16.msra.mxu0 %v3305
        %3387 = vmatpush.bf16.msra.mxu0 %v3301
        %3388 = vmatpush.bf16.msra.mxu0 %v3297
        %3389 = vmatpush.bf16.msra.mxu0 %v3293
        %3390 = vmatpush.bf16.msra.mxu0 %v3289
        %3391 = vmatpush.bf16.msra.mxu0 %v3285
        %3392 = vmatpush.bf16.msra.mxu0 %v3281
        %3393 = vmatpush.bf16.msra.mxu0 %v3277
        %3394 = vmatmul.bf16.gmra.mxu0 %v2500
        %v3395 = vpop.f32.mrf.mxu0
        %v3396 = vadd.f32 %v3383, %v3395
        %v3397 = vpop.f32.mrf.mxu0
        %3398 = vdwg.mxu0
        %3399 = vmatpush.bf16.msra.mxu0 %v3274
        %3400 = vmatpush.bf16.msra.mxu0 %v3270
        %3401 = vmatpush.bf16.msra.mxu0 %v3266
        %3402 = vmatpush.bf16.msra.mxu0 %v3262
        %3403 = vmatpush.bf16.msra.mxu0 %v3258
        %3404 = vmatpush.bf16.msra.mxu0 %v3254
        %3405 = vmatpush.bf16.msra.mxu0 %v3250
        %3406 = vmatpush.bf16.msra.mxu0 %v3246
        %3407 = vmatmul.bf16.gmra.mxu0 %v2499
        %v3408 = vpop.f32.mrf.mxu0
        %v3409 = vadd.f32 0.0, %v3408
        %v3410 = vpop.f32.mrf.mxu0
        %3411 = vdwg.mxu0
        %3412 = vmatpush.bf16.msra.mxu0 %v3306
        %3413 = vmatpush.bf16.msra.mxu0 %v3302
        %3414 = vmatpush.bf16.msra.mxu0 %v3298
        %3415 = vmatpush.bf16.msra.mxu0 %v3294
        %3416 = vmatpush.bf16.msra.mxu0 %v3290
        %3417 = vmatpush.bf16.msra.mxu0 %v3286
        %3418 = vmatpush.bf16.msra.mxu0 %v3282
        %3419 = vmatpush.bf16.msra.mxu0 %v3278
        %3420 = vmatmul.bf16.gmra.mxu0 %v2500
        %v3421 = vpop.f32.mrf.mxu0
        %v3422 = vadd.f32 %v3409, %v3421
        %v3423 = vpop.f32.mrf.mxu0
        %3424 = vdwg.mxu0
        %3425 = vmatpush.bf16.msra.mxu0 %v3275
        %3426 = vmatpush.bf16.msra.mxu0 %v3271
        %3427 = vmatpush.bf16.msra.mxu0 %v3267
        %3428 = vmatpush.bf16.msra.mxu0 %v3263
        %3429 = vmatpush.bf16.msra.mxu0 %v3259
        %3430 = vmatpush.bf16.msra.mxu0 %v3255
        %3431 = vmatpush.bf16.msra.mxu0 %v3251
        %3432 = vmatpush.bf16.msra.mxu0 %v3247
        %3433 = vmatmul.bf16.gmra.mxu0 %v2499
        %v3434 = vpop.f32.mrf.mxu0
        %v3435 = vadd.f32 0.0, %v3434
        %v3436 = vpop.f32.mrf.mxu0
        %3437 = vdwg.mxu0
        %3438 = vmatpush.bf16.msra.mxu0 %v3307
        %3439 = vmatpush.bf16.msra.mxu0 %v3303
        %3440 = vmatpush.bf16.msra.mxu0 %v3299
        %3441 = vmatpush.bf16.msra.mxu0 %v3295
        %3442 = vmatpush.bf16.msra.mxu0 %v3291
        %3443 = vmatpush.bf16.msra.mxu0 %v3287
        %3444 = vmatpush.bf16.msra.mxu0 %v3283
        %3445 = vmatpush.bf16.msra.mxu0 %v3279
        %3446 = vmatmul.bf16.gmra.mxu0 %v2500
        %v3447 = vpop.f32.mrf.mxu0
        %v3448 = vadd.f32 %v3435, %v3447
        %v3449 = vpop.f32.mrf.mxu0
        %3450 = vdwg.mxu0
        %3451 = vmatpush.bf16.msra.mxu0 %v3276
        %3452 = vmatpush.bf16.msra.mxu0 %v3272
        %3453 = vmatpush.bf16.msra.mxu0 %v3268
        %3454 = vmatpush.bf16.msra.mxu0 %v3264
        %3455 = vmatpush.bf16.msra.mxu0 %v3260
        %3456 = vmatpush.bf16.msra.mxu0 %v3256
        %3457 = vmatpush.bf16.msra.mxu0 %v3252
        %3458 = vmatpush.bf16.msra.mxu0 %v3248
        %3459 = vmatmul.bf16.gmra.mxu0 %v2499
        %v3460 = vpop.f32.mrf.mxu0
        %v3461 = vadd.f32 0.0, %v3460
        %v3462 = vpop.f32.mrf.mxu0
        %3463 = vdwg.mxu0
        %3464 = vmatpush.bf16.msra.mxu0 %v3308
        %3465 = vmatpush.bf16.msra.mxu0 %v3304
        %3466 = vmatpush.bf16.msra.mxu0 %v3300
        %3467 = vmatpush.bf16.msra.mxu0 %v3296
        %3468 = vmatpush.bf16.msra.mxu0 %v3292
        %3469 = vmatpush.bf16.msra.mxu0 %v3288
        %3470 = vmatpush.bf16.msra.mxu0 %v3284
        %3471 = vmatpush.bf16.msra.mxu0 %v3280
        %3472 = vmatmul.bf16.gmra.mxu0 %v2500
        %v3473 = vpop.f32.mrf.mxu0
        %v3474 = vadd.f32 %v3461, %v3473
        %v3475 = vpop.f32.mrf.mxu0
        %3476 = vdwg.mxu0
        %v3477 = vxor.u32 %v2908, 2147483648
        %v3478 = vxor.u32 %v2934, 2147483648
        %v3479 = vxor.u32 %v2960, 2147483648
        %v3480 = vxor.u32 %v2986, 2147483648
        %v3481 = vmul.f32 %v3477, 1.442695
        %v3482 = vpow.pop %v3481
        %v3483 = vmul.f32 %v3478, 1.442695
        %v3484 = vpow.pop %v3483
        %v3485 = vmul.f32 %v3479, 1.442695
        %v3486 = vpow.pop %v3485
        %v3487 = vmul.f32 %v3480, 1.442695
        %v3488 = vpow.pop %v3487
        %v3489 = vadd.f32 %v3482, 1.0
        %v3490 = vadd.f32 %v3484, 1.0
        %v3491 = vadd.f32 %v3486, 1.0
        %v3492 = vadd.f32 %v3488, 1.0
        %v3493 = vrcp.pop %v3489
        %v3494 = vmul.f32 %v3489, %v3493
        %v3495 = vsub.f32 1.0, %v3494
        %v3496 = vmul.f32 %v3493, %v3495
        %v3497 = vadd.f32 %v3493, %v3496
        %vm3498 = vweird.f32 %v3489
        %vm3499 = vweird.f32 %v3493
        %vm3500 = vmor %vm3498, %vm3499
        %v3501 = vsel %vm3500, %v3493, %v3497
        %v3502 = vand.u32 2147483647, %v3489
        %vm3503 = vcmp.eq.f32.partialorder %v3502, 8.507059e+37
        %v3504 = vand.u32 %v3489, 2147483648
        %v3505 = vor.u32 1.1754944e-38, %v3504
        %v3506 = vsel %vm3503, %v3505, %v3501
        %v3507 = vmul.f32 1.0, %v3506
        %v3508 = vrcp.pop %v3490
        %v3509 = vmul.f32 %v3490, %v3508
        %v3510 = vsub.f32 1.0, %v3509
        %v3511 = vmul.f32 %v3508, %v3510
        %v3512 = vadd.f32 %v3508, %v3511
        %vm3513 = vweird.f32 %v3490
        %vm3514 = vweird.f32 %v3508
        %vm3515 = vmor %vm3513, %vm3514
        %v3516 = vsel %vm3515, %v3508, %v3512
        %v3517 = vand.u32 2147483647, %v3490
        %vm3518 = vcmp.eq.f32.partialorder %v3517, 8.507059e+37
        %v3519 = vand.u32 %v3490, 2147483648
        %v3520 = vor.u32 1.1754944e-38, %v3519
        %v3521 = vsel %vm3518, %v3520, %v3516
        %v3522 = vmul.f32 1.0, %v3521
        %v3523 = vrcp.pop %v3491
        %v3524 = vmul.f32 %v3491, %v3523
        %v3525 = vsub.f32 1.0, %v3524
        %v3526 = vmul.f32 %v3523, %v3525
        %v3527 = vadd.f32 %v3523, %v3526
        %vm3528 = vweird.f32 %v3491
        %vm3529 = vweird.f32 %v3523
        %vm3530 = vmor %vm3528, %vm3529
        %v3531 = vsel %vm3530, %v3523, %v3527
        %v3532 = vand.u32 2147483647, %v3491
        %vm3533 = vcmp.eq.f32.partialorder %v3532, 8.507059e+37
        %v3534 = vand.u32 %v3491, 2147483648
        %v3535 = vor.u32 1.1754944e-38, %v3534
        %v3536 = vsel %vm3533, %v3535, %v3531
        %v3537 = vmul.f32 1.0, %v3536
        %v3538 = vrcp.pop %v3492
        %v3539 = vmul.f32 %v3492, %v3538
        %v3540 = vsub.f32 1.0, %v3539
        %v3541 = vmul.f32 %v3538, %v3540
        %v3542 = vadd.f32 %v3538, %v3541
        %vm3543 = vweird.f32 %v3492
        %vm3544 = vweird.f32 %v3538
        %vm3545 = vmor %vm3543, %vm3544
        %v3546 = vsel %vm3545, %v3538, %v3542
        %v3547 = vand.u32 2147483647, %v3492
        %vm3548 = vcmp.eq.f32.partialorder %v3547, 8.507059e+37
        %v3549 = vand.u32 %v3492, 2147483648
        %v3550 = vor.u32 1.1754944e-38, %v3549
        %v3551 = vsel %vm3548, %v3550, %v3546
        %v3552 = vmul.f32 1.0, %v3551
        %v3553 = vmul.f32 %v2908, %v3507
        %v3554 = vmul.f32 %v2934, %v3522
        %v3555 = vmul.f32 %v2960, %v3537
        %v3556 = vmul.f32 %v2986, %v3552
        %v3557 = vmul.f32 %v3553, %v3396
        %v3558 = vmul.f32 %v3554, %v3422
        %v3559 = vmul.f32 %v3555, %v3448
        %v3560 = vmul.f32 %v3556, %v3474
        %v3561 = vpack.c.bf16 %v3557, %v3557
        %v3562 = vpack.c.bf16 %v3558, %v3558
        %v3563 = vpack.c.bf16 %v3559, %v3559
        %v3564 = vpack.c.bf16 %v3560, %v3560
        %v3565 = vld [vmem:[#allocation20] sm:$0xff]
        %v3566 = vld [vmem:[#allocation20 + $0x8] sm:$0xff]
        %v3567 = vld [vmem:[#allocation20 + $0x10] sm:$0xff]
        %v3568 = vld [vmem:[#allocation20 + $0x18] sm:$0xff]
        %v3569 = vld [vmem:[#allocation20 + $0x20] sm:$0xff]
        %v3570 = vld [vmem:[#allocation20 + $0x28] sm:$0xff]
        %v3571 = vld [vmem:[#allocation20 + $0x30] sm:$0xff]
        %v3572 = vld [vmem:[#allocation20 + $0x38] sm:$0xff]
        %v3573 = vld [vmem:[#allocation20 + $0x40] sm:$0xff]
        %v3574 = vld [vmem:[#allocation20 + $0x48] sm:$0xff]
        %v3575 = vld [vmem:[#allocation20 + $0x50] sm:$0xff]
        %v3576 = vld [vmem:[#allocation20 + $0x58] sm:$0xff]
        %v3577 = vld [vmem:[#allocation20 + $0x60] sm:$0xff]
        %v3578 = vld [vmem:[#allocation20 + $0x68] sm:$0xff]
        %v3579 = vld [vmem:[#allocation20 + $0x70] sm:$0xff]
        %v3580 = vld [vmem:[#allocation20 + $0x78] sm:$0xff]
        %v3581 = vld [vmem:[#allocation20 + $0x80] sm:$0xff]
        %v3582 = vld [vmem:[#allocation20 + $0x88] sm:$0xff]
        %v3583 = vld [vmem:[#allocation20 + $0x90] sm:$0xff]
        %v3584 = vld [vmem:[#allocation20 + $0x98] sm:$0xff]
        %v3585 = vld [vmem:[#allocation20 + $0xa0] sm:$0xff]
        %v3586 = vld [vmem:[#allocation20 + $0xa8] sm:$0xff]
        %v3587 = vld [vmem:[#allocation20 + $0xb0] sm:$0xff]
        %v3588 = vld [vmem:[#allocation20 + $0xb8] sm:$0xff]
        %v3589 = vld [vmem:[#allocation20 + $0xc0] sm:$0xff]
        %v3590 = vld [vmem:[#allocation20 + $0xc8] sm:$0xff]
        %v3591 = vld [vmem:[#allocation20 + $0xd0] sm:$0xff]
        %v3592 = vld [vmem:[#allocation20 + $0xd8] sm:$0xff]
        %v3593 = vld [vmem:[#allocation20 + $0xe0] sm:$0xff]
        %v3594 = vld [vmem:[#allocation20 + $0xe8] sm:$0xff]
        %v3595 = vld [vmem:[#allocation20 + $0xf0] sm:$0xff]
        %v3596 = vld [vmem:[#allocation20 + $0xf8] sm:$0xff]
        %v3597 = vld [vmem:[#allocation20 + $0x100] sm:$0xff]
        %v3598 = vld [vmem:[#allocation20 + $0x108] sm:$0xff]
        %v3599 = vld [vmem:[#allocation20 + $0x110] sm:$0xff]
        %v3600 = vld [vmem:[#allocation20 + $0x118] sm:$0xff]
        %v3601 = vld [vmem:[#allocation20 + $0x120] sm:$0xff]
        %v3602 = vld [vmem:[#allocation20 + $0x128] sm:$0xff]
        %v3603 = vld [vmem:[#allocation20 + $0x130] sm:$0xff]
        %v3604 = vld [vmem:[#allocation20 + $0x138] sm:$0xff]
        %v3605 = vld [vmem:[#allocation20 + $0x140] sm:$0xff]
        %v3606 = vld [vmem:[#allocation20 + $0x148] sm:$0xff]
        %v3607 = vld [vmem:[#allocation20 + $0x150] sm:$0xff]
        %v3608 = vld [vmem:[#allocation20 + $0x158] sm:$0xff]
        %v3609 = vld [vmem:[#allocation20 + $0x160] sm:$0xff]
        %v3610 = vld [vmem:[#allocation20 + $0x168] sm:$0xff]
        %v3611 = vld [vmem:[#allocation20 + $0x170] sm:$0xff]
        %v3612 = vld [vmem:[#allocation20 + $0x178] sm:$0xff]
        %v3613 = vld [vmem:[#allocation20 + $0x180] sm:$0xff]
        %v3614 = vld [vmem:[#allocation20 + $0x188] sm:$0xff]
        %v3615 = vld [vmem:[#allocation20 + $0x190] sm:$0xff]
        %v3616 = vld [vmem:[#allocation20 + $0x198] sm:$0xff]
        %v3617 = vld [vmem:[#allocation20 + $0x1a0] sm:$0xff]
        %v3618 = vld [vmem:[#allocation20 + $0x1a8] sm:$0xff]
        %v3619 = vld [vmem:[#allocation20 + $0x1b0] sm:$0xff]
        %v3620 = vld [vmem:[#allocation20 + $0x1b8] sm:$0xff]
        %v3621 = vld [vmem:[#allocation20 + $0x1c0] sm:$0xff]
        %v3622 = vld [vmem:[#allocation20 + $0x1c8] sm:$0xff]
        %v3623 = vld [vmem:[#allocation20 + $0x1d0] sm:$0xff]
        %v3624 = vld [vmem:[#allocation20 + $0x1d8] sm:$0xff]
        %v3625 = vld [vmem:[#allocation20 + $0x1e0] sm:$0xff]
        %v3626 = vld [vmem:[#allocation20 + $0x1e8] sm:$0xff]
        %v3627 = vld [vmem:[#allocation20 + $0x1f0] sm:$0xff]
        %v3628 = vld [vmem:[#allocation20 + $0x1f8] sm:$0xff]
        %v3693 = vunpack.c.l.b16 %v3565
        %v3694 = vunpack.c.h.b16 %v3565
        %v3695 = vunpack.c.l.b16 %v3566
        %v3696 = vunpack.c.h.b16 %v3566
        %v3697 = vunpack.c.l.b16 %v3567
        %v3698 = vunpack.c.h.b16 %v3567
        %v3699 = vunpack.c.l.b16 %v3568
        %v3700 = vunpack.c.h.b16 %v3568
        %v3701 = vunpack.c.l.b16 %v3569
        %v3702 = vunpack.c.h.b16 %v3569
        %v3703 = vunpack.c.l.b16 %v3570
        %v3704 = vunpack.c.h.b16 %v3570
        %v3705 = vunpack.c.l.b16 %v3571
        %v3706 = vunpack.c.h.b16 %v3571
        %v3707 = vunpack.c.l.b16 %v3572
        %v3708 = vunpack.c.h.b16 %v3572
        %v3709 = vunpack.c.l.b16 %v3573
        %v3710 = vunpack.c.h.b16 %v3573
        %v3711 = vunpack.c.l.b16 %v3574
        %v3712 = vunpack.c.h.b16 %v3574
        %v3713 = vunpack.c.l.b16 %v3575
        %v3714 = vunpack.c.h.b16 %v3575
        %v3715 = vunpack.c.l.b16 %v3576
        %v3716 = vunpack.c.h.b16 %v3576
        %v3717 = vunpack.c.l.b16 %v3577
        %v3718 = vunpack.c.h.b16 %v3577
        %v3719 = vunpack.c.l.b16 %v3578
        %v3720 = vunpack.c.h.b16 %v3578
        %v3721 = vunpack.c.l.b16 %v3579
        %v3722 = vunpack.c.h.b16 %v3579
        %v3723 = vunpack.c.l.b16 %v3580
        %v3724 = vunpack.c.h.b16 %v3580
        %v3725 = vunpack.c.l.b16 %v3581
        %v3726 = vunpack.c.h.b16 %v3581
        %v3727 = vunpack.c.l.b16 %v3582
        %v3728 = vunpack.c.h.b16 %v3582
        %v3729 = vunpack.c.l.b16 %v3583
        %v3730 = vunpack.c.h.b16 %v3583
        %v3731 = vunpack.c.l.b16 %v3584
        %v3732 = vunpack.c.h.b16 %v3584
        %v3733 = vunpack.c.l.b16 %v3585
        %v3734 = vunpack.c.h.b16 %v3585
        %v3735 = vunpack.c.l.b16 %v3586
        %v3736 = vunpack.c.h.b16 %v3586
        %v3737 = vunpack.c.l.b16 %v3587
        %v3738 = vunpack.c.h.b16 %v3587
        %v3739 = vunpack.c.l.b16 %v3588
        %v3740 = vunpack.c.h.b16 %v3588
        %v3741 = vunpack.c.l.b16 %v3589
        %v3742 = vunpack.c.h.b16 %v3589
        %v3743 = vunpack.c.l.b16 %v3590
        %v3744 = vunpack.c.h.b16 %v3590
        %v3745 = vunpack.c.l.b16 %v3591
        %v3746 = vunpack.c.h.b16 %v3591
        %v3747 = vunpack.c.l.b16 %v3592
        %v3748 = vunpack.c.h.b16 %v3592
        %v3749 = vunpack.c.l.b16 %v3593
        %v3750 = vunpack.c.h.b16 %v3593
        %v3751 = vunpack.c.l.b16 %v3594
        %v3752 = vunpack.c.h.b16 %v3594
        %v3753 = vunpack.c.l.b16 %v3595
        %v3754 = vunpack.c.h.b16 %v3595
        %v3755 = vunpack.c.l.b16 %v3596
        %v3756 = vunpack.c.h.b16 %v3596
        %v3757 = vunpack.c.l.b16 %v3597
        %v3758 = vunpack.c.h.b16 %v3597
        %v3759 = vunpack.c.l.b16 %v3598
        %v3760 = vunpack.c.h.b16 %v3598
        %v3761 = vunpack.c.l.b16 %v3599
        %v3762 = vunpack.c.h.b16 %v3599
        %v3763 = vunpack.c.l.b16 %v3600
        %v3764 = vunpack.c.h.b16 %v3600
        %v3765 = vunpack.c.l.b16 %v3601
        %v3766 = vunpack.c.h.b16 %v3601
        %v3767 = vunpack.c.l.b16 %v3602
        %v3768 = vunpack.c.h.b16 %v3602
        %v3769 = vunpack.c.l.b16 %v3603
        %v3770 = vunpack.c.h.b16 %v3603
        %v3771 = vunpack.c.l.b16 %v3604
        %v3772 = vunpack.c.h.b16 %v3604
        %v3773 = vunpack.c.l.b16 %v3605
        %v3774 = vunpack.c.h.b16 %v3605
        %v3775 = vunpack.c.l.b16 %v3606
        %v3776 = vunpack.c.h.b16 %v3606
        %v3777 = vunpack.c.l.b16 %v3607
        %v3778 = vunpack.c.h.b16 %v3607
        %v3779 = vunpack.c.l.b16 %v3608
        %v3780 = vunpack.c.h.b16 %v3608
        %v3781 = vunpack.c.l.b16 %v3609
        %v3782 = vunpack.c.h.b16 %v3609
        %v3783 = vunpack.c.l.b16 %v3610
        %v3784 = vunpack.c.h.b16 %v3610
        %v3785 = vunpack.c.l.b16 %v3611
        %v3786 = vunpack.c.h.b16 %v3611
        %v3787 = vunpack.c.l.b16 %v3612
        %v3788 = vunpack.c.h.b16 %v3612
        %v3789 = vunpack.c.l.b16 %v3613
        %v3790 = vunpack.c.h.b16 %v3613
        %v3791 = vunpack.c.l.b16 %v3614
        %v3792 = vunpack.c.h.b16 %v3614
        %v3793 = vunpack.c.l.b16 %v3615
        %v3794 = vunpack.c.h.b16 %v3615
        %v3795 = vunpack.c.l.b16 %v3616
        %v3796 = vunpack.c.h.b16 %v3616
        %v3797 = vunpack.c.l.b16 %v3617
        %v3798 = vunpack.c.h.b16 %v3617
        %v3799 = vunpack.c.l.b16 %v3618
        %v3800 = vunpack.c.h.b16 %v3618
        %v3801 = vunpack.c.l.b16 %v3619
        %v3802 = vunpack.c.h.b16 %v3619
        %v3803 = vunpack.c.l.b16 %v3620
        %v3804 = vunpack.c.h.b16 %v3620
        %v3805 = vunpack.c.l.b16 %v3621
        %v3806 = vunpack.c.h.b16 %v3621
        %v3807 = vunpack.c.l.b16 %v3622
        %v3808 = vunpack.c.h.b16 %v3622
        %v3809 = vunpack.c.l.b16 %v3623
        %v3810 = vunpack.c.h.b16 %v3623
        %v3811 = vunpack.c.l.b16 %v3624
        %v3812 = vunpack.c.h.b16 %v3624
        %v3813 = vunpack.c.l.b16 %v3625
        %v3814 = vunpack.c.h.b16 %v3625
        %v3815 = vunpack.c.l.b16 %v3626
        %v3816 = vunpack.c.h.b16 %v3626
        %v3817 = vunpack.c.l.b16 %v3627
        %v3818 = vunpack.c.h.b16 %v3627
        %v3819 = vunpack.c.l.b16 %v3628
        %v3820 = vunpack.c.h.b16 %v3628
        %v3821 = vpack.c.b16 %v3695, %v3693
        %v3822 = vpack.c.b16 %v3696, %v3694
        %v3823 = vpack.c.b16 %v3699, %v3697
        %v3824 = vpack.c.b16 %v3700, %v3698
        %v3825 = vpack.c.b16 %v3703, %v3701
        %v3826 = vpack.c.b16 %v3704, %v3702
        %v3827 = vpack.c.b16 %v3707, %v3705
        %v3828 = vpack.c.b16 %v3708, %v3706
        %v3829 = vpack.c.b16 %v3711, %v3709
        %v3830 = vpack.c.b16 %v3712, %v3710
        %v3831 = vpack.c.b16 %v3715, %v3713
        %v3832 = vpack.c.b16 %v3716, %v3714
        %v3833 = vpack.c.b16 %v3719, %v3717
        %v3834 = vpack.c.b16 %v3720, %v3718
        %v3835 = vpack.c.b16 %v3723, %v3721
        %v3836 = vpack.c.b16 %v3724, %v3722
        %v3837 = vpack.c.b16 %v3727, %v3725
        %v3838 = vpack.c.b16 %v3728, %v3726
        %v3839 = vpack.c.b16 %v3731, %v3729
        %v3840 = vpack.c.b16 %v3732, %v3730
        %v3841 = vpack.c.b16 %v3735, %v3733
        %v3842 = vpack.c.b16 %v3736, %v3734
        %v3843 = vpack.c.b16 %v3739, %v3737
        %v3844 = vpack.c.b16 %v3740, %v3738
        %v3845 = vpack.c.b16 %v3743, %v3741
        %v3846 = vpack.c.b16 %v3744, %v3742
        %v3847 = vpack.c.b16 %v3747, %v3745
        %v3848 = vpack.c.b16 %v3748, %v3746
        %v3849 = vpack.c.b16 %v3751, %v3749
        %v3850 = vpack.c.b16 %v3752, %v3750
        %v3851 = vpack.c.b16 %v3755, %v3753
        %v3852 = vpack.c.b16 %v3756, %v3754
        %v3853 = vpack.c.b16 %v3759, %v3757
        %v3854 = vpack.c.b16 %v3760, %v3758
        %v3855 = vpack.c.b16 %v3763, %v3761
        %v3856 = vpack.c.b16 %v3764, %v3762
        %v3857 = vpack.c.b16 %v3767, %v3765
        %v3858 = vpack.c.b16 %v3768, %v3766
        %v3859 = vpack.c.b16 %v3771, %v3769
        %v3860 = vpack.c.b16 %v3772, %v3770
        %v3861 = vpack.c.b16 %v3775, %v3773
        %v3862 = vpack.c.b16 %v3776, %v3774
        %v3863 = vpack.c.b16 %v3779, %v3777
        %v3864 = vpack.c.b16 %v3780, %v3778
        %v3865 = vpack.c.b16 %v3783, %v3781
        %v3866 = vpack.c.b16 %v3784, %v3782
        %v3867 = vpack.c.b16 %v3787, %v3785
        %v3868 = vpack.c.b16 %v3788, %v3786
        %v3869 = vpack.c.b16 %v3791, %v3789
        %v3870 = vpack.c.b16 %v3792, %v3790
        %v3871 = vpack.c.b16 %v3795, %v3793
        %v3872 = vpack.c.b16 %v3796, %v3794
        %v3873 = vpack.c.b16 %v3799, %v3797
        %v3874 = vpack.c.b16 %v3800, %v3798
        %v3875 = vpack.c.b16 %v3803, %v3801
        %v3876 = vpack.c.b16 %v3804, %v3802
        %v3877 = vpack.c.b16 %v3807, %v3805
        %v3878 = vpack.c.b16 %v3808, %v3806
        %v3879 = vpack.c.b16 %v3811, %v3809
        %v3880 = vpack.c.b16 %v3812, %v3810
        %v3881 = vpack.c.b16 %v3815, %v3813
        %v3882 = vpack.c.b16 %v3816, %v3814
        %v3883 = vpack.c.b16 %v3819, %v3817
        %v3884 = vpack.c.b16 %v3820, %v3818
        %3949 = vmatpush.bf16.msra.mxu0 %v3835
        %3950 = vmatpush.bf16.msra.mxu0 %v3833
        %3951 = vmatpush.bf16.msra.mxu0 %v3831
        %3952 = vmatpush.bf16.msra.mxu0 %v3829
        %3953 = vmatpush.bf16.msra.mxu0 %v3827
        %3954 = vmatpush.bf16.msra.mxu0 %v3825
        %3955 = vmatpush.bf16.msra.mxu0 %v3823
        %3956 = vmatpush.bf16.msra.mxu0 %v3821
        %3957 = vmatmul.bf16.gmra.mxu0 %v3561
        %v3958 = vpop.f32.mrf.mxu0
        %v3959 = vadd.f32 0.0, %v3958
        %v3960 = vpop.f32.mrf.mxu0
        %3961 = vdwg.mxu0
        %3962 = vmatpush.bf16.msra.mxu0 %v3851
        %3963 = vmatpush.bf16.msra.mxu0 %v3849
        %3964 = vmatpush.bf16.msra.mxu0 %v3847
        %3965 = vmatpush.bf16.msra.mxu0 %v3845
        %3966 = vmatpush.bf16.msra.mxu0 %v3843
        %3967 = vmatpush.bf16.msra.mxu0 %v3841
        %3968 = vmatpush.bf16.msra.mxu0 %v3839
        %3969 = vmatpush.bf16.msra.mxu0 %v3837
        %3970 = vmatmul.bf16.gmra.mxu0 %v3562
        %v3971 = vpop.f32.mrf.mxu0
        %v3972 = vadd.f32 %v3959, %v3971
        %v3973 = vpop.f32.mrf.mxu0
        %3974 = vdwg.mxu0
        %3975 = vmatpush.bf16.msra.mxu0 %v3867
        %3976 = vmatpush.bf16.msra.mxu0 %v3865
        %3977 = vmatpush.bf16.msra.mxu0 %v3863
        %3978 = vmatpush.bf16.msra.mxu0 %v3861
        %3979 = vmatpush.bf16.msra.mxu0 %v3859
        %3980 = vmatpush.bf16.msra.mxu0 %v3857
        %3981 = vmatpush.bf16.msra.mxu0 %v3855
        %3982 = vmatpush.bf16.msra.mxu0 %v3853
        %3983 = vmatmul.bf16.gmra.mxu0 %v3563
        %v3984 = vpop.f32.mrf.mxu0
        %v3985 = vadd.f32 %v3972, %v3984
        %v3986 = vpop.f32.mrf.mxu0
        %3987 = vdwg.mxu0
        %3988 = vmatpush.bf16.msra.mxu0 %v3883
        %3989 = vmatpush.bf16.msra.mxu0 %v3881
        %3990 = vmatpush.bf16.msra.mxu0 %v3879
        %3991 = vmatpush.bf16.msra.mxu0 %v3877
        %3992 = vmatpush.bf16.msra.mxu0 %v3875
        %3993 = vmatpush.bf16.msra.mxu0 %v3873
        %3994 = vmatpush.bf16.msra.mxu0 %v3871
        %3995 = vmatpush.bf16.msra.mxu0 %v3869
        %3996 = vmatmul.bf16.gmra.mxu0 %v3564
        %v3997 = vpop.f32.mrf.mxu0
        %v3998 = vadd.f32 %v3985, %v3997
        %v3999 = vpop.f32.mrf.mxu0
        %4000 = vdwg.mxu0
        %4001 = vmatpush.bf16.msra.mxu0 %v3836
        %4002 = vmatpush.bf16.msra.mxu0 %v3834
        %4003 = vmatpush.bf16.msra.mxu0 %v3832
        %4004 = vmatpush.bf16.msra.mxu0 %v3830
        %4005 = vmatpush.bf16.msra.mxu0 %v3828
        %4006 = vmatpush.bf16.msra.mxu0 %v3826
        %4007 = vmatpush.bf16.msra.mxu0 %v3824
        %4008 = vmatpush.bf16.msra.mxu0 %v3822
        %4009 = vmatmul.bf16.gmra.mxu0 %v3561
        %v4010 = vpop.f32.mrf.mxu0
        %v4011 = vadd.f32 0.0, %v4010
        %v4012 = vpop.f32.mrf.mxu0
        %4013 = vdwg.mxu0
        %4014 = vmatpush.bf16.msra.mxu0 %v3852
        %4015 = vmatpush.bf16.msra.mxu0 %v3850
        %4016 = vmatpush.bf16.msra.mxu0 %v3848
        %4017 = vmatpush.bf16.msra.mxu0 %v3846
        %4018 = vmatpush.bf16.msra.mxu0 %v3844
        %4019 = vmatpush.bf16.msra.mxu0 %v3842
        %4020 = vmatpush.bf16.msra.mxu0 %v3840
        %4021 = vmatpush.bf16.msra.mxu0 %v3838
        %4022 = vmatmul.bf16.gmra.mxu0 %v3562
        %v4023 = vpop.f32.mrf.mxu0
        %v4024 = vadd.f32 %v4011, %v4023
        %v4025 = vpop.f32.mrf.mxu0
        %4026 = vdwg.mxu0
        %4027 = vmatpush.bf16.msra.mxu0 %v3868
        %4028 = vmatpush.bf16.msra.mxu0 %v3866
        %4029 = vmatpush.bf16.msra.mxu0 %v3864
        %4030 = vmatpush.bf16.msra.mxu0 %v3862
        %4031 = vmatpush.bf16.msra.mxu0 %v3860
        %4032 = vmatpush.bf16.msra.mxu0 %v3858
        %4033 = vmatpush.bf16.msra.mxu0 %v3856
        %4034 = vmatpush.bf16.msra.mxu0 %v3854
        %4035 = vmatmul.bf16.gmra.mxu0 %v3563
        %v4036 = vpop.f32.mrf.mxu0
        %v4037 = vadd.f32 %v4024, %v4036
        %v4038 = vpop.f32.mrf.mxu0
        %4039 = vdwg.mxu0
        %4040 = vmatpush.bf16.msra.mxu0 %v3884
        %4041 = vmatpush.bf16.msra.mxu0 %v3882
        %4042 = vmatpush.bf16.msra.mxu0 %v3880
        %4043 = vmatpush.bf16.msra.mxu0 %v3878
        %4044 = vmatpush.bf16.msra.mxu0 %v3876
        %4045 = vmatpush.bf16.msra.mxu0 %v3874
        %4046 = vmatpush.bf16.msra.mxu0 %v3872
        %4047 = vmatpush.bf16.msra.mxu0 %v3870
        %4048 = vmatmul.bf16.gmra.mxu0 %v3564
        %v4049 = vpop.f32.mrf.mxu0
        %v4050 = vadd.f32 %v4037, %v4049
        %v4051 = vpop.f32.mrf.mxu0
        %4052 = vdwg.mxu0
        %v4053 = vadd.f32 %v2470, %v3998
        %v4054 = vadd.f32 %v2471, %v4050
        %4055 = vst [vmem:[%s984] sm:$0xff] %v4053
        %4056 = vst [vmem:[%s984 + $0x8] sm:$0xff] %v4054
        %s4057 = sand.u32 %s431, 1
        %s4058 = scalar_lea.sflag [#allocation4], %s4057
        %s4059 = sand.u32 %s431, 1
        %s4060 = smul.addr %s4059, 16
        %s4061 = scalar_lea.vmem [#allocation25], %s4060
        %s4062 = sand.u32 %s52, 1
        %s4063 = scalar_lea.sflag [#allocation27], %s4062
        %s4064 = sand.u32 %s457, 1
        %s4065 = smul.addr %s4064, 16
        %s4066 = scalar_lea.vmem [#allocation26], %s4065
        %s4067 = sand.u32 %s52, 1
        %s4068 = scalar_lea.sflag [#allocation27], %s4067
        %s4069 = sand.u32 %s483, 1
        %s4070 = smul.addr %s4069, 16
        %s4071 = scalar_lea.vmem [#allocation28], %s4070
        // Predicated region
        $region141: #{tpu_custom_call.1} parent=83 // pred_check
          %p4072 = pneg %p441
        $region142: #{tpu_custom_call.1} parent=83 // pred_check_branch
          %4074 = sbr.rel (%p4072) target = $region144
        $region143: #{tpu_custom_call.1} parent=83 // pred_region
          %4076 = vsyncadd %s4058, 0
          %s4077 = smul.addr %s52, 2
          %s4078 = smul.addr %s4077, 8
          %s4079 = scalar_lea.hbm %s16, %s4078
          %s4081 = sshll.u32 %s4061, 4
          %s4082 = int_to_ptr.vmem [resolvable:$true] %s4081
          %s4083 = sshll.u32 %s4079, 4
          %s4084 = int_to_ptr.hbm [resolvable:$true] %s4083
          %4086 = dma.vmem_to_hbm [thread:$0]  %s4082, 256, %s4084, %s4058
        $region144: #{tpu_custom_call.1} parent=83 // pred_fallthru
          _
        // Predicated region
        $region145: #{tpu_custom_call.1} parent=83 // pred_check
          %p4087 = pneg %p467
        $region146: #{tpu_custom_call.1} parent=83 // pred_check_branch
          %4089 = sbr.rel (%p4087) target = $region148
        $region147: #{tpu_custom_call.1} parent=83 // pred_region
          %4091 = vsyncadd %s4063, 0
          %s4092 = smul.addr %s52, 6
          %s4093 = sadd.s32 2, %s4092
          %s4094 = smul.addr %s4093, 8
          %s4095 = scalar_lea.hbm %s17, %s4094
          %s4096 = sshll.u32 %s4066, 4
          %s4097 = int_to_ptr.vmem [resolvable:$true] %s4096
          %s4098 = sshll.u32 %s4095, 4
          %s4099 = int_to_ptr.hbm [resolvable:$true] %s4098
          %4104 = dma.vmem_to_hbm [thread:$0]  %s4097, 256, %s4099, %s4063, 128, 384, 8
        $region148: #{tpu_custom_call.1} parent=83 // pred_fallthru
          _
        // Predicated region
        $region149: #{tpu_custom_call.1} parent=83 // pred_check
          %p4105 = pneg %p493
        $region150: #{tpu_custom_call.1} parent=83 // pred_check_branch
          %4107 = sbr.rel (%p4105) target = $region152
        $region151: #{tpu_custom_call.1} parent=83 // pred_region
          %4109 = vsyncadd %s4068, 0
          %s4110 = smul.addr %s52, 6
          %s4111 = sadd.s32 2, %s4110
          %s4112 = smul.addr %s4111, 8
          %s4113 = scalar_lea.hbm %s18, %s4112
          %s4114 = sshll.u32 %s4071, 4
          %s4115 = int_to_ptr.vmem [resolvable:$true] %s4114
          %s4116 = sshll.u32 %s4113, 4
          %s4117 = int_to_ptr.hbm [resolvable:$true] %s4116
          %4122 = dma.vmem_to_hbm [thread:$0]  %s4115, 256, %s4117, %s4068, 128, 384, 8
        $region152: #{tpu_custom_call.1} parent=83 // pred_fallthru
          _
      $region84: #{tpu_custom_call.1} parent=5 // pred_fallthru
        _
      %p4123 = scmp.le.s32.totalorder 2, %s47
      // Predicated region
      $region153: #{tpu_custom_call.1} parent=5 // pred_check
        %p4124 = pneg %p4123
      $region154: #{tpu_custom_call.1} parent=5 // pred_check_branch
        %4126 = sbr.rel (%p4124) target = $region156
      $region155: #{tpu_custom_call.1} parent=5 // pred_region
        %s4127 = ssub.s32 %s47, 2
        // Predicated region
        $region157: #{tpu_custom_call.1} parent=155 // pred_check
          %p4128 = pneg %p447
        $region158: #{tpu_custom_call.1} parent=155 // pred_check_branch
          %4130 = sbr.rel (%p4128) target = $region160
        $region159: #{tpu_custom_call.1} parent=155 // pred_region
          %s4131 = sand.u32 %s432, 1
          %s4132 = scalar_lea.sflag [#allocation4], %s4131
          %s4133 = sand.u32 %s432, 1
          %s4134 = smul.addr %s4133, 16
          %s4135 = scalar_lea.vmem [#allocation25], %s4134
          %4137 = dma.done %s4132, 256
        $region160: #{tpu_custom_call.1} parent=155 // pred_fallthru
          _
        // Predicated region
        $region161: #{tpu_custom_call.1} parent=155 // pred_check
          %p4138 = pneg %p473
        $region162: #{tpu_custom_call.1} parent=155 // pred_check_branch
          %4140 = sbr.rel (%p4138) target = $region164
        $region163: #{tpu_custom_call.1} parent=155 // pred_region
          %s4141 = sand.u32 %s53, 1
          %s4142 = scalar_lea.sflag [#allocation27], %s4141
          %s4143 = sand.u32 %s458, 1
          %s4144 = smul.addr %s4143, 16
          %s4145 = scalar_lea.vmem [#allocation26], %s4144
          %4147 = dma.done %s4142, 256
        $region164: #{tpu_custom_call.1} parent=155 // pred_fallthru
          _
        // Predicated region
        $region165: #{tpu_custom_call.1} parent=155 // pred_check
          %p4148 = pneg %p499
        $region166: #{tpu_custom_call.1} parent=155 // pred_check_branch
          %4150 = sbr.rel (%p4148) target = $region168
        $region167: #{tpu_custom_call.1} parent=155 // pred_region
          %s4151 = sand.u32 %s53, 1
          %s4152 = scalar_lea.sflag [#allocation27], %s4151
          %s4153 = sand.u32 %s484, 1
          %s4154 = smul.addr %s4153, 16
          %s4155 = scalar_lea.vmem [#allocation28], %s4154
          %4157 = dma.done %s4152, 256
        $region168: #{tpu_custom_call.1} parent=155 // pred_fallthru
          _
      $region156: #{tpu_custom_call.1} parent=5 // pred_fallthru
        _
    $region6: #{tpu_custom_call.1} parent=1 // loop_footer
      %s51 = sadd.s32 1, %s47
    $region7: #{tpu_custom_call.1} parent=1 // loop_footer_branch
      %46 = sbr.rel target = $region3
    $region8: #{tpu_custom_call.1} parent=1 // loop_exit
      _
    %4158 = vsyncpa [#allocation3], 1
    %s4159 = scalar_lea.sflag [#allocation3], 1
    %4160 = vsyncpa %s4159, 1
    %4161 = vsyncpa [#allocation6], 1
    %s4162 = scalar_lea.sflag [#allocation6], 1
    %4163 = vsyncpa %s4162, 1
    %4164 = vsyncpa [#allocation9], 1
    %s4165 = scalar_lea.sflag [#allocation9], 1
    %4166 = vsyncpa %s4165, 1
    %4167 = vsyncpa [#allocation12], 1
    %s4168 = scalar_lea.sflag [#allocation12], 1
    %4169 = vsyncpa %s4168, 1
    %4170 = vsyncpa [#allocation15], 1
    %4171 = vsyncpa [#allocation18], 1
    %4172 = vsyncpa [#allocation21], 1
    %4173 = vsyncpa [#allocation24], 1
    %4174 = vsyncpa [#allocation4], 1
    %s4175 = scalar_lea.sflag [#allocation4], 1
    %4176 = vsyncpa %s4175, 1
    %4177 = vsyncpa [#allocation27], 1
    %s4178 = scalar_lea.sflag [#allocation27], 1
    %4179 = vsyncpa %s4178, 1

</llo_original>
